<compile_context>
chip_gen: v6e
topology: v6e:2x2x1
jax: 0.10.0
libtpu: 0.0.40
codegen_flags: <defaults>
</compile_context>

<pallas_src>
import functools
import math

import jax
import jax.numpy as jnp
from jax.experimental import pallas as pl
from jax.experimental.pallas import tpu as pltpu


def _mli_kernel(videos_ref, vmadd_ref, sents_ref, smadd_ref,
                wseq_ref, bseq_ref, wcc_ref, blat_ref,
                out_v_ref, out_s_ref,
                *, num_sets, joint_dim, attn_dim, w_off, b_off, compute_dtype):
    f32 = jnp.float32
    cdt = compute_dtype
    S, D, E = num_sets, joint_dim, attn_dim
    N2 = S * S
    Bt, Lv, _ = videos_ref.shape
    _, Ls, _ = sents_ref.shape

    def W(name, width):
        o = w_off[name]
        return wseq_ref[:, o:o + width]            # (D, width), compute dtype

    def Bias(name, width):
        o = b_off[name]
        return bseq_ref[:, o:o + width]            # (1, width), float32

    v3 = videos_ref[...].astype(f32)               # (Bt, Lv, D)
    s3 = sents_ref[...].astype(f32)                # (Bt, Ls, D)
    # Flatten batch into sublanes for all shared-weight (right-multiplied) matmuls.
    v2 = v3.reshape(Bt * Lv, D).astype(cdt)
    s2 = s3.reshape(Bt * Ls, D).astype(cdt)

    def latent_pool(x3, x2, L, mask_add, name):
        # logits over the sequence axis; softmax over L per (batch, set).
        logits = (jnp.dot(x2, W(name, S), preferred_element_type=f32)
                  + Bias(name, S)).reshape(Bt, L, S)
        logits = logits + mask_add                  # -1e30 at padded positions
        m = jnp.max(logits, axis=1, keepdims=True)
        e = jnp.exp(logits - m)
        p = e / jnp.sum(e, axis=1, keepdims=True)   # (Bt, L, S)
        pt = jnp.swapaxes(p, 1, 2)                  # (Bt, S, L)
        # pooled latents == torch.bmm(weights, x)
        return jnp.einsum('bsl,bld->bsd', pt.astype(cdt), x3.astype(cdt),
                          preferred_element_type=f32)      # (Bt, S, D)

    v_lat = latent_pool(v3, v2, Lv, vmadd_ref[...], "vid")   # (Bt, S, D)
    s_lat = latent_pool(s3, s2, Ls, smadd_ref[...], "sent")  # (Bt, S, D)

    # interaction[b, i*S + j, :] = v_lat[b, i, :] * s_lat[b, j, :]
    rows = [v_lat[:, i:i + 1, :] * s_lat for i in range(S)]
    inter = jnp.concatenate(rows, axis=1)                    # (Bt, N2, D)

    # self.interaction (linear over D)
    inter2 = inter.reshape(Bt * N2, D).astype(cdt)
    inter2 = (jnp.dot(inter2, W("inter", D), preferred_element_type=f32)
              + Bias("inter", D))                            # (Bt*N2, D) f32
    inter2c = inter2.astype(cdt)

    # cross_dim: linear over D (bias folded into blat)
    cross_dim = jnp.dot(inter2c, W("cd", D), preferred_element_type=f32)
    # cross_channel: linear over the num_sets**2 axis (bias folded into blat)
    wcc_b = jnp.broadcast_to(wcc_ref[...][None], (Bt, N2, N2))
    cross_ch = jnp.einsum('bnm,bmd->bnd', wcc_b, inter2c.reshape(Bt, N2, D),
                          preferred_element_type=f32)
    latent = cross_dim.reshape(Bt, N2, D) + cross_ch + blat_ref[...][None]
    latent_c = latent.astype(cdt)                            # (Bt, N2, D)

    # K weights/bias are pre-scaled by 1/sqrt(attn_dim) in the wrapper.
    key = (jnp.dot(latent_c.reshape(Bt * N2, D), W("k", E),
                   preferred_element_type=f32)
           + Bias("k", E)).reshape(Bt, N2, E)
    key_c = key.astype(cdt)

    def attend(x3, x2, L, name, out_ref):
        q = (jnp.dot(x2, W(name, E), preferred_element_type=f32)
             + Bias(name, E)).reshape(Bt, L, E)
        scores = jnp.einsum('ble,bne->bln', q.astype(cdt), key_c,
                            preferred_element_type=f32)      # (Bt, L, N2)
        m = jnp.max(scores, axis=-1, keepdims=True)
        e = jnp.exp(scores - m)
        attn = e / jnp.sum(e, axis=-1, keepdims=True)
        upd = x3 + jnp.einsum('bln,bnd->bld', attn.astype(cdt), latent_c,
                              preferred_element_type=f32)
        out_ref[...] = upd.astype(out_ref.dtype)

    attend(v3, v2, Lv, "qv", out_v_ref)
    attend(s3, s2, Ls, "qs", out_s_ref)


def _pack_params(params, compute_dtype):
    """Pack the 16 small weights/biases into a few lane-dense slabs."""
    D, S = params["w_video"].shape
    E = params["w_k"].shape[1]
    scale = 1.0 / math.sqrt(E)

    # 128-wide segments first so their slices are lane-tile aligned.
    w_segs = [("qv", params["w_qv"]), ("qs", params["w_qs"]),
              ("k", params["w_k"] * scale),
              ("inter", params["w_inter"]), ("cd", params["w_cross_dim"]),
              ("vid", params["w_video"]), ("sent", params["w_sent"])]
    b_segs = [("qv", params["b_qv"]), ("qs", params["b_qs"]),
              ("k", params["b_k"] * scale),
              ("inter", params["b_inter"]),
              ("vid", params["b_video"]), ("sent", params["b_sent"])]

    def pack(segs, dtype):
        offs, arrs, off = {}, [], 0
        for name, a in segs:
            offs[name] = off
            off += a.shape[1]
            arrs.append(a)
        return jnp.concatenate(arrs, axis=1).astype(dtype), offs

    w_seq, w_off = pack(w_segs, compute_dtype)       # (D, 3E + 2D + 2S)
    b_seq, b_off = pack(b_segs, jnp.float32)         # (1, 3E + D + 2S)
    # Fused bias of latent = cross_dim + cross_channel: (1,D) + (N2,1) -> (N2,D)
    b_lat = (params["b_cross_dim"] + params["b_cross_ch"]).astype(jnp.float32)
    w_cc = params["w_cross_ch"].astype(compute_dtype)
    return dict(w_seq=w_seq, b_seq=b_seq, w_cc=w_cc, b_lat=b_lat,
                w_off=w_off, b_off=b_off, S=S, D=D, E=E)


def mli_forward(videos, videos_mask, sentences, sentences_mask, params, *,
                batch_block=8, compute_dtype=jnp.float32):
    B, Lv, D = videos.shape
    _, Ls, _ = sentences.shape

    packed = _pack_params(params, compute_dtype)
    S, E = packed["S"], packed["E"]

    # Batch-block size: amortize per-grid-step overhead but keep >= 2 grid
    # steps when possible (v7x has 2 TensorCores sharded over parallel axes).
    if B >= 2:
        Bt = max(1, min(batch_block, -(-B // 2)))
    else:
        Bt = 1
    B_pad = -(-B // Bt) * Bt

    # Additive finite mask: -1e30 at padded positions (avoids compare+select
    # and the -inf/NaN hazard of fully-masked sequences).
    neg = jnp.float32(-1e30)
    vmadd = videos_mask.astype(jnp.float32).reshape(B, Lv, 1) * neg
    smadd = sentences_mask.astype(jnp.float32).reshape(B, Ls, 1) * neg

    def pad_b(x):
        if B_pad == B:
            return x
        pad = [(0, B_pad - B)] + [(0, 0)] * (x.ndim - 1)
        return jnp.pad(x, pad)          # padded rows: zeros, fully unmasked

    videos_p = pad_b(videos)
    vmadd_p = pad_b(vmadd)
    sents_p = pad_b(sentences)
    smadd_p = pad_b(smadd)

    def blk(shape):
        nd = len(shape)
        return pl.BlockSpec((Bt,) + tuple(shape[1:]),
                            lambda g, _n=nd: (g,) + (0,) * (_n - 1))

    def rep(shape):
        nd = len(shape)
        return pl.BlockSpec(tuple(shape), lambda g, _n=nd: (0,) * _n)

    in_arrays = [videos_p, vmadd_p, sents_p, smadd_p,
                 packed["w_seq"], packed["b_seq"], packed["w_cc"], packed["b_lat"]]
    in_specs = ([blk(videos_p.shape), blk(vmadd_p.shape),
                 blk(sents_p.shape), blk(smadd_p.shape)]
                + [rep(a.shape) for a in in_arrays[4:]])

    out_shape = (jax.ShapeDtypeStruct((B_pad, Lv, D), videos.dtype),
                 jax.ShapeDtypeStruct((B_pad, Ls, D), sentences.dtype))
    out_specs = [blk((B_pad, Lv, D)), blk((B_pad, Ls, D))]

    kernel = functools.partial(
        _mli_kernel, num_sets=S, joint_dim=D, attn_dim=E,
        w_off=packed["w_off"], b_off=packed["b_off"],
        compute_dtype=compute_dtype)

    out_v, out_s = pl.pallas_call(
        kernel,
        out_shape=out_shape,
        grid_spec=pltpu.PrefetchScalarGridSpec(
            num_scalar_prefetch=0,
            grid=(B_pad // Bt,),
            in_specs=in_specs,
            out_specs=out_specs),
        compiler_params=pltpu.CompilerParams(
            dimension_semantics=("parallel",),
            vmem_limit_bytes=32 * 1024 * 1024),
    )(*in_arrays)
    return out_v[:B], out_s[:B]


def init_params(key, joint_dim, num_sets, attn_dim=128):
    n2 = num_sets * num_sets
    shapes = {
        "w_video": (joint_dim, num_sets), "b_video": (1, num_sets),
        "w_sent": (joint_dim, num_sets), "b_sent": (1, num_sets),
        "w_inter": (joint_dim, joint_dim), "b_inter": (1, joint_dim),
        "w_cross_dim": (joint_dim, joint_dim), "b_cross_dim": (1, joint_dim),
        "w_cross_ch": (n2, n2), "b_cross_ch": (n2, 1),
        "w_qv": (joint_dim, attn_dim), "b_qv": (1, attn_dim),
        "w_qs": (joint_dim, attn_dim), "b_qs": (1, attn_dim),
        "w_k": (joint_dim, attn_dim), "b_k": (1, attn_dim),
    }
    params = {}
    names = sorted(shapes)
    keys = jax.random.split(key, len(names))
    for k_, name in zip(keys, names):
        params[name] = (0.1 * jax.random.normal(k_, shapes[name])).astype(jnp.float32)
    return params


def mli_reference(videos, videos_mask, sentences, sentences_mask, params):
    """Pure-JAX reference mirroring the PyTorch forward semantics."""
    def pool(x, mask, w, b):
        logits = jnp.einsum('bld,ds->bsl', x, w) + b[0][None, :, None]
        logits = jnp.where(mask[:, None, :] > 0.5, -jnp.inf, logits)
        p = jax.nn.softmax(logits, axis=-1)
        return jnp.einsum('bsl,bld->bsd', p, x)

    vm = videos_mask.astype(jnp.float32)
    sm = sentences_mask.astype(jnp.float32)
    v_lat = pool(videos, vm, params["w_video"], params["b_video"])
    s_lat = pool(sentences, sm, params["w_sent"], params["b_sent"])
    inter = v_lat[:, :, None, :] * s_lat[:, None, :, :]          # (B,S,S,D)
    B, S, _, D = inter.shape
    inter = inter @ params["w_inter"] + params["b_inter"][0]
    inter = inter.reshape(B, S * S, D)
    cross_dim = inter @ params["w_cross_dim"] + params["b_cross_dim"][0]
    cross_ch = (jnp.einsum('nm,bmd->bnd', params["w_cross_ch"], inter)
                + params["b_cross_ch"][None, :, :])
    latent = cross_dim + cross_ch
    key = latent @ params["w_k"] + params["b_k"][0]

    def attend(x, wq, bq):
        q = x @ wq + bq[0]
        scores = jnp.einsum('bqe,bke->bqk', q, key) / math.sqrt(key.shape[-1])
        attn = jax.nn.softmax(scores, axis=-1)
        return x + jnp.einsum('bqk,bkd->bqd', attn, latent)

    return (attend(videos, params["w_qv"], params["b_qv"]),
            attend(sentences, params["w_qs"], params["b_qs"]))


if __name__ == "__main__":
    B, Lv, Ls, D, S = 8, 8, 8, 32, 4   # joint_dim=32, num_sets=4
    key = jax.random.PRNGKey(0)
    k1, k2, kp = jax.random.split(key, 3)
    videos = jax.random.normal(k1, (B, Lv, D), dtype=jnp.float32)
    sentences = jax.random.normal(k2, (B, Ls, D), dtype=jnp.float32)

    # mask == True means padding (large negative added before softmax).
    v_lens = jnp.array([8, 6, 7, 8, 5, 8, 4, 8])
    s_lens = jnp.array([8, 8, 5, 7, 8, 6, 8, 3])
    videos_mask = jnp.arange(Lv)[None, :] >= v_lens[:, None]
    sentences_mask = jnp.arange(Ls)[None, :] >= s_lens[:, None]

    params = init_params(kp, D, S)

    # f32 path (default): bitwise-comparable to the pure-JAX reference.
    out_v, out_s = mli_forward(videos, videos_mask, sentences, sentences_mask, params)
    jax.block_until_ready((out_v, out_s))

    ref_v, ref_s = mli_reference(videos, videos_mask, sentences, sentences_mask, params)
    assert out_v.shape == (B, Lv, D) and out_s.shape == (B, Ls, D)
    assert jnp.allclose(out_v, ref_v, atol=1e-3, rtol=1e-3), \
        float(jnp.max(jnp.abs(out_v - ref_v)))
    assert jnp.allclose(out_s, ref_s, atol=1e-3, rtol=1e-3), \
        float(jnp.max(jnp.abs(out_s - ref_s)))

    # bf16 MXU-operand path (recommended on v6e/v7x): f32 accumulation,
    # f32 softmax; just verify it runs and stays close/finite.
    out_v_bf, out_s_bf = mli_forward(videos, videos_mask, sentences, sentences_mask,
                                     params, compute_dtype=jnp.bfloat16)
    jax.block_until_ready((out_v_bf, out_s_bf))
    assert bool(jnp.isfinite(out_v_bf).all()) and bool(jnp.isfinite(out_s_bf).all())
    assert float(jnp.max(jnp.abs(out_v_bf - ref_v))) < 0.25
    assert float(jnp.max(jnp.abs(out_s_bf - ref_s))) < 0.25

    print("KERNEL_OK")
</pallas_src>

<mosaic_0001>
module attributes {stable_mosaic.version = 11 : i64} {
  func.func @_mli_kernel(%arg0: i32, %arg1: memref<4x8x32xf32, #tpu.memory_space<vmem>>, %arg2: memref<4x8x1xf32, #tpu.memory_space<vmem>>, %arg3: memref<4x8x32xf32, #tpu.memory_space<vmem>>, %arg4: memref<4x8x1xf32, #tpu.memory_space<vmem>>, %arg5: memref<32x456xf32, #tpu.memory_space<vmem>>, %arg6: memref<1x424xf32, #tpu.memory_space<vmem>>, %arg7: memref<16x16xf32, #tpu.memory_space<vmem>>, %arg8: memref<16x32xf32, #tpu.memory_space<vmem>>, %arg9: memref<4x8x32xf32, #tpu.memory_space<vmem>>, %arg10: memref<4x8x32xf32, #tpu.memory_space<vmem>>) attributes {dimension_semantics = [#tpu.dimension_semantics<parallel>], iteration_bounds = array<i64: 2>, scalar_prefetch = 0 : i64, scratch_operands = 0 : i64, tpu.core_type = #tpu.core_type<tc>, window_params = [{transform_indices = @transform_0, window_bounds = array<i64: 4, 8, 32>}, {transform_indices = @transform_1, window_bounds = array<i64: 4, 8, 1>}, {transform_indices = @transform_2, window_bounds = array<i64: 4, 8, 32>}, {transform_indices = @transform_3, window_bounds = array<i64: 4, 8, 1>}, {pipeline_mode = #tpu.pipeline_mode<synchronous>, transform_indices = @transform_4, window_bounds = array<i64: 32, 456>}, {pipeline_mode = #tpu.pipeline_mode<synchronous>, transform_indices = @transform_5, window_bounds = array<i64: 1, 424>}, {pipeline_mode = #tpu.pipeline_mode<synchronous>, transform_indices = @transform_6, window_bounds = array<i64: 16, 16>}, {pipeline_mode = #tpu.pipeline_mode<synchronous>, transform_indices = @transform_7, window_bounds = array<i64: 16, 32>}, {transform_indices = @transform_8, window_bounds = array<i64: 4, 8, 32>}, {transform_indices = @transform_9, window_bounds = array<i64: 4, 8, 32>}]} {
    %c0 = arith.constant 0 : index
    %c0_0 = arith.constant 0 : index
    %c0_1 = arith.constant 0 : index
    %0 = vector.load %arg1[%c0, %c0_0, %c0_1] : memref<4x8x32xf32, #tpu.memory_space<vmem>>, vector<4x8x32xf32>
    %c0_2 = arith.constant 0 : index
    %c0_3 = arith.constant 0 : index
    %c0_4 = arith.constant 0 : index
    %1 = vector.load %arg3[%c0_2, %c0_3, %c0_4] : memref<4x8x32xf32, #tpu.memory_space<vmem>>, vector<4x8x32xf32>
    %2 = vector.shape_cast %0 : vector<4x8x32xf32> to vector<32x32xf32>
    %3 = vector.shape_cast %1 : vector<4x8x32xf32> to vector<32x32xf32>
    %c0_5 = arith.constant 0 : index
    %c0_6 = arith.constant 0 : index
    %c0_7 = arith.constant 0 : index
    %4 = vector.load %arg2[%c0_5, %c0_6, %c0_7] : memref<4x8x1xf32, #tpu.memory_space<vmem>>, vector<4x8x1xf32>
    %c0_8 = arith.constant 0 : index
    %c448 = arith.constant 448 : index
    %5 = vector.load %arg5[%c0_8, %c448] : memref<32x456xf32, #tpu.memory_space<vmem>>, vector<32x4xf32>
    %cst = arith.constant dense<0.000000e+00> : vector<32x4xf32>
    %6 = tpu.matmul %2, %5, %cst {dimension_numbers = #tpu.dot_dimension_numbers<[1], [0], [0], [1], [0, 0, 1, 1], [], []>} : vector<32x32xf32>, vector<32x4xf32>, vector<32x4xf32> -> vector<32x4xf32>
    %c0_9 = arith.constant 0 : index
    %c416 = arith.constant 416 : index
    %7 = vector.load %arg6[%c0_9, %c416] : memref<1x424xf32, #tpu.memory_space<vmem>>, vector<1x4xf32>
    %8 = vector.broadcast %7 : vector<1x4xf32> to vector<32x4xf32>
    %9 = arith.addf %6, %8 : vector<32x4xf32>
    %10 = vector.shape_cast %9 : vector<32x4xf32> to vector<4x8x4xf32>
    %11 = vector.broadcast %4 : vector<4x8x1xf32> to vector<4x8x4xf32>
    %12 = arith.addf %10, %11 : vector<4x8x4xf32>
    %cst_10 = arith.constant dense<0xFF800000> : vector<4x4xf32>
    %13 = vector.multi_reduction <maximumf>, %12, %cst_10 [1] : vector<4x8x4xf32> to vector<4x4xf32>
    %14 = vector.shape_cast %13 : vector<4x4xf32> to vector<4x1x4xf32>
    %15 = vector.broadcast %14 : vector<4x1x4xf32> to vector<4x8x4xf32>
    %16 = arith.subf %12, %15 : vector<4x8x4xf32>
    %17 = math.exp %16 : vector<4x8x4xf32>
    %cst_11 = arith.constant dense<0.000000e+00> : vector<4x4xf32>
    %18 = vector.multi_reduction <add>, %17, %cst_11 [1] : vector<4x8x4xf32> to vector<4x4xf32>
    %19 = vector.shape_cast %18 : vector<4x4xf32> to vector<4x1x4xf32>
    %20 = vector.broadcast %19 : vector<4x1x4xf32> to vector<4x8x4xf32>
    %21 = arith.divf %17, %20 : vector<4x8x4xf32>
    %22 = tpu.transpose %21, [0, 2, 1] : vector<4x8x4xf32> -> vector<4x4x8xf32>
    "tpu.trace_start"() <{level = 10 : i32, message = "bsl,bld->bsd"}> : () -> ()
    %cst_12 = arith.constant dense<0.000000e+00> : vector<4x4x32xf32>
    %23 = tpu.matmul %22, %0, %cst_12 {dimension_numbers = #tpu.dot_dimension_numbers<[2], [1], [1], [2], [0, 0, 0, 1, 1, 2], [0], [0]>} : vector<4x4x8xf32>, vector<4x8x32xf32>, vector<4x4x32xf32> -> vector<4x4x32xf32>
    "tpu.trace_stop"() : () -> ()
    %c0_13 = arith.constant 0 : index
    %c0_14 = arith.constant 0 : index
    %c0_15 = arith.constant 0 : index
    %24 = vector.load %arg4[%c0_13, %c0_14, %c0_15] : memref<4x8x1xf32, #tpu.memory_space<vmem>>, vector<4x8x1xf32>
    %c0_16 = arith.constant 0 : index
    %c452 = arith.constant 452 : index
    %25 = vector.load %arg5[%c0_16, %c452] : memref<32x456xf32, #tpu.memory_space<vmem>>, vector<32x4xf32>
    %cst_17 = arith.constant dense<0.000000e+00> : vector<32x4xf32>
    %26 = tpu.matmul %3, %25, %cst_17 {dimension_numbers = #tpu.dot_dimension_numbers<[1], [0], [0], [1], [0, 0, 1, 1], [], []>} : vector<32x32xf32>, vector<32x4xf32>, vector<32x4xf32> -> vector<32x4xf32>
    %c0_18 = arith.constant 0 : index
    %c420 = arith.constant 420 : index
    %27 = vector.load %arg6[%c0_18, %c420] : memref<1x424xf32, #tpu.memory_space<vmem>>, vector<1x4xf32>
    %28 = vector.broadcast %27 : vector<1x4xf32> to vector<32x4xf32>
    %29 = arith.addf %26, %28 : vector<32x4xf32>
    %30 = vector.shape_cast %29 : vector<32x4xf32> to vector<4x8x4xf32>
    %31 = vector.broadcast %24 : vector<4x8x1xf32> to vector<4x8x4xf32>
    %32 = arith.addf %30, %31 : vector<4x8x4xf32>
    %cst_19 = arith.constant dense<0xFF800000> : vector<4x4xf32>
    %33 = vector.multi_reduction <maximumf>, %32, %cst_19 [1] : vector<4x8x4xf32> to vector<4x4xf32>
    %34 = vector.shape_cast %33 : vector<4x4xf32> to vector<4x1x4xf32>
    %35 = vector.broadcast %34 : vector<4x1x4xf32> to vector<4x8x4xf32>
    %36 = arith.subf %32, %35 : vector<4x8x4xf32>
    %37 = math.exp %36 : vector<4x8x4xf32>
    %cst_20 = arith.constant dense<0.000000e+00> : vector<4x4xf32>
    %38 = vector.multi_reduction <add>, %37, %cst_20 [1] : vector<4x8x4xf32> to vector<4x4xf32>
    %39 = vector.shape_cast %38 : vector<4x4xf32> to vector<4x1x4xf32>
    %40 = vector.broadcast %39 : vector<4x1x4xf32> to vector<4x8x4xf32>
    %41 = arith.divf %37, %40 : vector<4x8x4xf32>
    %42 = tpu.transpose %41, [0, 2, 1] : vector<4x8x4xf32> -> vector<4x4x8xf32>
    "tpu.trace_start"() <{level = 10 : i32, message = "bsl,bld->bsd"}> : () -> ()
    %cst_21 = arith.constant dense<0.000000e+00> : vector<4x4x32xf32>
    %43 = tpu.matmul %42, %1, %cst_21 {dimension_numbers = #tpu.dot_dimension_numbers<[2], [1], [1], [2], [0, 0, 0, 1, 1, 2], [0], [0]>} : vector<4x4x8xf32>, vector<4x8x32xf32>, vector<4x4x32xf32> -> vector<4x4x32xf32>
    "tpu.trace_stop"() : () -> ()
    %44 = vector.extract_strided_slice %23 {offsets = [0, 0, 0], sizes = [4, 1, 32], strides = [1, 1, 1]} : vector<4x4x32xf32> to vector<4x1x32xf32>
    %45 = vector.broadcast %44 : vector<4x1x32xf32> to vector<4x4x32xf32>
    %46 = arith.mulf %45, %43 : vector<4x4x32xf32>
    %47 = vector.extract_strided_slice %23 {offsets = [0, 1, 0], sizes = [4, 1, 32], strides = [1, 1, 1]} : vector<4x4x32xf32> to vector<4x1x32xf32>
    %48 = vector.broadcast %47 : vector<4x1x32xf32> to vector<4x4x32xf32>
    %49 = arith.mulf %48, %43 : vector<4x4x32xf32>
    %50 = vector.extract_strided_slice %23 {offsets = [0, 2, 0], sizes = [4, 1, 32], strides = [1, 1, 1]} : vector<4x4x32xf32> to vector<4x1x32xf32>
    %51 = vector.broadcast %50 : vector<4x1x32xf32> to vector<4x4x32xf32>
    %52 = arith.mulf %51, %43 : vector<4x4x32xf32>
    %53 = vector.extract_strided_slice %23 {offsets = [0, 3, 0], sizes = [4, 1, 32], strides = [1, 1, 1]} : vector<4x4x32xf32> to vector<4x1x32xf32>
    %54 = vector.broadcast %53 : vector<4x1x32xf32> to vector<4x4x32xf32>
    %55 = arith.mulf %54, %43 : vector<4x4x32xf32>
    %56 = tpu.concatenate %46, %49, %52, %55 in 1 : vector<4x4x32xf32>, vector<4x4x32xf32>, vector<4x4x32xf32>, vector<4x4x32xf32> -> vector<4x16x32xf32>
    %57 = vector.shape_cast %56 : vector<4x16x32xf32> to vector<64x32xf32>
    %c0_22 = arith.constant 0 : index
    %c384 = arith.constant 384 : index
    %58 = vector.load %arg5[%c0_22, %c384] : memref<32x456xf32, #tpu.memory_space<vmem>>, vector<32x32xf32>
    %cst_23 = arith.constant dense<0.000000e+00> : vector<64x32xf32>
    %59 = tpu.matmul %57, %58, %cst_23 {dimension_numbers = #tpu.dot_dimension_numbers<[1], [0], [0], [1], [0, 0, 1, 1], [], []>} : vector<64x32xf32>, vector<32x32xf32>, vector<64x32xf32> -> vector<64x32xf32>
    %c0_24 = arith.constant 0 : index
    %c384_25 = arith.constant 384 : index
    %60 = vector.load %arg6[%c0_24, %c384_25] : memref<1x424xf32, #tpu.memory_space<vmem>>, vector<1x32xf32>
    %61 = vector.broadcast %60 : vector<1x32xf32> to vector<64x32xf32>
    %62 = arith.addf %59, %61 : vector<64x32xf32>
    %c0_26 = arith.constant 0 : index
    %c416_27 = arith.constant 416 : index
    %63 = vector.load %arg5[%c0_26, %c416_27] : memref<32x456xf32, #tpu.memory_space<vmem>>, vector<32x32xf32>
    %cst_28 = arith.constant dense<0.000000e+00> : vector<64x32xf32>
    %64 = tpu.matmul %62, %63, %cst_28 {dimension_numbers = #tpu.dot_dimension_numbers<[1], [0], [0], [1], [0, 0, 1, 1], [], []>} : vector<64x32xf32>, vector<32x32xf32>, vector<64x32xf32> -> vector<64x32xf32>
    %c0_29 = arith.constant 0 : index
    %c0_30 = arith.constant 0 : index
    %65 = vector.load %arg7[%c0_29, %c0_30] : memref<16x16xf32, #tpu.memory_space<vmem>>, vector<16x16xf32>
    %66 = vector.shape_cast %65 : vector<16x16xf32> to vector<1x16x16xf32>
    %67 = vector.shape_cast %66 : vector<1x16x16xf32> to vector<1x16x16xf32>
    %68 = vector.broadcast %67 : vector<1x16x16xf32> to vector<4x16x16xf32>
    %69 = vector.shape_cast %62 : vector<64x32xf32> to vector<4x16x32xf32>
    "tpu.trace_start"() <{level = 10 : i32, message = "bnm,bmd->bnd"}> : () -> ()
    %cst_31 = arith.constant dense<0.000000e+00> : vector<4x16x32xf32>
    %70 = tpu.matmul %68, %69, %cst_31 {dimension_numbers = #tpu.dot_dimension_numbers<[2], [1], [1], [2], [0, 0, 0, 1, 1, 2], [0], [0]>} : vector<4x16x16xf32>, vector<4x16x32xf32>, vector<4x16x32xf32> -> vector<4x16x32xf32>
    "tpu.trace_stop"() : () -> ()
    %71 = vector.shape_cast %64 : vector<64x32xf32> to vector<4x16x32xf32>
    %72 = arith.addf %71, %70 : vector<4x16x32xf32>
    %c0_32 = arith.constant 0 : index
    %c0_33 = arith.constant 0 : index
    %73 = vector.load %arg8[%c0_32, %c0_33] : memref<16x32xf32, #tpu.memory_space<vmem>>, vector<16x32xf32>
    %74 = vector.shape_cast %73 : vector<16x32xf32> to vector<1x16x32xf32>
    %75 = vector.broadcast %74 : vector<1x16x32xf32> to vector<4x16x32xf32>
    %76 = arith.addf %72, %75 : vector<4x16x32xf32>
    %77 = vector.shape_cast %76 : vector<4x16x32xf32> to vector<64x32xf32>
    %c0_34 = arith.constant 0 : index
    %c256 = arith.constant 256 : index
    %78 = vector.load %arg5[%c0_34, %c256] : memref<32x456xf32, #tpu.memory_space<vmem>>, vector<32x128xf32>
    %cst_35 = arith.constant dense<0.000000e+00> : vector<64x128xf32>
    %79 = tpu.matmul %77, %78, %cst_35 {dimension_numbers = #tpu.dot_dimension_numbers<[1], [0], [0], [1], [0, 0, 1, 1], [], []>} : vector<64x32xf32>, vector<32x128xf32>, vector<64x128xf32> -> vector<64x128xf32>
    %c0_36 = arith.constant 0 : index
    %c256_37 = arith.constant 256 : index
    %80 = vector.load %arg6[%c0_36, %c256_37] : memref<1x424xf32, #tpu.memory_space<vmem>>, vector<1x128xf32>
    %81 = vector.broadcast %80 : vector<1x128xf32> to vector<64x128xf32>
    %82 = arith.addf %79, %81 : vector<64x128xf32>
    %83 = vector.shape_cast %82 : vector<64x128xf32> to vector<4x16x128xf32>
    %c0_38 = arith.constant 0 : index
    %c0_39 = arith.constant 0 : index
    %84 = vector.load %arg5[%c0_38, %c0_39] : memref<32x456xf32, #tpu.memory_space<vmem>>, vector<32x128xf32>
    %cst_40 = arith.constant dense<0.000000e+00> : vector<32x128xf32>
    %85 = tpu.matmul %2, %84, %cst_40 {dimension_numbers = #tpu.dot_dimension_numbers<[1], [0], [0], [1], [0, 0, 1, 1], [], []>} : vector<32x32xf32>, vector<32x128xf32>, vector<32x128xf32> -> vector<32x128xf32>
    %c0_41 = arith.constant 0 : index
    %c0_42 = arith.constant 0 : index
    %86 = vector.load %arg6[%c0_41, %c0_42] : memref<1x424xf32, #tpu.memory_space<vmem>>, vector<1x128xf32>
    %87 = vector.broadcast %86 : vector<1x128xf32> to vector<32x128xf32>
    %88 = arith.addf %85, %87 : vector<32x128xf32>
    %89 = vector.shape_cast %88 : vector<32x128xf32> to vector<4x8x128xf32>
    "tpu.trace_start"() <{level = 10 : i32, message = "ble,bne->bln"}> : () -> ()
    %cst_43 = arith.constant dense<0.000000e+00> : vector<4x8x16xf32>
    %90 = tpu.matmul %89, %83, %cst_43 {dimension_numbers = #tpu.dot_dimension_numbers<[2], [2], [1], [1], [0, 0, 0, 1, 1, 1], [0], [0]>} : vector<4x8x128xf32>, vector<4x16x128xf32>, vector<4x8x16xf32> -> vector<4x8x16xf32>
    "tpu.trace_stop"() : () -> ()
    %cst_44 = arith.constant dense<0xFF800000> : vector<4x8xf32>
    %91 = vector.multi_reduction <maximumf>, %90, %cst_44 [2] : vector<4x8x16xf32> to vector<4x8xf32>
    %92 = vector.shape_cast %91 : vector<4x8xf32> to vector<4x8x1xf32>
    %93 = vector.broadcast %92 : vector<4x8x1xf32> to vector<4x8x16xf32>
    %94 = arith.subf %90, %93 : vector<4x8x16xf32>
    %95 = math.exp %94 : vector<4x8x16xf32>
    %cst_45 = arith.constant dense<0.000000e+00> : vector<4x8xf32>
    %96 = vector.multi_reduction <add>, %95, %cst_45 [2] : vector<4x8x16xf32> to vector<4x8xf32>
    %97 = vector.shape_cast %96 : vector<4x8xf32> to vector<4x8x1xf32>
    %98 = vector.broadcast %97 : vector<4x8x1xf32> to vector<4x8x16xf32>
    %99 = arith.divf %95, %98 : vector<4x8x16xf32>
    "tpu.trace_start"() <{level = 10 : i32, message = "bln,bnd->bld"}> : () -> ()
    %cst_46 = arith.constant dense<0.000000e+00> : vector<4x8x32xf32>
    %100 = tpu.matmul %99, %76, %cst_46 {dimension_numbers = #tpu.dot_dimension_numbers<[2], [1], [1], [2], [0, 0, 0, 1, 1, 2], [0], [0]>} : vector<4x8x16xf32>, vector<4x16x32xf32>, vector<4x8x32xf32> -> vector<4x8x32xf32>
    "tpu.trace_stop"() : () -> ()
    %101 = arith.addf %0, %100 : vector<4x8x32xf32>
    %c0_47 = arith.constant 0 : index
    %c0_48 = arith.constant 0 : index
    %c0_49 = arith.constant 0 : index
    %102 = vector.load %arg9[%c0_47, %c0_48, %c0_49] : memref<4x8x32xf32, #tpu.memory_space<vmem>>, vector<4x8x32xf32>
    tpu.vector_store %arg9[%c0_47, %c0_48, %c0_49], %101 {strides = array<i32>} : memref<4x8x32xf32, #tpu.memory_space<vmem>>, vector<4x8x32xf32>,
    %c0_50 = arith.constant 0 : index
    %c128 = arith.constant 128 : index
    %103 = vector.load %arg5[%c0_50, %c128] : memref<32x456xf32, #tpu.memory_space<vmem>>, vector<32x128xf32>
    %cst_51 = arith.constant dense<0.000000e+00> : vector<32x128xf32>
    %104 = tpu.matmul %3, %103, %cst_51 {dimension_numbers = #tpu.dot_dimension_numbers<[1], [0], [0], [1], [0, 0, 1, 1], [], []>} : vector<32x32xf32>, vector<32x128xf32>, vector<32x128xf32> -> vector<32x128xf32>
    %c0_52 = arith.constant 0 : index
    %c128_53 = arith.constant 128 : index
    %105 = vector.load %arg6[%c0_52, %c128_53] : memref<1x424xf32, #tpu.memory_space<vmem>>, vector<1x128xf32>
    %106 = vector.broadcast %105 : vector<1x128xf32> to vector<32x128xf32>
    %107 = arith.addf %104, %106 : vector<32x128xf32>
    %108 = vector.shape_cast %107 : vector<32x128xf32> to vector<4x8x128xf32>
    "tpu.trace_start"() <{level = 10 : i32, message = "ble,bne->bln"}> : () -> ()
    %cst_54 = arith.constant dense<0.000000e+00> : vector<4x8x16xf32>
    %109 = tpu.matmul %108, %83, %cst_54 {dimension_numbers = #tpu.dot_dimension_numbers<[2], [2], [1], [1], [0, 0, 0, 1, 1, 1], [0], [0]>} : vector<4x8x128xf32>, vector<4x16x128xf32>, vector<4x8x16xf32> -> vector<4x8x16xf32>
    "tpu.trace_stop"() : () -> ()
    %cst_55 = arith.constant dense<0xFF800000> : vector<4x8xf32>
    %110 = vector.multi_reduction <maximumf>, %109, %cst_55 [2] : vector<4x8x16xf32> to vector<4x8xf32>
    %111 = vector.shape_cast %110 : vector<4x8xf32> to vector<4x8x1xf32>
    %112 = vector.broadcast %111 : vector<4x8x1xf32> to vector<4x8x16xf32>
    %113 = arith.subf %109, %112 : vector<4x8x16xf32>
    %114 = math.exp %113 : vector<4x8x16xf32>
    %cst_56 = arith.constant dense<0.000000e+00> : vector<4x8xf32>
    %115 = vector.multi_reduction <add>, %114, %cst_56 [2] : vector<4x8x16xf32> to vector<4x8xf32>
    %116 = vector.shape_cast %115 : vector<4x8xf32> to vector<4x8x1xf32>
    %117 = vector.broadcast %116 : vector<4x8x1xf32> to vector<4x8x16xf32>
    %118 = arith.divf %114, %117 : vector<4x8x16xf32>
    "tpu.trace_start"() <{level = 10 : i32, message = "bln,bnd->bld"}> : () -> ()
    %cst_57 = arith.constant dense<0.000000e+00> : vector<4x8x32xf32>
    %119 = tpu.matmul %118, %76, %cst_57 {dimension_numbers = #tpu.dot_dimension_numbers<[2], [1], [1], [2], [0, 0, 0, 1, 1, 2], [0], [0]>} : vector<4x8x16xf32>, vector<4x16x32xf32>, vector<4x8x32xf32> -> vector<4x8x32xf32>
    "tpu.trace_stop"() : () -> ()
    %120 = arith.addf %1, %119 : vector<4x8x32xf32>
    %c0_58 = arith.constant 0 : index
    %c0_59 = arith.constant 0 : index
    %c0_60 = arith.constant 0 : index
    %121 = vector.load %arg10[%c0_58, %c0_59, %c0_60] : memref<4x8x32xf32, #tpu.memory_space<vmem>>, vector<4x8x32xf32>
    tpu.vector_store %arg10[%c0_58, %c0_59, %c0_60], %120 {strides = array<i32>} : memref<4x8x32xf32, #tpu.memory_space<vmem>>, vector<4x8x32xf32>,
    return
  }
  func.func @transform_0(%arg0: i32) -> (i32, i32, i32) {
    %c0_i32 = arith.constant 0 : i32
    %c0_i32_0 = arith.constant 0 : i32
    %c0_i32_1 = arith.constant 0 : i32
    return %arg0, %c0_i32, %c0_i32_0 : i32, i32, i32
  }
  func.func @transform_1(%arg0: i32) -> (i32, i32, i32) {
    %c0_i32 = arith.constant 0 : i32
    %c0_i32_0 = arith.constant 0 : i32
    %c0_i32_1 = arith.constant 0 : i32
    return %arg0, %c0_i32, %c0_i32_0 : i32, i32, i32
  }
  func.func @transform_2(%arg0: i32) -> (i32, i32, i32) {
    %c0_i32 = arith.constant 0 : i32
    %c0_i32_0 = arith.constant 0 : i32
    %c0_i32_1 = arith.constant 0 : i32
    return %arg0, %c0_i32, %c0_i32_0 : i32, i32, i32
  }
  func.func @transform_3(%arg0: i32) -> (i32, i32, i32) {
    %c0_i32 = arith.constant 0 : i32
    %c0_i32_0 = arith.constant 0 : i32
    %c0_i32_1 = arith.constant 0 : i32
    return %arg0, %c0_i32, %c0_i32_0 : i32, i32, i32
  }
  func.func @transform_4(%arg0: i32) -> (i32, i32) {
    %c0_i32 = arith.constant 0 : i32
    %c0_i32_0 = arith.constant 0 : i32
    %c0_i32_1 = arith.constant 0 : i32
    return %c0_i32, %c0_i32_0 : i32, i32
  }
  func.func @transform_5(%arg0: i32) -> (i32, i32) {
    %c0_i32 = arith.constant 0 : i32
    %c0_i32_0 = arith.constant 0 : i32
    %c0_i32_1 = arith.constant 0 : i32
    return %c0_i32, %c0_i32_0 : i32, i32
  }
  func.func @transform_6(%arg0: i32) -> (i32, i32) {
    %c0_i32 = arith.constant 0 : i32
    %c0_i32_0 = arith.constant 0 : i32
    %c0_i32_1 = arith.constant 0 : i32
    return %c0_i32, %c0_i32_0 : i32, i32
  }
  func.func @transform_7(%arg0: i32) -> (i32, i32) {
    %c0_i32 = arith.constant 0 : i32
    %c0_i32_0 = arith.constant 0 : i32
    %c0_i32_1 = arith.constant 0 : i32
    return %c0_i32, %c0_i32_0 : i32, i32
  }
  func.func @transform_8(%arg0: i32) -> (i32, i32, i32) {
    %c0_i32 = arith.constant 0 : i32
    %c0_i32_0 = arith.constant 0 : i32
    %c0_i32_1 = arith.constant 0 : i32
    return %arg0, %c0_i32, %c0_i32_0 : i32, i32, i32
  }
  func.func @transform_9(%arg0: i32) -> (i32, i32, i32) {
    %c0_i32 = arith.constant 0 : i32
    %c0_i32_0 = arith.constant 0 : i32
    %c0_i32_1 = arith.constant 0 : i32
    return %arg0, %c0_i32, %c0_i32_0 : i32, i32, i32
  }
}

</mosaic_0001>

<llo_original>
// kernel: tpu_custom_call.1
$region0: #{tpu_custom_call.1}
  #allocation0 [shape = 'u32[]', space=smem, size = 0x4, offset = 0x4, fixed_abs, tag = 'smem constant byte address 0x4 - core index']
  #allocation1 [shape = 'u32[144,128]{1,0:T(1,128)}', space=vmem, size = 0x12000, scoped, tag = 'internal scratch']
  %s0 = inlined_call_operand.hbm [shape: f32[8,8,32], index: 0, kind: input, shape index: {}]
  %s1 = inlined_call_operand.vmem [shape: f32[8,8,1], index: 1, kind: input, shape index: {}]
  %s2 = inlined_call_operand.hbm [shape: f32[8,8,32], index: 2, kind: input, shape index: {}]
  %s3 = inlined_call_operand.vmem [shape: f32[8,8,1], index: 3, kind: input, shape index: {}]
  %s4 = inlined_call_operand.vmem [shape: f32[32,456], index: 4, kind: input, shape index: {}]
  %s5 = inlined_call_operand.vmem [shape: f32[1,424], index: 5, kind: input, shape index: {}]
  %s6 = inlined_call_operand.vmem [shape: f32[16,16], index: 6, kind: input, shape index: {}]
  %s7 = inlined_call_operand.hbm [shape: f32[16,32], index: 7, kind: input, shape index: {}]
  %s8 = inlined_call_operand.hbm [shape: f32[8,8,32], index: 8, kind: output, shape index: {0}]
  %s9 = inlined_call_operand.hbm [shape: f32[8,8,32], index: 9, kind: output, shape index: {1}]
  %10 = xla_tuple %s8, %s9
  %s11 = sld [smem:[#allocation0]]
  $region85: #{tpu_custom_call.1} parent=0
    _
  %s13 = ssub.s32 1, %s11
  %s14 = scalar_select 0, %s13, %s11
  $region1: #{tpu_custom_call.1} parent=0
    #allocation2 [shape = 'u8[32768]{0}', space=vmem, size = 0x8000, scoped, tag = 'input window, operand 0']
    #allocation3 [shape = 's32[2]{0}', space=sflag, size = 0x8, scoped, tag = 'scoped memory for tpu_custom_call.1']
    #allocation4 [shape = 's32[2]{0}', space=sflag, size = 0x8, scoped, tag = 'scoped memory for tpu_custom_call.1']
    #allocation5 [shape = 'u8[32768]{0}', space=vmem, size = 0x8000, scoped, tag = 'input window, operand 2']
    #allocation6 [shape = 's32[2]{0}', space=sflag, size = 0x8, scoped, tag = 'scoped memory for tpu_custom_call.1']
    #allocation7 [shape = 'u8[8192]{0}', space=vmem, size = 0x2000, scoped, tag = 'input window, operand 7, single buffered']
    #allocation8 [shape = 'u8[32768]{0}', space=vmem, size = 0x8000, scoped, tag = 'output window, operand 0']
    #allocation9 [shape = 'u8[32768]{0}', space=vmem, size = 0x8000, scoped, tag = 'output window, operand 1']
    #allocation10 [shape = 's32[2]{0}', space=sflag, size = 0x8, scoped, tag = 'scoped memory for tpu_custom_call.1']
    %15 = vsyncpa [#allocation3], 0
    %s16 = scalar_lea.sflag [#allocation3], 1
    %17 = vsyncpa %s16, 0
    %18 = vsyncpa [#allocation6], 0
    %s19 = scalar_lea.sflag [#allocation6], 1
    %20 = vsyncpa %s19, 0
    %21 = vsyncpa [#allocation4], 0
    %s22 = scalar_lea.sflag [#allocation4], 1
    %23 = vsyncpa %s22, 0
    %24 = vsyncpa [#allocation10], 0
    %s25 = scalar_lea.sflag [#allocation10], 1
    %26 = vsyncpa %s25, 0
    loop: start=0, step=1, limit=4
    $region2: #{tpu_custom_call.1} parent=1 // loop_pre_header
      _
    $region3: #{tpu_custom_call.1} parent=1 // loop_header
      %s28 = sphi 0, %s32
      %p29 = scmp.ge.s32.totalorder %s28, 4
      %s38 = sphi 0, %s40
      %s41 = sphi 0, %s38
      %s42 = sphi 0, %s41
      %s58 = sphi 0, %s42
      %s64 = sphi 0, %s66
      %s67 = sphi 0, %s64
      %s68 = sphi 0, %s67
      %s84 = sphi 0, %s68
      %s90 = sphi 0, %s92
      %s93 = sphi 0, %s90
      %s94 = sphi 0, %s93
      %s110 = sphi 0, %s94
      %s116 = sphi 0, %s118
      %s119 = sphi 0, %s116
      %s120 = sphi 0, %s119
      %s136 = sphi 0, %s120
      %s140 = sphi 0, %s140
      %s142 = sphi 0, %s140
      %s143 = sphi 0, %s142
      %s157 = sphi 0, %s143
      %s161 = sphi 0, %s161
      %s163 = sphi 0, %s161
      %s164 = sphi 0, %s163
      %s178 = sphi 0, %s164
      %s182 = sphi 0, %s182
      %s184 = sphi 0, %s182
      %s185 = sphi 0, %s184
      %s199 = sphi 0, %s185
      %s203 = sphi 0, %s203
      %s205 = sphi 0, %s203
      %s206 = sphi 0, %s205
      %s220 = sphi 0, %s206
      %s226 = sphi 0, %s228
      %s229 = sphi 0, %s226
      %s230 = sphi 0, %s229
      %s246 = sphi 0, %s230
      %s252 = sphi 0, %s254
      %s255 = sphi 0, %s252
      %s256 = sphi 0, %s255
      %s272 = sphi 0, %s256
    $region4: #{tpu_custom_call.1} parent=1 // loop_header_branch
      %31 = sbr.rel (%p29) target = $region8
    $region5: #{tpu_custom_call.1} parent=1 // loop_body
      %s33 = ssub.s32 %s28, 1
      %s34 = ssub.s32 %s28, 2
      %s35 = sadd.s32 %s28, 1
      %s36 = ssub.s32 %s28, %s35
      %p37 = scmp.eq.s32.totalorder %s36, 0
      %s39 = sadd.s32 %s38, 1
      %s40 = scalar_select %p37, %s38, %s39
      %p43 = pneg %p37
      %p44 = scmp.eq.s32.totalorder %s28, 1
      %p45 = por %p43, %p44
      %p46 = scmp.ne.s32.totalorder %s38, %s41
      %p47 = scmp.eq.s32.totalorder %s28, 0
      %p48 = por %p46, %p47
      %p49 = scmp.ne.s32.totalorder %s38, %s41
      %p50 = scmp.eq.s32.totalorder %s33, 1
      %p51 = por %p49, %p50
      %p52 = scmp.ne.s32.totalorder %s41, %s42
      %p53 = scmp.eq.s32.totalorder %s33, 0
      %p54 = por %p52, %p53
      %p55 = scmp.ne.s32.totalorder %s41, %s42
      %p56 = scmp.eq.s32.totalorder %s34, 1
      %p57 = por %p55, %p56
      %p59 = scmp.ne.s32.totalorder %s42, %s58
      %p60 = scmp.eq.s32.totalorder %s34, 0
      %p61 = por %p59, %p60
      %s62 = ssub.s32 %s28, %s35
      %p63 = scmp.eq.s32.totalorder %s62, 0
      %s65 = sadd.s32 %s64, 1
      %s66 = scalar_select %p63, %s64, %s65
      %p69 = pneg %p63
      %p70 = scmp.eq.s32.totalorder %s28, 1
      %p71 = por %p69, %p70
      %p72 = scmp.ne.s32.totalorder %s64, %s67
      %p73 = scmp.eq.s32.totalorder %s28, 0
      %p74 = por %p72, %p73
      %p75 = scmp.ne.s32.totalorder %s64, %s67
      %p76 = scmp.eq.s32.totalorder %s33, 1
      %p77 = por %p75, %p76
      %p78 = scmp.ne.s32.totalorder %s67, %s68
      %p79 = scmp.eq.s32.totalorder %s33, 0
      %p80 = por %p78, %p79
      %p81 = scmp.ne.s32.totalorder %s67, %s68
      %p82 = scmp.eq.s32.totalorder %s34, 1
      %p83 = por %p81, %p82
      %p85 = scmp.ne.s32.totalorder %s68, %s84
      %p86 = scmp.eq.s32.totalorder %s34, 0
      %p87 = por %p85, %p86
      %s88 = ssub.s32 %s28, %s35
      %p89 = scmp.eq.s32.totalorder %s88, 0
      %s91 = sadd.s32 %s90, 1
      %s92 = scalar_select %p89, %s90, %s91
      %p95 = pneg %p89
      %p96 = scmp.eq.s32.totalorder %s28, 1
      %p97 = por %p95, %p96
      %p98 = scmp.ne.s32.totalorder %s90, %s93
      %p99 = scmp.eq.s32.totalorder %s28, 0
      %p100 = por %p98, %p99
      %p101 = scmp.ne.s32.totalorder %s90, %s93
      %p102 = scmp.eq.s32.totalorder %s33, 1
      %p103 = por %p101, %p102
      %p104 = scmp.ne.s32.totalorder %s93, %s94
      %p105 = scmp.eq.s32.totalorder %s33, 0
      %p106 = por %p104, %p105
      %p107 = scmp.ne.s32.totalorder %s93, %s94
      %p108 = scmp.eq.s32.totalorder %s34, 1
      %p109 = por %p107, %p108
      %p111 = scmp.ne.s32.totalorder %s94, %s110
      %p112 = scmp.eq.s32.totalorder %s34, 0
      %p113 = por %p111, %p112
      %s114 = ssub.s32 %s28, %s35
      %p115 = scmp.eq.s32.totalorder %s114, 0
      %s117 = sadd.s32 %s116, 1
      %s118 = scalar_select %p115, %s116, %s117
      %p121 = pneg %p115
      %p122 = scmp.eq.s32.totalorder %s28, 1
      %p123 = por %p121, %p122
      %p124 = scmp.ne.s32.totalorder %s116, %s119
      %p125 = scmp.eq.s32.totalorder %s28, 0
      %p126 = por %p124, %p125
      %p127 = scmp.ne.s32.totalorder %s116, %s119
      %p128 = scmp.eq.s32.totalorder %s33, 1
      %p129 = por %p127, %p128
      %p130 = scmp.ne.s32.totalorder %s119, %s120
      %p131 = scmp.eq.s32.totalorder %s33, 0
      %p132 = por %p130, %p131
      %p133 = scmp.ne.s32.totalorder %s119, %s120
      %p134 = scmp.eq.s32.totalorder %s34, 1
      %p135 = por %p133, %p134
      %p137 = scmp.ne.s32.totalorder %s120, %s136
      %p138 = scmp.eq.s32.totalorder %s34, 0
      %p139 = por %p137, %p138
      %s141 = sadd.s32 %s140, 1
      %p144 = scmp.eq.s32.totalorder %s28, 1
      %p145 = scmp.ne.s32.totalorder %s140, %s142
      %p146 = scmp.eq.s32.totalorder %s28, 0
      %p147 = por %p145, %p146
      %p148 = scmp.ne.s32.totalorder %s140, %s142
      %p149 = scmp.eq.s32.totalorder %s33, 1
      %p150 = por %p148, %p149
      %p151 = scmp.ne.s32.totalorder %s142, %s143
      %p152 = scmp.eq.s32.totalorder %s33, 0
      %p153 = por %p151, %p152
      %p154 = scmp.ne.s32.totalorder %s142, %s143
      %p155 = scmp.eq.s32.totalorder %s34, 1
      %p156 = por %p154, %p155
      %p158 = scmp.ne.s32.totalorder %s143, %s157
      %p159 = scmp.eq.s32.totalorder %s34, 0
      %p160 = por %p158, %p159
      %s162 = sadd.s32 %s161, 1
      %p165 = scmp.eq.s32.totalorder %s28, 1
      %p166 = scmp.ne.s32.totalorder %s161, %s163
      %p167 = scmp.eq.s32.totalorder %s28, 0
      %p168 = por %p166, %p167
      %p169 = scmp.ne.s32.totalorder %s161, %s163
      %p170 = scmp.eq.s32.totalorder %s33, 1
      %p171 = por %p169, %p170
      %p172 = scmp.ne.s32.totalorder %s163, %s164
      %p173 = scmp.eq.s32.totalorder %s33, 0
      %p174 = por %p172, %p173
      %p175 = scmp.ne.s32.totalorder %s163, %s164
      %p176 = scmp.eq.s32.totalorder %s34, 1
      %p177 = por %p175, %p176
      %p179 = scmp.ne.s32.totalorder %s164, %s178
      %p180 = scmp.eq.s32.totalorder %s34, 0
      %p181 = por %p179, %p180
      %s183 = sadd.s32 %s182, 1
      %p186 = scmp.eq.s32.totalorder %s28, 1
      %p187 = scmp.ne.s32.totalorder %s182, %s184
      %p188 = scmp.eq.s32.totalorder %s28, 0
      %p189 = por %p187, %p188
      %p190 = scmp.ne.s32.totalorder %s182, %s184
      %p191 = scmp.eq.s32.totalorder %s33, 1
      %p192 = por %p190, %p191
      %p193 = scmp.ne.s32.totalorder %s184, %s185
      %p194 = scmp.eq.s32.totalorder %s33, 0
      %p195 = por %p193, %p194
      %p196 = scmp.ne.s32.totalorder %s184, %s185
      %p197 = scmp.eq.s32.totalorder %s34, 1
      %p198 = por %p196, %p197
      %p200 = scmp.ne.s32.totalorder %s185, %s199
      %p201 = scmp.eq.s32.totalorder %s34, 0
      %p202 = por %p200, %p201
      %s204 = sadd.s32 %s203, 1
      %p207 = scmp.eq.s32.totalorder %s28, 1
      %p208 = scmp.ne.s32.totalorder %s203, %s205
      %p209 = scmp.eq.s32.totalorder %s28, 0
      %p210 = por %p208, %p209
      %p211 = scmp.ne.s32.totalorder %s203, %s205
      %p212 = scmp.eq.s32.totalorder %s33, 1
      %p213 = por %p211, %p212
      %p214 = scmp.ne.s32.totalorder %s205, %s206
      %p215 = scmp.eq.s32.totalorder %s33, 0
      %p216 = por %p214, %p215
      %p217 = scmp.ne.s32.totalorder %s205, %s206
      %p218 = scmp.eq.s32.totalorder %s34, 1
      %p219 = por %p217, %p218
      %p221 = scmp.ne.s32.totalorder %s206, %s220
      %p222 = scmp.eq.s32.totalorder %s34, 0
      %p223 = por %p221, %p222
      %s224 = ssub.s32 %s28, %s35
      %p225 = scmp.eq.s32.totalorder %s224, 0
      %s227 = sadd.s32 %s226, 1
      %s228 = scalar_select %p225, %s226, %s227
      %p231 = pneg %p225
      %p232 = scmp.eq.s32.totalorder %s28, 1
      %p233 = por %p231, %p232
      %p234 = scmp.ne.s32.totalorder %s226, %s229
      %p235 = scmp.eq.s32.totalorder %s28, 0
      %p236 = por %p234, %p235
      %p237 = scmp.ne.s32.totalorder %s226, %s229
      %p238 = scmp.eq.s32.totalorder %s33, 1
      %p239 = por %p237, %p238
      %p240 = scmp.ne.s32.totalorder %s229, %s230
      %p241 = scmp.eq.s32.totalorder %s33, 0
      %p242 = por %p240, %p241
      %p243 = scmp.ne.s32.totalorder %s229, %s230
      %p244 = scmp.eq.s32.totalorder %s34, 1
      %p245 = por %p243, %p244
      %p247 = scmp.ne.s32.totalorder %s230, %s246
      %p248 = scmp.eq.s32.totalorder %s34, 0
      %p249 = por %p247, %p248
      %s250 = ssub.s32 %s28, %s35
      %p251 = scmp.eq.s32.totalorder %s250, 0
      %s253 = sadd.s32 %s252, 1
      %s254 = scalar_select %p251, %s252, %s253
      %p257 = pneg %p251
      %p258 = scmp.eq.s32.totalorder %s28, 1
      %p259 = por %p257, %p258
      %p260 = scmp.ne.s32.totalorder %s252, %s255
      %p261 = scmp.eq.s32.totalorder %s28, 0
      %p262 = por %p260, %p261
      %p263 = scmp.ne.s32.totalorder %s252, %s255
      %p264 = scmp.eq.s32.totalorder %s33, 1
      %p265 = por %p263, %p264
      %p266 = scmp.ne.s32.totalorder %s255, %s256
      %p267 = scmp.eq.s32.totalorder %s33, 0
      %p268 = por %p266, %p267
      %p269 = scmp.ne.s32.totalorder %s255, %s256
      %p270 = scmp.eq.s32.totalorder %s34, 1
      %p271 = por %p269, %p270
      %p273 = scmp.ne.s32.totalorder %s256, %s272
      %p274 = scmp.eq.s32.totalorder %s34, 0
      %p275 = por %p273, %p274
      %p276 = scmp.le.s32.totalorder 1, %s28
      %p277 = scmp.lt.s32.totalorder %s28, 3
      %p278 = pnand %p276, %p277
      %p279 = pneg %p278
      // Predicated region
      $region9: #{tpu_custom_call.1} parent=5 // pred_check
        _
      $region10: #{tpu_custom_call.1} parent=5 // pred_check_branch
        %281 = sbr.rel (%p278) target = $region12
      $region11: #{tpu_custom_call.1} parent=5 // pred_region
        %s282 = ssub.s32 %s28, 1
        // Predicated region
        $region13: #{tpu_custom_call.1} parent=11 // pred_check
          %p283 = pneg %p153
        $region14: #{tpu_custom_call.1} parent=11 // pred_check_branch
          %285 = sbr.rel (%p283) target = $region16
        $region15: #{tpu_custom_call.1} parent=11 // pred_region
          _
        $region16: #{tpu_custom_call.1} parent=11 // pred_fallthru
          _
        // Predicated region
        $region17: #{tpu_custom_call.1} parent=11 // pred_check
          %p286 = pneg %p174
        $region18: #{tpu_custom_call.1} parent=11 // pred_check_branch
          %288 = sbr.rel (%p286) target = $region20
        $region19: #{tpu_custom_call.1} parent=11 // pred_region
          _
        $region20: #{tpu_custom_call.1} parent=11 // pred_fallthru
          _
        // Predicated region
        $region21: #{tpu_custom_call.1} parent=11 // pred_check
          %p289 = pneg %p195
        $region22: #{tpu_custom_call.1} parent=11 // pred_check_branch
          %291 = sbr.rel (%p289) target = $region24
        $region23: #{tpu_custom_call.1} parent=11 // pred_region
          _
        $region24: #{tpu_custom_call.1} parent=11 // pred_fallthru
          _
        // Predicated region
        $region25: #{tpu_custom_call.1} parent=11 // pred_check
          %p292 = pneg %p216
        $region26: #{tpu_custom_call.1} parent=11 // pred_check_branch
          %294 = sbr.rel (%p292) target = $region28
        $region27: #{tpu_custom_call.1} parent=11 // pred_region
          %s296 = ssub.s32 256, 256
          %297 = vsyncadd [#allocation6], %s296
          %s298 = sshll.u32 [#allocation7], 4
          %s299 = int_to_ptr.vmem [resolvable:$true] %s298
          %304 = dma.hbm_to_vmem [thread:$0]  %s7, 256, %s299, [#allocation6], 128, 128, 8
        $region28: #{tpu_custom_call.1} parent=11 // pred_fallthru
          _
      $region12: #{tpu_custom_call.1} parent=5 // pred_fallthru
        _
      %p305 = scmp.lt.s32.totalorder %s28, 2
      // Predicated region
      $region29: #{tpu_custom_call.1} parent=5 // pred_check
        %p306 = pneg %p305
      $region30: #{tpu_custom_call.1} parent=5 // pred_check_branch
        %308 = sbr.rel (%p306) target = $region32
      $region31: #{tpu_custom_call.1} parent=5 // pred_region
        // Predicated region
        $region33: #{tpu_custom_call.1} parent=31 // pred_check
          %p309 = pneg %p48
        $region34: #{tpu_custom_call.1} parent=31 // pred_check_branch
          %311 = sbr.rel (%p309) target = $region36
        $region35: #{tpu_custom_call.1} parent=31 // pred_region
          %s312 = sand.u32 %s38, 1
          %s313 = scalar_lea.sflag [#allocation3], %s312
          %s314 = sand.u32 %s38, 1
          %s315 = smul.addr %s314, 32
          %s316 = scalar_lea.vmem [#allocation2], %s315
          %s317 = smul.u32 4, %s28
          %s319 = ssub.s32 512, 512
          %320 = vsyncadd %s313, %s319
          %s321 = smul.addr %s317, 128
          %s322 = scalar_lea.hbm %s0, %s321
          %s323 = sshll.u32 %s316, 4
          %s324 = int_to_ptr.vmem [resolvable:$true] %s323
          %329 = dma.hbm_to_vmem [thread:$0]  %s322, 512, %s324, %s313, 128, 128, 8
        $region36: #{tpu_custom_call.1} parent=31 // pred_fallthru
          _
        // Predicated region
        $region37: #{tpu_custom_call.1} parent=31 // pred_check
          %p330 = pneg %p74
        $region38: #{tpu_custom_call.1} parent=31 // pred_check_branch
          %332 = sbr.rel (%p330) target = $region40
        $region39: #{tpu_custom_call.1} parent=31 // pred_region
          %s333 = smul.u32 4, %s28
          %p334 = scmp.lt.s32.totalorder %s333, 7
          %s335 = scalar_select %p334, %s333, 7
          %s336 = smul.addr %s335, 8
          %s337 = scalar_lea.vmem %s1, %s336
          %s338 = smul.u32 4, %s28
        $region40: #{tpu_custom_call.1} parent=31 // pred_fallthru
          _
        // Predicated region
        $region41: #{tpu_custom_call.1} parent=31 // pred_check
          %p339 = pneg %p100
        $region42: #{tpu_custom_call.1} parent=31 // pred_check_branch
          %341 = sbr.rel (%p339) target = $region44
        $region43: #{tpu_custom_call.1} parent=31 // pred_region
          %s342 = sand.u32 %s28, 1
          %s343 = scalar_lea.sflag [#allocation6], %s342
          %s344 = sand.u32 %s90, 1
          %s345 = smul.addr %s344, 32
          %s346 = scalar_lea.vmem [#allocation5], %s345
          %s347 = smul.u32 4, %s28
          %s349 = ssub.s32 512, 512
          %350 = vsyncadd %s343, %s349
          %s351 = smul.addr %s347, 128
          %s352 = scalar_lea.hbm %s2, %s351
          %s353 = sshll.u32 %s346, 4
          %s354 = int_to_ptr.vmem [resolvable:$true] %s353
          %359 = dma.hbm_to_vmem [thread:$0]  %s352, 512, %s354, %s343, 128, 128, 8
        $region44: #{tpu_custom_call.1} parent=31 // pred_fallthru
          _
        // Predicated region
        $region45: #{tpu_custom_call.1} parent=31 // pred_check
          %p360 = pneg %p126
        $region46: #{tpu_custom_call.1} parent=31 // pred_check_branch
          %362 = sbr.rel (%p360) target = $region48
        $region47: #{tpu_custom_call.1} parent=31 // pred_region
          %s363 = smul.u32 4, %s28
          %p364 = scmp.lt.s32.totalorder %s363, 7
          %s365 = scalar_select %p364, %s363, 7
          %s366 = smul.addr %s365, 8
          %s367 = scalar_lea.vmem %s3, %s366
          %s368 = smul.u32 4, %s28
        $region48: #{tpu_custom_call.1} parent=31 // pred_fallthru
          _
      $region32: #{tpu_custom_call.1} parent=5 // pred_fallthru
        _
      %p369 = scmp.le.s32.totalorder 1, %s28
      %p370 = scmp.lt.s32.totalorder %s28, 3
      %p371 = pnand %p369, %p370
      %p372 = pneg %p371
      // Predicated region
      $region49: #{tpu_custom_call.1} parent=5 // pred_check
        _
      $region50: #{tpu_custom_call.1} parent=5 // pred_check_branch
        %374 = sbr.rel (%p371) target = $region52
      $region51: #{tpu_custom_call.1} parent=5 // pred_region
        %s375 = ssub.s32 %s28, 1
        %s376 = sand.u32 %s41, 1
        %s377 = scalar_lea.sflag [#allocation3], %s376
        %s378 = sand.u32 %s41, 1
        %s379 = smul.addr %s378, 32
        %s380 = scalar_lea.vmem [#allocation2], %s379
        // Predicated region
        $region53: #{tpu_custom_call.1} parent=51 // pred_check
          %p381 = pneg %p54
        $region54: #{tpu_custom_call.1} parent=51 // pred_check_branch
          %383 = sbr.rel (%p381) target = $region56
        $region55: #{tpu_custom_call.1} parent=51 // pred_region
          %384 = dma.done %s377, 512
        $region56: #{tpu_custom_call.1} parent=51 // pred_fallthru
          _
        %s385 = sand.u32 %s33, 1
        %s386 = scalar_lea.sflag [#allocation6], %s385
        %s387 = sand.u32 %s93, 1
        %s388 = smul.addr %s387, 32
        %s389 = scalar_lea.vmem [#allocation5], %s388
        // Predicated region
        $region57: #{tpu_custom_call.1} parent=51 // pred_check
          %p390 = pneg %p106
        $region58: #{tpu_custom_call.1} parent=51 // pred_check_branch
          %392 = sbr.rel (%p390) target = $region60
        $region59: #{tpu_custom_call.1} parent=51 // pred_region
          %393 = dma.done %s386, 512
        $region60: #{tpu_custom_call.1} parent=51 // pred_fallthru
          _
        // Predicated region
        $region61: #{tpu_custom_call.1} parent=51 // pred_check
          %p394 = pneg %p216
        $region62: #{tpu_custom_call.1} parent=51 // pred_check_branch
          %396 = sbr.rel (%p394) target = $region64
        $region63: #{tpu_custom_call.1} parent=51 // pred_region
          %397 = dma.done [#allocation6], 256
        $region64: #{tpu_custom_call.1} parent=51 // pred_fallthru
          _
        %s398 = sand.u32 %s41, 1
        %s399 = scalar_lea.sflag [#allocation3], %s398
        %s400 = sand.u32 %s41, 1
        %s401 = smul.addr %s400, 32
        %s402 = scalar_lea.vmem [#allocation2], %s401
        %p403 = pneg %p54
        %p404 = pneg %p51
        %s405 = smul.u32 4, %s33
        %p406 = scmp.lt.s32.totalorder %s405, 7
        %s407 = scalar_select %p406, %s405, 7
        %s408 = smul.addr %s407, 8
        %s409 = scalar_lea.vmem %s1, %s408
        %p410 = pneg %p80
        %p411 = pneg %p77
        %s412 = sand.u32 %s33, 1
        %s413 = scalar_lea.sflag [#allocation6], %s412
        %s414 = sand.u32 %s93, 1
        %s415 = smul.addr %s414, 32
        %s416 = scalar_lea.vmem [#allocation5], %s415
        %p417 = pneg %p106
        %p418 = pneg %p103
        %s419 = smul.u32 4, %s33
        %p420 = scmp.lt.s32.totalorder %s419, 7
        %s421 = scalar_select %p420, %s419, 7
        %s422 = smul.addr %s421, 8
        %s423 = scalar_lea.vmem %s3, %s422
        %p424 = pneg %p132
        %p425 = pneg %p129
        %p426 = pneg %p153
        %p427 = pneg %p150
        %p428 = pneg %p174
        %p429 = pneg %p171
        %p430 = pneg %p195
        %p431 = pneg %p192
        %p432 = pneg %p216
        %p433 = pneg %p213
        %p434 = pneg %p242
        %p435 = pneg %p239
        %s436 = sand.u32 %s229, 1
        %s437 = scalar_lea.sflag [#allocation4], %s436
        %s438 = sand.u32 %s229, 1
        %s439 = smul.addr %s438, 32
        %s440 = scalar_lea.vmem [#allocation8], %s439
        %p441 = pneg %p268
        %p442 = pneg %p265
        %s443 = sand.u32 %s255, 1
        %s444 = scalar_lea.sflag [#allocation10], %s443
        %s445 = sand.u32 %s255, 1
        %s446 = smul.addr %s445, 32
        %s447 = scalar_lea.vmem [#allocation9], %s446
        %s448 = smul.u32 4, %s33
        %s449 = smul.u32 4, %s33
        %p450 = scmp.lt.s32.totalorder %s449, 7
        %s451 = scalar_select %p450, %s449, 7
        %s452 = smul.addr %s451, 8
        %s453 = scalar_lea.vmem %s1, %s452
        %s454 = smul.u32 4, %s33
        %s455 = smul.u32 4, %s33
        %s456 = smul.u32 4, %s33
        %p457 = scmp.lt.s32.totalorder %s456, 7
        %s458 = scalar_select %p457, %s456, 7
        %s459 = smul.addr %s458, 8
        %s460 = scalar_lea.vmem %s3, %s459
        %s461 = smul.u32 4, %s33
        %s462 = smul.u32 4, %s33
        %s463 = smul.u32 4, %s33
        %v464 = vld [vmem:[%s380] sm:$0xff]
        %v465 = vld [vmem:[%s380 + $0x8] sm:$0xff]
        %v466 = vld [vmem:[%s380 + $0x10] sm:$0xff]
        %v467 = vld [vmem:[%s380 + $0x18] sm:$0xff]
        %v468 = vld [vmem:[%s389] sm:$0xff]
        %v469 = vld [vmem:[%s389 + $0x8] sm:$0xff]
        %v470 = vld [vmem:[%s389 + $0x10] sm:$0xff]
        %v471 = vld [vmem:[%s389 + $0x18] sm:$0xff]
        %v472 = vld [vmem:[%s453] sm:$0xff]
        %v473 = vld [vmem:[%s453 + $0x8] sm:$0xff]
        %v474 = vld [vmem:[%s453 + $0x10] sm:$0xff]
        %v475 = vld [vmem:[%s453 + $0x18] sm:$0xff]
        %v476 = vld [vmem:[%s4 + $0x18] sm:$0xff]
        %v477 = vld [vmem:[%s4 + $0x38] sm:$0xff]
        %v478 = vld [vmem:[%s4 + $0x58] sm:$0xff]
        %v479 = vld [vmem:[%s4 + $0x78] sm:$0xff]
        %v480 = vld [vmem:[%s5 + $0x3] sm:$0x1]
        %v482 = vlaneseq
        %v483 = vshrl.u32 %v482, 7
        %v484 = vsub.s32 0, %v483
        %v485 = vrot.slane %v480, %v484
        %490 = vrot.lane.b32.xlu0 %v476, 64
        %v491 = vpop.permute.xlu0 %490
        %492 = vrot.lane.b32.xlu0 %v477, 64
        %v493 = vpop.permute.xlu0 %492
        %494 = vrot.lane.b32.xlu0 %v478, 64
        %v495 = vpop.permute.xlu0 %494
        %496 = vrot.lane.b32.xlu0 %v479, 64
        %v497 = vpop.permute.xlu0 %496
        %502 = vrot.lane.b32.xlu0 %v485, 96
        %v503 = vpop.permute.xlu0 %502
        %vm505 = vcmask 261120
        %v507 = vsel %vm505, %v464, 0
        %v510 = vsel %vm505, %v465, 0
        %v513 = vsel %vm505, %v466, 0
        %v516 = vsel %vm505, %v467, 0
        %518 = vmatprep.subr.mxu0 0.0
        %519 = vmatpush1.msra.mxu0 0.0
        %520 = vmatprep.subr.mxu0 0.0
        %521 = vmatpush1.msra.mxu0 0.0
        %522 = vmatprep.subr.mxu0 0.0
        %523 = vmatpush1.msra.mxu0 0.0
        %524 = vmatprep.subr.mxu0 0.0
        %525 = vmatpush1.msra.mxu0 0.0
        %526 = vmatprep.subr.mxu0 0.0
        %527 = vmatpush1.msra.mxu0 0.0
        %528 = vmatprep.subr.mxu0 0.0
        %529 = vmatpush1.msra.mxu0 0.0
        %530 = vmatprep.subr.mxu0 0.0
        %531 = vmatpush1.msra.mxu0 0.0
        %532 = vmatprep.subr.mxu0 0.0
        %533 = vmatpush1.msra.mxu0 0.0
        %534 = vmatprep.subr.mxu0 0.0
        %535 = vmatpush1.msra.mxu0 0.0
        %536 = vmatprep.subr.mxu0 0.0
        %537 = vmatpush1.msra.mxu0 0.0
        %538 = vmatprep.subr.mxu0 0.0
        %539 = vmatpush1.msra.mxu0 0.0
        %540 = vmatprep.subr.mxu0 0.0
        %541 = vmatpush1.msra.mxu0 0.0
        %542 = vmatprep.subr.mxu0 0.0
        %543 = vmatpush1.msra.mxu0 %v497
        %544 = vmatprep.subr.mxu0 0.0
        %545 = vmatpush1.msra.mxu0 %v495
        %546 = vmatprep.subr.mxu0 0.0
        %547 = vmatpush1.msra.mxu0 %v493
        %548 = vmatprep.subr.mxu0 0.0
        %549 = vmatpush1.msra.mxu0 %v491
        %550 = vmatprep.subr.mxu0 0.0
        %551 = vmatpush2.msra.mxu0 0.0
        %552 = vmatprep.subr.mxu0 0.0
        %553 = vmatpush2.msra.mxu0 0.0
        %554 = vmatprep.subr.mxu0 0.0
        %555 = vmatpush2.msra.mxu0 0.0
        %556 = vmatprep.subr.mxu0 0.0
        %557 = vmatpush2.msra.mxu0 0.0
        %558 = vmatprep.subr.mxu0 0.0
        %559 = vmatpush2.msra.mxu0 0.0
        %560 = vmatprep.subr.mxu0 0.0
        %561 = vmatpush2.msra.mxu0 0.0
        %562 = vmatprep.subr.mxu0 0.0
        %563 = vmatpush2.msra.mxu0 0.0
        %564 = vmatprep.subr.mxu0 0.0
        %565 = vmatpush2.msra.mxu0 0.0
        %566 = vmatprep.subr.mxu0 0.0
        %567 = vmatpush2.msra.mxu0 0.0
        %568 = vmatprep.subr.mxu0 0.0
        %569 = vmatpush2.msra.mxu0 0.0
        %570 = vmatprep.subr.mxu0 0.0
        %571 = vmatpush2.msra.mxu0 0.0
        %572 = vmatprep.subr.mxu0 0.0
        %573 = vmatpush2.msra.mxu0 0.0
        %574 = vmatprep.subr.mxu0 0.0
        %575 = vmatpush2.msra.mxu0 0.0
        %576 = vmatprep.subr.mxu0 0.0
        %577 = vmatpush2.msra.mxu0 0.0
        %578 = vmatprep.subr.mxu0 0.0
        %579 = vmatpush2.msra.mxu0 0.0
        %580 = vmatprep.subr.mxu0 0.0
        %581 = vmatpush2.msra.mxu0 0.0
        %582 = vmatprep.mubr.f32.mxu0 0.0
        %583 = vmatmul.mubr.f32.gmra.mxu0 %v507
        %v584 = vpop.f32.mrf.mxu0
        %v585 = vadd.f32 %v503, %v584
        %v586 = vpop.f32.mrf.mxu0
        %587 = vmatprep.mubr.f32.mxu0 0.0
        %588 = vmatmul.mubr.f32.gmra.mxu0 %v510
        %v589 = vpop.f32.mrf.mxu0
        %v590 = vadd.f32 %v503, %v589
        %v591 = vpop.f32.mrf.mxu0
        %592 = vmatprep.mubr.f32.mxu0 0.0
        %593 = vmatmul.mubr.f32.gmra.mxu0 %v513
        %v594 = vpop.f32.mrf.mxu0
        %v595 = vadd.f32 %v503, %v594
        %v596 = vpop.f32.mrf.mxu0
        %597 = vmatprep.mubr.f32.mxu0 0.0
        %598 = vmatmul.mubr.f32.gmra.mxu0 %v516
        %v599 = vpop.f32.mrf.mxu0
        %v600 = vadd.f32 %v503, %v599
        %v601 = vpop.f32.mrf.mxu0
        %602 = vdwg.mxu0
        %604 = vset.pattern.permute.xlu0 0
        %605 = vperm.xlu0 %604, %v472
        %v606 = vpop.permute.xlu0 %605
        %609 = vset.pattern.permute.xlu0 0
        %610 = vperm.xlu0 %609, %v473
        %v611 = vpop.permute.xlu0 %610
        %614 = vset.pattern.permute.xlu0 0
        %615 = vperm.xlu0 %614, %v474
        %v616 = vpop.permute.xlu0 %615
        %619 = vset.pattern.permute.xlu0 0
        %620 = vperm.xlu0 %619, %v475
        %v621 = vpop.permute.xlu0 %620
        %v623 = vadd.f32 %v585, %v606
        %v624 = vadd.f32 %v590, %v611
        %v625 = vadd.f32 %v595, %v616
        %v626 = vadd.f32 %v600, %v621
        %vm627 = vcmask 31744
        %v628 = vsel %vm627, %v623, -inf
        %v629 = vrot.slane %v628, 4
        %v630 = vmax.f32 %v628, %v629
        %v631 = vrot.slane %v630, 2
        %v632 = vmax.f32 %v630, %v631
        %v633 = vrot.slane %v632, 1
        %v634 = vmax.f32 %v632, %v633
        %v635 = vsel %vm627, %v624, -inf
        %v636 = vrot.slane %v635, 4
        %v637 = vmax.f32 %v635, %v636
        %v638 = vrot.slane %v637, 2
        %v639 = vmax.f32 %v637, %v638
        %v640 = vrot.slane %v639, 1
        %v641 = vmax.f32 %v639, %v640
        %v642 = vsel %vm627, %v625, -inf
        %v643 = vrot.slane %v642, 4
        %v644 = vmax.f32 %v642, %v643
        %v645 = vrot.slane %v644, 2
        %v646 = vmax.f32 %v644, %v645
        %v647 = vrot.slane %v646, 1
        %v648 = vmax.f32 %v646, %v647
        %v649 = vsel %vm627, %v626, -inf
        %v650 = vrot.slane %v649, 4
        %v651 = vmax.f32 %v649, %v650
        %v652 = vrot.slane %v651, 2
        %v653 = vmax.f32 %v651, %v652
        %v654 = vrot.slane %v653, 1
        %v655 = vmax.f32 %v653, %v654
        %v656 = vsub.f32 %v623, %v634
        %v657 = vsub.f32 %v624, %v641
        %v658 = vsub.f32 %v625, %v648
        %v659 = vsub.f32 %v626, %v655
        %v660 = vmul.f32 %v656, 1.442695
        %v661 = vpow.pop %v660
        %v662 = vmul.f32 %v657, 1.442695
        %v663 = vpow.pop %v662
        %v664 = vmul.f32 %v658, 1.442695
        %v665 = vpow.pop %v664
        %v666 = vmul.f32 %v659, 1.442695
        %v667 = vpow.pop %v666
        %v668 = vsel %vm627, %v661, 0.0
        %v669 = vrot.slane %v668, 4
        %v670 = vadd.f32 %v668, %v669
        %v671 = vrot.slane %v670, 2
        %v672 = vadd.f32 %v670, %v671
        %v673 = vrot.slane %v672, 1
        %v674 = vadd.f32 %v672, %v673
        %v675 = vsel %vm627, %v663, 0.0
        %v676 = vrot.slane %v675, 4
        %v677 = vadd.f32 %v675, %v676
        %v678 = vrot.slane %v677, 2
        %v679 = vadd.f32 %v677, %v678
        %v680 = vrot.slane %v679, 1
        %v681 = vadd.f32 %v679, %v680
        %v682 = vsel %vm627, %v665, 0.0
        %v683 = vrot.slane %v682, 4
        %v684 = vadd.f32 %v682, %v683
        %v685 = vrot.slane %v684, 2
        %v686 = vadd.f32 %v684, %v685
        %v687 = vrot.slane %v686, 1
        %v688 = vadd.f32 %v686, %v687
        %v689 = vsel %vm627, %v667, 0.0
        %v690 = vrot.slane %v689, 4
        %v691 = vadd.f32 %v689, %v690
        %v692 = vrot.slane %v691, 2
        %v693 = vadd.f32 %v691, %v692
        %v694 = vrot.slane %v693, 1
        %v695 = vadd.f32 %v693, %v694
        %v696 = vrcp.pop %v674
        %v697 = vmul.f32 %v661, %v696
        %v698 = vrcp.pop %v681
        %v699 = vmul.f32 %v663, %v698
        %v700 = vrcp.pop %v688
        %v701 = vmul.f32 %v665, %v700
        %v702 = vrcp.pop %v695
        %v703 = vmul.f32 %v667, %v702
        %704 = vxpose.xlu0.b32.start [1/16] %v697, 128
        %705 = vxpose.xlu0.b32.cont [2/16] 0.0, 128
        %706 = vxpose.xlu0.b32.cont [3/16] 0.0, 128
        %707 = vxpose.xlu0.b32.cont [4/16] 0.0, 128
        %708 = vxpose.xlu0.b32.cont [5/16] 0.0, 128
        %709 = vxpose.xlu0.b32.cont [6/16] 0.0, 128
        %710 = vxpose.xlu0.b32.cont [7/16] 0.0, 128
        %711 = vxpose.xlu0.b32.cont [8/16] 0.0, 128
        %712 = vxpose.xlu0.b32.cont [9/16] 0.0, 128
        %713 = vxpose.xlu0.b32.cont [10/16] 0.0, 128
        %714 = vxpose.xlu0.b32.cont [11/16] 0.0, 128
        %715 = vxpose.xlu0.b32.cont [12/16] 0.0, 128
        %716 = vxpose.xlu0.b32.cont [13/16] 0.0, 128
        %717 = vxpose.xlu0.b32.cont [14/16] 0.0, 128
        %718 = vxpose.xlu0.b32.cont [15/16] 0.0, 128
        %719 = vxpose.xlu0.b32.end [16/16] 0.0, 128
        %v720 = vpop.trf.xlu0
        %v721 = vpop.trf.xlu0
        %v722 = vpop.trf.xlu0
        %v723 = vpop.trf.xlu0
        %v724 = vpop.trf.xlu0
        %v725 = vpop.trf.xlu0
        %v726 = vpop.trf.xlu0
        %v727 = vpop.trf.xlu0
        %v728 = vpop.trf.xlu0
        %v729 = vpop.trf.xlu0
        %v730 = vpop.trf.xlu0
        %v731 = vpop.trf.xlu0
        %v732 = vpop.trf.xlu0
        %v733 = vpop.trf.xlu0
        %v734 = vpop.trf.xlu0
        %v735 = vpop.trf.xlu0
        %736 = vxpose.xlu0.b32.start [1/16] %v699, 128
        %737 = vxpose.xlu0.b32.cont [2/16] 0.0, 128
        %738 = vxpose.xlu0.b32.cont [3/16] 0.0, 128
        %739 = vxpose.xlu0.b32.cont [4/16] 0.0, 128
        %740 = vxpose.xlu0.b32.cont [5/16] 0.0, 128
        %741 = vxpose.xlu0.b32.cont [6/16] 0.0, 128
        %742 = vxpose.xlu0.b32.cont [7/16] 0.0, 128
        %743 = vxpose.xlu0.b32.cont [8/16] 0.0, 128
        %744 = vxpose.xlu0.b32.cont [9/16] 0.0, 128
        %745 = vxpose.xlu0.b32.cont [10/16] 0.0, 128
        %746 = vxpose.xlu0.b32.cont [11/16] 0.0, 128
        %747 = vxpose.xlu0.b32.cont [12/16] 0.0, 128
        %748 = vxpose.xlu0.b32.cont [13/16] 0.0, 128
        %749 = vxpose.xlu0.b32.cont [14/16] 0.0, 128
        %750 = vxpose.xlu0.b32.cont [15/16] 0.0, 128
        %751 = vxpose.xlu0.b32.end [16/16] 0.0, 128
        %v752 = vpop.trf.xlu0
        %v753 = vpop.trf.xlu0
        %v754 = vpop.trf.xlu0
        %v755 = vpop.trf.xlu0
        %v756 = vpop.trf.xlu0
        %v757 = vpop.trf.xlu0
        %v758 = vpop.trf.xlu0
        %v759 = vpop.trf.xlu0
        %v760 = vpop.trf.xlu0
        %v761 = vpop.trf.xlu0
        %v762 = vpop.trf.xlu0
        %v763 = vpop.trf.xlu0
        %v764 = vpop.trf.xlu0
        %v765 = vpop.trf.xlu0
        %v766 = vpop.trf.xlu0
        %v767 = vpop.trf.xlu0
        %768 = vxpose.xlu0.b32.start [1/16] %v701, 128
        %769 = vxpose.xlu0.b32.cont [2/16] 0.0, 128
        %770 = vxpose.xlu0.b32.cont [3/16] 0.0, 128
        %771 = vxpose.xlu0.b32.cont [4/16] 0.0, 128
        %772 = vxpose.xlu0.b32.cont [5/16] 0.0, 128
        %773 = vxpose.xlu0.b32.cont [6/16] 0.0, 128
        %774 = vxpose.xlu0.b32.cont [7/16] 0.0, 128
        %775 = vxpose.xlu0.b32.cont [8/16] 0.0, 128
        %776 = vxpose.xlu0.b32.cont [9/16] 0.0, 128
        %777 = vxpose.xlu0.b32.cont [10/16] 0.0, 128
        %778 = vxpose.xlu0.b32.cont [11/16] 0.0, 128
        %779 = vxpose.xlu0.b32.cont [12/16] 0.0, 128
        %780 = vxpose.xlu0.b32.cont [13/16] 0.0, 128
        %781 = vxpose.xlu0.b32.cont [14/16] 0.0, 128
        %782 = vxpose.xlu0.b32.cont [15/16] 0.0, 128
        %783 = vxpose.xlu0.b32.end [16/16] 0.0, 128
        %v784 = vpop.trf.xlu0
        %v785 = vpop.trf.xlu0
        %v786 = vpop.trf.xlu0
        %v787 = vpop.trf.xlu0
        %v788 = vpop.trf.xlu0
        %v789 = vpop.trf.xlu0
        %v790 = vpop.trf.xlu0
        %v791 = vpop.trf.xlu0
        %v792 = vpop.trf.xlu0
        %v793 = vpop.trf.xlu0
        %v794 = vpop.trf.xlu0
        %v795 = vpop.trf.xlu0
        %v796 = vpop.trf.xlu0
        %v797 = vpop.trf.xlu0
        %v798 = vpop.trf.xlu0
        %v799 = vpop.trf.xlu0
        %800 = vxpose.xlu0.b32.start [1/16] %v703, 128
        %801 = vxpose.xlu0.b32.cont [2/16] 0.0, 128
        %802 = vxpose.xlu0.b32.cont [3/16] 0.0, 128
        %803 = vxpose.xlu0.b32.cont [4/16] 0.0, 128
        %804 = vxpose.xlu0.b32.cont [5/16] 0.0, 128
        %805 = vxpose.xlu0.b32.cont [6/16] 0.0, 128
        %806 = vxpose.xlu0.b32.cont [7/16] 0.0, 128
        %807 = vxpose.xlu0.b32.cont [8/16] 0.0, 128
        %808 = vxpose.xlu0.b32.cont [9/16] 0.0, 128
        %809 = vxpose.xlu0.b32.cont [10/16] 0.0, 128
        %810 = vxpose.xlu0.b32.cont [11/16] 0.0, 128
        %811 = vxpose.xlu0.b32.cont [12/16] 0.0, 128
        %812 = vxpose.xlu0.b32.cont [13/16] 0.0, 128
        %813 = vxpose.xlu0.b32.cont [14/16] 0.0, 128
        %814 = vxpose.xlu0.b32.cont [15/16] 0.0, 128
        %815 = vxpose.xlu0.b32.end [16/16] 0.0, 128
        %v816 = vpop.trf.xlu0
        %v817 = vpop.trf.xlu0
        %v818 = vpop.trf.xlu0
        %v819 = vpop.trf.xlu0
        %v820 = vpop.trf.xlu0
        %v821 = vpop.trf.xlu0
        %v822 = vpop.trf.xlu0
        %v823 = vpop.trf.xlu0
        %v824 = vpop.trf.xlu0
        %v825 = vpop.trf.xlu0
        %v826 = vpop.trf.xlu0
        %v827 = vpop.trf.xlu0
        %v828 = vpop.trf.xlu0
        %v829 = vpop.trf.xlu0
        %v830 = vpop.trf.xlu0
        %v831 = vpop.trf.xlu0
        %vm832 = vcmask 64512
        %v834 = vsel %vm832, %v720, 0
        %836 = vmatprep.subr.mxu0 0.0
        %837 = vmatpush1.msra.mxu0 0.0
        %838 = vmatprep.subr.mxu0 0.0
        %839 = vmatpush1.msra.mxu0 0.0
        %840 = vmatprep.subr.mxu0 0.0
        %841 = vmatpush1.msra.mxu0 0.0
        %842 = vmatprep.subr.mxu0 0.0
        %843 = vmatpush1.msra.mxu0 0.0
        %844 = vmatprep.subr.mxu0 0.0
        %845 = vmatpush1.msra.mxu0 0.0
        %846 = vmatprep.subr.mxu0 0.0
        %847 = vmatpush1.msra.mxu0 0.0
        %848 = vmatprep.subr.mxu0 0.0
        %849 = vmatpush1.msra.mxu0 0.0
        %850 = vmatprep.subr.mxu0 0.0
        %851 = vmatpush1.msra.mxu0 0.0
        %852 = vmatprep.subr.mxu0 0.0
        %853 = vmatpush1.msra.mxu0 0.0
        %854 = vmatprep.subr.mxu0 0.0
        %855 = vmatpush1.msra.mxu0 0.0
        %856 = vmatprep.subr.mxu0 0.0
        %857 = vmatpush1.msra.mxu0 0.0
        %858 = vmatprep.subr.mxu0 0.0
        %859 = vmatpush1.msra.mxu0 0.0
        %860 = vmatprep.subr.mxu0 0.0
        %861 = vmatpush1.msra.mxu0 0.0
        %862 = vmatprep.subr.mxu0 0.0
        %863 = vmatpush1.msra.mxu0 0.0
        %864 = vmatprep.subr.mxu0 0.0
        %865 = vmatpush1.msra.mxu0 0.0
        %866 = vmatprep.subr.mxu0 0.0
        %867 = vmatpush1.msra.mxu0 %v464
        %868 = vmatprep.subr.mxu0 0.0
        %869 = vmatpush2.msra.mxu0 0.0
        %870 = vmatprep.subr.mxu0 0.0
        %871 = vmatpush2.msra.mxu0 0.0
        %872 = vmatprep.subr.mxu0 0.0
        %873 = vmatpush2.msra.mxu0 0.0
        %874 = vmatprep.subr.mxu0 0.0
        %875 = vmatpush2.msra.mxu0 0.0
        %876 = vmatprep.subr.mxu0 0.0
        %877 = vmatpush2.msra.mxu0 0.0
        %878 = vmatprep.subr.mxu0 0.0
        %879 = vmatpush2.msra.mxu0 0.0
        %880 = vmatprep.subr.mxu0 0.0
        %881 = vmatpush2.msra.mxu0 0.0
        %882 = vmatprep.subr.mxu0 0.0
        %883 = vmatpush2.msra.mxu0 0.0
        %884 = vmatprep.subr.mxu0 0.0
        %885 = vmatpush2.msra.mxu0 0.0
        %886 = vmatprep.subr.mxu0 0.0
        %887 = vmatpush2.msra.mxu0 0.0
        %888 = vmatprep.subr.mxu0 0.0
        %889 = vmatpush2.msra.mxu0 0.0
        %890 = vmatprep.subr.mxu0 0.0
        %891 = vmatpush2.msra.mxu0 0.0
        %892 = vmatprep.subr.mxu0 0.0
        %893 = vmatpush2.msra.mxu0 0.0
        %894 = vmatprep.subr.mxu0 0.0
        %895 = vmatpush2.msra.mxu0 0.0
        %896 = vmatprep.subr.mxu0 0.0
        %897 = vmatpush2.msra.mxu0 0.0
        %898 = vmatprep.subr.mxu0 0.0
        %899 = vmatpush2.msra.mxu0 0.0
        %900 = vmatprep.mubr.f32.mxu0 0.0
        %901 = vmatmul.mubr.f32.gmra.mxu0 %v834
        %v902 = vpop.f32.mrf.mxu0
        %v903 = vadd.f32 0.0, %v902
        %v904 = vpop.f32.mrf.mxu0
        %905 = vdwg.mxu0
        %v907 = vsel %vm832, %v752, 0
        %909 = vmatprep.subr.mxu0 0.0
        %910 = vmatpush1.msra.mxu0 0.0
        %911 = vmatprep.subr.mxu0 0.0
        %912 = vmatpush1.msra.mxu0 0.0
        %913 = vmatprep.subr.mxu0 0.0
        %914 = vmatpush1.msra.mxu0 0.0
        %915 = vmatprep.subr.mxu0 0.0
        %916 = vmatpush1.msra.mxu0 0.0
        %917 = vmatprep.subr.mxu0 0.0
        %918 = vmatpush1.msra.mxu0 0.0
        %919 = vmatprep.subr.mxu0 0.0
        %920 = vmatpush1.msra.mxu0 0.0
        %921 = vmatprep.subr.mxu0 0.0
        %922 = vmatpush1.msra.mxu0 0.0
        %923 = vmatprep.subr.mxu0 0.0
        %924 = vmatpush1.msra.mxu0 0.0
        %925 = vmatprep.subr.mxu0 0.0
        %926 = vmatpush1.msra.mxu0 0.0
        %927 = vmatprep.subr.mxu0 0.0
        %928 = vmatpush1.msra.mxu0 0.0
        %929 = vmatprep.subr.mxu0 0.0
        %930 = vmatpush1.msra.mxu0 0.0
        %931 = vmatprep.subr.mxu0 0.0
        %932 = vmatpush1.msra.mxu0 0.0
        %933 = vmatprep.subr.mxu0 0.0
        %934 = vmatpush1.msra.mxu0 0.0
        %935 = vmatprep.subr.mxu0 0.0
        %936 = vmatpush1.msra.mxu0 0.0
        %937 = vmatprep.subr.mxu0 0.0
        %938 = vmatpush1.msra.mxu0 0.0
        %939 = vmatprep.subr.mxu0 0.0
        %940 = vmatpush1.msra.mxu0 %v465
        %941 = vmatprep.subr.mxu0 0.0
        %942 = vmatpush2.msra.mxu0 0.0
        %943 = vmatprep.subr.mxu0 0.0
        %944 = vmatpush2.msra.mxu0 0.0
        %945 = vmatprep.subr.mxu0 0.0
        %946 = vmatpush2.msra.mxu0 0.0
        %947 = vmatprep.subr.mxu0 0.0
        %948 = vmatpush2.msra.mxu0 0.0
        %949 = vmatprep.subr.mxu0 0.0
        %950 = vmatpush2.msra.mxu0 0.0
        %951 = vmatprep.subr.mxu0 0.0
        %952 = vmatpush2.msra.mxu0 0.0
        %953 = vmatprep.subr.mxu0 0.0
        %954 = vmatpush2.msra.mxu0 0.0
        %955 = vmatprep.subr.mxu0 0.0
        %956 = vmatpush2.msra.mxu0 0.0
        %957 = vmatprep.subr.mxu0 0.0
        %958 = vmatpush2.msra.mxu0 0.0
        %959 = vmatprep.subr.mxu0 0.0
        %960 = vmatpush2.msra.mxu0 0.0
        %961 = vmatprep.subr.mxu0 0.0
        %962 = vmatpush2.msra.mxu0 0.0
        %963 = vmatprep.subr.mxu0 0.0
        %964 = vmatpush2.msra.mxu0 0.0
        %965 = vmatprep.subr.mxu0 0.0
        %966 = vmatpush2.msra.mxu0 0.0
        %967 = vmatprep.subr.mxu0 0.0
        %968 = vmatpush2.msra.mxu0 0.0
        %969 = vmatprep.subr.mxu0 0.0
        %970 = vmatpush2.msra.mxu0 0.0
        %971 = vmatprep.subr.mxu0 0.0
        %972 = vmatpush2.msra.mxu0 0.0
        %973 = vmatprep.mubr.f32.mxu0 0.0
        %974 = vmatmul.mubr.f32.gmra.mxu0 %v907
        %v975 = vpop.f32.mrf.mxu0
        %v976 = vadd.f32 0.0, %v975
        %v977 = vpop.f32.mrf.mxu0
        %978 = vdwg.mxu0
        %v980 = vsel %vm832, %v784, 0
        %982 = vmatprep.subr.mxu0 0.0
        %983 = vmatpush1.msra.mxu0 0.0
        %984 = vmatprep.subr.mxu0 0.0
        %985 = vmatpush1.msra.mxu0 0.0
        %986 = vmatprep.subr.mxu0 0.0
        %987 = vmatpush1.msra.mxu0 0.0
        %988 = vmatprep.subr.mxu0 0.0
        %989 = vmatpush1.msra.mxu0 0.0
        %990 = vmatprep.subr.mxu0 0.0
        %991 = vmatpush1.msra.mxu0 0.0
        %992 = vmatprep.subr.mxu0 0.0
        %993 = vmatpush1.msra.mxu0 0.0
        %994 = vmatprep.subr.mxu0 0.0
        %995 = vmatpush1.msra.mxu0 0.0
        %996 = vmatprep.subr.mxu0 0.0
        %997 = vmatpush1.msra.mxu0 0.0
        %998 = vmatprep.subr.mxu0 0.0
        %999 = vmatpush1.msra.mxu0 0.0
        %1000 = vmatprep.subr.mxu0 0.0
        %1001 = vmatpush1.msra.mxu0 0.0
        %1002 = vmatprep.subr.mxu0 0.0
        %1003 = vmatpush1.msra.mxu0 0.0
        %1004 = vmatprep.subr.mxu0 0.0
        %1005 = vmatpush1.msra.mxu0 0.0
        %1006 = vmatprep.subr.mxu0 0.0
        %1007 = vmatpush1.msra.mxu0 0.0
        %1008 = vmatprep.subr.mxu0 0.0
        %1009 = vmatpush1.msra.mxu0 0.0
        %1010 = vmatprep.subr.mxu0 0.0
        %1011 = vmatpush1.msra.mxu0 0.0
        %1012 = vmatprep.subr.mxu0 0.0
        %1013 = vmatpush1.msra.mxu0 %v466
        %1014 = vmatprep.subr.mxu0 0.0
        %1015 = vmatpush2.msra.mxu0 0.0
        %1016 = vmatprep.subr.mxu0 0.0
        %1017 = vmatpush2.msra.mxu0 0.0
        %1018 = vmatprep.subr.mxu0 0.0
        %1019 = vmatpush2.msra.mxu0 0.0
        %1020 = vmatprep.subr.mxu0 0.0
        %1021 = vmatpush2.msra.mxu0 0.0
        %1022 = vmatprep.subr.mxu0 0.0
        %1023 = vmatpush2.msra.mxu0 0.0
        %1024 = vmatprep.subr.mxu0 0.0
        %1025 = vmatpush2.msra.mxu0 0.0
        %1026 = vmatprep.subr.mxu0 0.0
        %1027 = vmatpush2.msra.mxu0 0.0
        %1028 = vmatprep.subr.mxu0 0.0
        %1029 = vmatpush2.msra.mxu0 0.0
        %1030 = vmatprep.subr.mxu0 0.0
        %1031 = vmatpush2.msra.mxu0 0.0
        %1032 = vmatprep.subr.mxu0 0.0
        %1033 = vmatpush2.msra.mxu0 0.0
        %1034 = vmatprep.subr.mxu0 0.0
        %1035 = vmatpush2.msra.mxu0 0.0
        %1036 = vmatprep.subr.mxu0 0.0
        %1037 = vmatpush2.msra.mxu0 0.0
        %1038 = vmatprep.subr.mxu0 0.0
        %1039 = vmatpush2.msra.mxu0 0.0
        %1040 = vmatprep.subr.mxu0 0.0
        %1041 = vmatpush2.msra.mxu0 0.0
        %1042 = vmatprep.subr.mxu0 0.0
        %1043 = vmatpush2.msra.mxu0 0.0
        %1044 = vmatprep.subr.mxu0 0.0
        %1045 = vmatpush2.msra.mxu0 0.0
        %1046 = vmatprep.mubr.f32.mxu0 0.0
        %1047 = vmatmul.mubr.f32.gmra.mxu0 %v980
        %v1048 = vpop.f32.mrf.mxu0
        %v1049 = vadd.f32 0.0, %v1048
        %v1050 = vpop.f32.mrf.mxu0
        %1051 = vdwg.mxu0
        %v1053 = vsel %vm832, %v816, 0
        %1055 = vmatprep.subr.mxu0 0.0
        %1056 = vmatpush1.msra.mxu0 0.0
        %1057 = vmatprep.subr.mxu0 0.0
        %1058 = vmatpush1.msra.mxu0 0.0
        %1059 = vmatprep.subr.mxu0 0.0
        %1060 = vmatpush1.msra.mxu0 0.0
        %1061 = vmatprep.subr.mxu0 0.0
        %1062 = vmatpush1.msra.mxu0 0.0
        %1063 = vmatprep.subr.mxu0 0.0
        %1064 = vmatpush1.msra.mxu0 0.0
        %1065 = vmatprep.subr.mxu0 0.0
        %1066 = vmatpush1.msra.mxu0 0.0
        %1067 = vmatprep.subr.mxu0 0.0
        %1068 = vmatpush1.msra.mxu0 0.0
        %1069 = vmatprep.subr.mxu0 0.0
        %1070 = vmatpush1.msra.mxu0 0.0
        %1071 = vmatprep.subr.mxu0 0.0
        %1072 = vmatpush1.msra.mxu0 0.0
        %1073 = vmatprep.subr.mxu0 0.0
        %1074 = vmatpush1.msra.mxu0 0.0
        %1075 = vmatprep.subr.mxu0 0.0
        %1076 = vmatpush1.msra.mxu0 0.0
        %1077 = vmatprep.subr.mxu0 0.0
        %1078 = vmatpush1.msra.mxu0 0.0
        %1079 = vmatprep.subr.mxu0 0.0
        %1080 = vmatpush1.msra.mxu0 0.0
        %1081 = vmatprep.subr.mxu0 0.0
        %1082 = vmatpush1.msra.mxu0 0.0
        %1083 = vmatprep.subr.mxu0 0.0
        %1084 = vmatpush1.msra.mxu0 0.0
        %1085 = vmatprep.subr.mxu0 0.0
        %1086 = vmatpush1.msra.mxu0 %v467
        %1087 = vmatprep.subr.mxu0 0.0
        %1088 = vmatpush2.msra.mxu0 0.0
        %1089 = vmatprep.subr.mxu0 0.0
        %1090 = vmatpush2.msra.mxu0 0.0
        %1091 = vmatprep.subr.mxu0 0.0
        %1092 = vmatpush2.msra.mxu0 0.0
        %1093 = vmatprep.subr.mxu0 0.0
        %1094 = vmatpush2.msra.mxu0 0.0
        %1095 = vmatprep.subr.mxu0 0.0
        %1096 = vmatpush2.msra.mxu0 0.0
        %1097 = vmatprep.subr.mxu0 0.0
        %1098 = vmatpush2.msra.mxu0 0.0
        %1099 = vmatprep.subr.mxu0 0.0
        %1100 = vmatpush2.msra.mxu0 0.0
        %1101 = vmatprep.subr.mxu0 0.0
        %1102 = vmatpush2.msra.mxu0 0.0
        %1103 = vmatprep.subr.mxu0 0.0
        %1104 = vmatpush2.msra.mxu0 0.0
        %1105 = vmatprep.subr.mxu0 0.0
        %1106 = vmatpush2.msra.mxu0 0.0
        %1107 = vmatprep.subr.mxu0 0.0
        %1108 = vmatpush2.msra.mxu0 0.0
        %1109 = vmatprep.subr.mxu0 0.0
        %1110 = vmatpush2.msra.mxu0 0.0
        %1111 = vmatprep.subr.mxu0 0.0
        %1112 = vmatpush2.msra.mxu0 0.0
        %1113 = vmatprep.subr.mxu0 0.0
        %1114 = vmatpush2.msra.mxu0 0.0
        %1115 = vmatprep.subr.mxu0 0.0
        %1116 = vmatpush2.msra.mxu0 0.0
        %1117 = vmatprep.subr.mxu0 0.0
        %1118 = vmatpush2.msra.mxu0 0.0
        %1119 = vmatprep.mubr.f32.mxu0 0.0
        %1120 = vmatmul.mubr.f32.gmra.mxu0 %v1053
        %v1121 = vpop.f32.mrf.mxu0
        %v1122 = vadd.f32 0.0, %v1121
        %v1123 = vpop.f32.mrf.mxu0
        %1124 = vdwg.mxu0
        %v1125 = vld [vmem:[%s460] sm:$0xff]
        %v1126 = vld [vmem:[%s460 + $0x8] sm:$0xff]
        %v1127 = vld [vmem:[%s460 + $0x10] sm:$0xff]
        %v1128 = vld [vmem:[%s460 + $0x18] sm:$0xff]
        %v1129 = vld [vmem:[%s4 + $0x18] sm:$0xff]
        %v1130 = vld [vmem:[%s4 + $0x38] sm:$0xff]
        %v1131 = vld [vmem:[%s4 + $0x58] sm:$0xff]
        %v1132 = vld [vmem:[%s4 + $0x78] sm:$0xff]
        %v1133 = vld [vmem:[%s5 + $0x3] sm:$0x1]
        %v1135 = vlaneseq
        %v1136 = vshrl.u32 %v1135, 7
        %v1137 = vsub.s32 0, %v1136
        %v1138 = vrot.slane %v1133, %v1137
        %1143 = vrot.lane.b32.xlu0 %v1129, 60
        %v1144 = vpop.permute.xlu0 %1143
        %1145 = vrot.lane.b32.xlu0 %v1130, 60
        %v1146 = vpop.permute.xlu0 %1145
        %1147 = vrot.lane.b32.xlu0 %v1131, 60
        %v1148 = vpop.permute.xlu0 %1147
        %1149 = vrot.lane.b32.xlu0 %v1132, 60
        %v1150 = vpop.permute.xlu0 %1149
        %1155 = vrot.lane.b32.xlu0 %v1138, 92
        %v1156 = vpop.permute.xlu0 %1155
        %v1159 = vsel %vm505, %v468, 0
        %v1162 = vsel %vm505, %v469, 0
        %v1165 = vsel %vm505, %v470, 0
        %v1168 = vsel %vm505, %v471, 0
        %1170 = vmatprep.subr.mxu0 0.0
        %1171 = vmatpush1.msra.mxu0 0.0
        %1172 = vmatprep.subr.mxu0 0.0
        %1173 = vmatpush1.msra.mxu0 0.0
        %1174 = vmatprep.subr.mxu0 0.0
        %1175 = vmatpush1.msra.mxu0 0.0
        %1176 = vmatprep.subr.mxu0 0.0
        %1177 = vmatpush1.msra.mxu0 0.0
        %1178 = vmatprep.subr.mxu0 0.0
        %1179 = vmatpush1.msra.mxu0 0.0
        %1180 = vmatprep.subr.mxu0 0.0
        %1181 = vmatpush1.msra.mxu0 0.0
        %1182 = vmatprep.subr.mxu0 0.0
        %1183 = vmatpush1.msra.mxu0 0.0
        %1184 = vmatprep.subr.mxu0 0.0
        %1185 = vmatpush1.msra.mxu0 0.0
        %1186 = vmatprep.subr.mxu0 0.0
        %1187 = vmatpush1.msra.mxu0 0.0
        %1188 = vmatprep.subr.mxu0 0.0
        %1189 = vmatpush1.msra.mxu0 0.0
        %1190 = vmatprep.subr.mxu0 0.0
        %1191 = vmatpush1.msra.mxu0 0.0
        %1192 = vmatprep.subr.mxu0 0.0
        %1193 = vmatpush1.msra.mxu0 0.0
        %1194 = vmatprep.subr.mxu0 0.0
        %1195 = vmatpush1.msra.mxu0 %v1150
        %1196 = vmatprep.subr.mxu0 0.0
        %1197 = vmatpush1.msra.mxu0 %v1148
        %1198 = vmatprep.subr.mxu0 0.0
        %1199 = vmatpush1.msra.mxu0 %v1146
        %1200 = vmatprep.subr.mxu0 0.0
        %1201 = vmatpush1.msra.mxu0 %v1144
        %1202 = vmatprep.subr.mxu0 0.0
        %1203 = vmatpush2.msra.mxu0 0.0
        %1204 = vmatprep.subr.mxu0 0.0
        %1205 = vmatpush2.msra.mxu0 0.0
        %1206 = vmatprep.subr.mxu0 0.0
        %1207 = vmatpush2.msra.mxu0 0.0
        %1208 = vmatprep.subr.mxu0 0.0
        %1209 = vmatpush2.msra.mxu0 0.0
        %1210 = vmatprep.subr.mxu0 0.0
        %1211 = vmatpush2.msra.mxu0 0.0
        %1212 = vmatprep.subr.mxu0 0.0
        %1213 = vmatpush2.msra.mxu0 0.0
        %1214 = vmatprep.subr.mxu0 0.0
        %1215 = vmatpush2.msra.mxu0 0.0
        %1216 = vmatprep.subr.mxu0 0.0
        %1217 = vmatpush2.msra.mxu0 0.0
        %1218 = vmatprep.subr.mxu0 0.0
        %1219 = vmatpush2.msra.mxu0 0.0
        %1220 = vmatprep.subr.mxu0 0.0
        %1221 = vmatpush2.msra.mxu0 0.0
        %1222 = vmatprep.subr.mxu0 0.0
        %1223 = vmatpush2.msra.mxu0 0.0
        %1224 = vmatprep.subr.mxu0 0.0
        %1225 = vmatpush2.msra.mxu0 0.0
        %1226 = vmatprep.subr.mxu0 0.0
        %1227 = vmatpush2.msra.mxu0 0.0
        %1228 = vmatprep.subr.mxu0 0.0
        %1229 = vmatpush2.msra.mxu0 0.0
        %1230 = vmatprep.subr.mxu0 0.0
        %1231 = vmatpush2.msra.mxu0 0.0
        %1232 = vmatprep.subr.mxu0 0.0
        %1233 = vmatpush2.msra.mxu0 0.0
        %1234 = vmatprep.mubr.f32.mxu0 0.0
        %1235 = vmatmul.mubr.f32.gmra.mxu0 %v1159
        %v1236 = vpop.f32.mrf.mxu0
        %v1237 = vadd.f32 %v1156, %v1236
        %v1238 = vpop.f32.mrf.mxu0
        %1239 = vmatprep.mubr.f32.mxu0 0.0
        %1240 = vmatmul.mubr.f32.gmra.mxu0 %v1162
        %v1241 = vpop.f32.mrf.mxu0
        %v1242 = vadd.f32 %v1156, %v1241
        %v1243 = vpop.f32.mrf.mxu0
        %1244 = vmatprep.mubr.f32.mxu0 0.0
        %1245 = vmatmul.mubr.f32.gmra.mxu0 %v1165
        %v1246 = vpop.f32.mrf.mxu0
        %v1247 = vadd.f32 %v1156, %v1246
        %v1248 = vpop.f32.mrf.mxu0
        %1249 = vmatprep.mubr.f32.mxu0 0.0
        %1250 = vmatmul.mubr.f32.gmra.mxu0 %v1168
        %v1251 = vpop.f32.mrf.mxu0
        %v1252 = vadd.f32 %v1156, %v1251
        %v1253 = vpop.f32.mrf.mxu0
        %1254 = vdwg.mxu0
        %1256 = vset.pattern.permute.xlu0 0
        %1257 = vperm.xlu0 %1256, %v1125
        %v1258 = vpop.permute.xlu0 %1257
        %1261 = vset.pattern.permute.xlu0 0
        %1262 = vperm.xlu0 %1261, %v1126
        %v1263 = vpop.permute.xlu0 %1262
        %1266 = vset.pattern.permute.xlu0 0
        %1267 = vperm.xlu0 %1266, %v1127
        %v1268 = vpop.permute.xlu0 %1267
        %1271 = vset.pattern.permute.xlu0 0
        %1272 = vperm.xlu0 %1271, %v1128
        %v1273 = vpop.permute.xlu0 %1272
        %v1275 = vadd.f32 %v1237, %v1258
        %v1276 = vadd.f32 %v1242, %v1263
        %v1277 = vadd.f32 %v1247, %v1268
        %v1278 = vadd.f32 %v1252, %v1273
        %v1279 = vsel %vm627, %v1275, -inf
        %v1280 = vrot.slane %v1279, 4
        %v1281 = vmax.f32 %v1279, %v1280
        %v1282 = vrot.slane %v1281, 2
        %v1283 = vmax.f32 %v1281, %v1282
        %v1284 = vrot.slane %v1283, 1
        %v1285 = vmax.f32 %v1283, %v1284
        %v1286 = vsel %vm627, %v1276, -inf
        %v1287 = vrot.slane %v1286, 4
        %v1288 = vmax.f32 %v1286, %v1287
        %v1289 = vrot.slane %v1288, 2
        %v1290 = vmax.f32 %v1288, %v1289
        %v1291 = vrot.slane %v1290, 1
        %v1292 = vmax.f32 %v1290, %v1291
        %v1293 = vsel %vm627, %v1277, -inf
        %v1294 = vrot.slane %v1293, 4
        %v1295 = vmax.f32 %v1293, %v1294
        %v1296 = vrot.slane %v1295, 2
        %v1297 = vmax.f32 %v1295, %v1296
        %v1298 = vrot.slane %v1297, 1
        %v1299 = vmax.f32 %v1297, %v1298
        %v1300 = vsel %vm627, %v1278, -inf
        %v1301 = vrot.slane %v1300, 4
        %v1302 = vmax.f32 %v1300, %v1301
        %v1303 = vrot.slane %v1302, 2
        %v1304 = vmax.f32 %v1302, %v1303
        %v1305 = vrot.slane %v1304, 1
        %v1306 = vmax.f32 %v1304, %v1305
        %v1307 = vsub.f32 %v1275, %v1285
        %v1308 = vsub.f32 %v1276, %v1292
        %v1309 = vsub.f32 %v1277, %v1299
        %v1310 = vsub.f32 %v1278, %v1306
        %v1311 = vmul.f32 %v1307, 1.442695
        %v1312 = vpow.pop %v1311
        %v1313 = vmul.f32 %v1308, 1.442695
        %v1314 = vpow.pop %v1313
        %v1315 = vmul.f32 %v1309, 1.442695
        %v1316 = vpow.pop %v1315
        %v1317 = vmul.f32 %v1310, 1.442695
        %v1318 = vpow.pop %v1317
        %v1319 = vsel %vm627, %v1312, 0.0
        %v1320 = vrot.slane %v1319, 4
        %v1321 = vadd.f32 %v1319, %v1320
        %v1322 = vrot.slane %v1321, 2
        %v1323 = vadd.f32 %v1321, %v1322
        %v1324 = vrot.slane %v1323, 1
        %v1325 = vadd.f32 %v1323, %v1324
        %v1326 = vsel %vm627, %v1314, 0.0
        %v1327 = vrot.slane %v1326, 4
        %v1328 = vadd.f32 %v1326, %v1327
        %v1329 = vrot.slane %v1328, 2
        %v1330 = vadd.f32 %v1328, %v1329
        %v1331 = vrot.slane %v1330, 1
        %v1332 = vadd.f32 %v1330, %v1331
        %v1333 = vsel %vm627, %v1316, 0.0
        %v1334 = vrot.slane %v1333, 4
        %v1335 = vadd.f32 %v1333, %v1334
        %v1336 = vrot.slane %v1335, 2
        %v1337 = vadd.f32 %v1335, %v1336
        %v1338 = vrot.slane %v1337, 1
        %v1339 = vadd.f32 %v1337, %v1338
        %v1340 = vsel %vm627, %v1318, 0.0
        %v1341 = vrot.slane %v1340, 4
        %v1342 = vadd.f32 %v1340, %v1341
        %v1343 = vrot.slane %v1342, 2
        %v1344 = vadd.f32 %v1342, %v1343
        %v1345 = vrot.slane %v1344, 1
        %v1346 = vadd.f32 %v1344, %v1345
        %v1347 = vrcp.pop %v1325
        %v1348 = vmul.f32 %v1312, %v1347
        %v1349 = vrcp.pop %v1332
        %v1350 = vmul.f32 %v1314, %v1349
        %v1351 = vrcp.pop %v1339
        %v1352 = vmul.f32 %v1316, %v1351
        %v1353 = vrcp.pop %v1346
        %v1354 = vmul.f32 %v1318, %v1353
        %1355 = vxpose.xlu0.b32.start [1/16] %v1348, 128
        %1356 = vxpose.xlu0.b32.cont [2/16] 0.0, 128
        %1357 = vxpose.xlu0.b32.cont [3/16] 0.0, 128
        %1358 = vxpose.xlu0.b32.cont [4/16] 0.0, 128
        %1359 = vxpose.xlu0.b32.cont [5/16] 0.0, 128
        %1360 = vxpose.xlu0.b32.cont [6/16] 0.0, 128
        %1361 = vxpose.xlu0.b32.cont [7/16] 0.0, 128
        %1362 = vxpose.xlu0.b32.cont [8/16] 0.0, 128
        %1363 = vxpose.xlu0.b32.cont [9/16] 0.0, 128
        %1364 = vxpose.xlu0.b32.cont [10/16] 0.0, 128
        %1365 = vxpose.xlu0.b32.cont [11/16] 0.0, 128
        %1366 = vxpose.xlu0.b32.cont [12/16] 0.0, 128
        %1367 = vxpose.xlu0.b32.cont [13/16] 0.0, 128
        %1368 = vxpose.xlu0.b32.cont [14/16] 0.0, 128
        %1369 = vxpose.xlu0.b32.cont [15/16] 0.0, 128
        %1370 = vxpose.xlu0.b32.end [16/16] 0.0, 128
        %v1371 = vpop.trf.xlu0
        %v1372 = vpop.trf.xlu0
        %v1373 = vpop.trf.xlu0
        %v1374 = vpop.trf.xlu0
        %v1375 = vpop.trf.xlu0
        %v1376 = vpop.trf.xlu0
        %v1377 = vpop.trf.xlu0
        %v1378 = vpop.trf.xlu0
        %v1379 = vpop.trf.xlu0
        %v1380 = vpop.trf.xlu0
        %v1381 = vpop.trf.xlu0
        %v1382 = vpop.trf.xlu0
        %v1383 = vpop.trf.xlu0
        %v1384 = vpop.trf.xlu0
        %v1385 = vpop.trf.xlu0
        %v1386 = vpop.trf.xlu0
        %1387 = vxpose.xlu0.b32.start [1/16] %v1350, 128
        %1388 = vxpose.xlu0.b32.cont [2/16] 0.0, 128
        %1389 = vxpose.xlu0.b32.cont [3/16] 0.0, 128
        %1390 = vxpose.xlu0.b32.cont [4/16] 0.0, 128
        %1391 = vxpose.xlu0.b32.cont [5/16] 0.0, 128
        %1392 = vxpose.xlu0.b32.cont [6/16] 0.0, 128
        %1393 = vxpose.xlu0.b32.cont [7/16] 0.0, 128
        %1394 = vxpose.xlu0.b32.cont [8/16] 0.0, 128
        %1395 = vxpose.xlu0.b32.cont [9/16] 0.0, 128
        %1396 = vxpose.xlu0.b32.cont [10/16] 0.0, 128
        %1397 = vxpose.xlu0.b32.cont [11/16] 0.0, 128
        %1398 = vxpose.xlu0.b32.cont [12/16] 0.0, 128
        %1399 = vxpose.xlu0.b32.cont [13/16] 0.0, 128
        %1400 = vxpose.xlu0.b32.cont [14/16] 0.0, 128
        %1401 = vxpose.xlu0.b32.cont [15/16] 0.0, 128
        %1402 = vxpose.xlu0.b32.end [16/16] 0.0, 128
        %v1403 = vpop.trf.xlu0
        %v1404 = vpop.trf.xlu0
        %v1405 = vpop.trf.xlu0
        %v1406 = vpop.trf.xlu0
        %v1407 = vpop.trf.xlu0
        %v1408 = vpop.trf.xlu0
        %v1409 = vpop.trf.xlu0
        %v1410 = vpop.trf.xlu0
        %v1411 = vpop.trf.xlu0
        %v1412 = vpop.trf.xlu0
        %v1413 = vpop.trf.xlu0
        %v1414 = vpop.trf.xlu0
        %v1415 = vpop.trf.xlu0
        %v1416 = vpop.trf.xlu0
        %v1417 = vpop.trf.xlu0
        %v1418 = vpop.trf.xlu0
        %1419 = vxpose.xlu0.b32.start [1/16] %v1352, 128
        %1420 = vxpose.xlu0.b32.cont [2/16] 0.0, 128
        %1421 = vxpose.xlu0.b32.cont [3/16] 0.0, 128
        %1422 = vxpose.xlu0.b32.cont [4/16] 0.0, 128
        %1423 = vxpose.xlu0.b32.cont [5/16] 0.0, 128
        %1424 = vxpose.xlu0.b32.cont [6/16] 0.0, 128
        %1425 = vxpose.xlu0.b32.cont [7/16] 0.0, 128
        %1426 = vxpose.xlu0.b32.cont [8/16] 0.0, 128
        %1427 = vxpose.xlu0.b32.cont [9/16] 0.0, 128
        %1428 = vxpose.xlu0.b32.cont [10/16] 0.0, 128
        %1429 = vxpose.xlu0.b32.cont [11/16] 0.0, 128
        %1430 = vxpose.xlu0.b32.cont [12/16] 0.0, 128
        %1431 = vxpose.xlu0.b32.cont [13/16] 0.0, 128
        %1432 = vxpose.xlu0.b32.cont [14/16] 0.0, 128
        %1433 = vxpose.xlu0.b32.cont [15/16] 0.0, 128
        %1434 = vxpose.xlu0.b32.end [16/16] 0.0, 128
        %v1435 = vpop.trf.xlu0
        %v1436 = vpop.trf.xlu0
        %v1437 = vpop.trf.xlu0
        %v1438 = vpop.trf.xlu0
        %v1439 = vpop.trf.xlu0
        %v1440 = vpop.trf.xlu0
        %v1441 = vpop.trf.xlu0
        %v1442 = vpop.trf.xlu0
        %v1443 = vpop.trf.xlu0
        %v1444 = vpop.trf.xlu0
        %v1445 = vpop.trf.xlu0
        %v1446 = vpop.trf.xlu0
        %v1447 = vpop.trf.xlu0
        %v1448 = vpop.trf.xlu0
        %v1449 = vpop.trf.xlu0
        %v1450 = vpop.trf.xlu0
        %1451 = vxpose.xlu0.b32.start [1/16] %v1354, 128
        %1452 = vxpose.xlu0.b32.cont [2/16] 0.0, 128
        %1453 = vxpose.xlu0.b32.cont [3/16] 0.0, 128
        %1454 = vxpose.xlu0.b32.cont [4/16] 0.0, 128
        %1455 = vxpose.xlu0.b32.cont [5/16] 0.0, 128
        %1456 = vxpose.xlu0.b32.cont [6/16] 0.0, 128
        %1457 = vxpose.xlu0.b32.cont [7/16] 0.0, 128
        %1458 = vxpose.xlu0.b32.cont [8/16] 0.0, 128
        %1459 = vxpose.xlu0.b32.cont [9/16] 0.0, 128
        %1460 = vxpose.xlu0.b32.cont [10/16] 0.0, 128
        %1461 = vxpose.xlu0.b32.cont [11/16] 0.0, 128
        %1462 = vxpose.xlu0.b32.cont [12/16] 0.0, 128
        %1463 = vxpose.xlu0.b32.cont [13/16] 0.0, 128
        %1464 = vxpose.xlu0.b32.cont [14/16] 0.0, 128
        %1465 = vxpose.xlu0.b32.cont [15/16] 0.0, 128
        %1466 = vxpose.xlu0.b32.end [16/16] 0.0, 128
        %v1467 = vpop.trf.xlu0
        %v1468 = vpop.trf.xlu0
        %v1469 = vpop.trf.xlu0
        %v1470 = vpop.trf.xlu0
        %v1471 = vpop.trf.xlu0
        %v1472 = vpop.trf.xlu0
        %v1473 = vpop.trf.xlu0
        %v1474 = vpop.trf.xlu0
        %v1475 = vpop.trf.xlu0
        %v1476 = vpop.trf.xlu0
        %v1477 = vpop.trf.xlu0
        %v1478 = vpop.trf.xlu0
        %v1479 = vpop.trf.xlu0
        %v1480 = vpop.trf.xlu0
        %v1481 = vpop.trf.xlu0
        %v1482 = vpop.trf.xlu0
        %v1484 = vsel %vm832, %v1371, 0
        %1486 = vmatprep.subr.mxu0 0.0
        %1487 = vmatpush1.msra.mxu0 0.0
        %1488 = vmatprep.subr.mxu0 0.0
        %1489 = vmatpush1.msra.mxu0 0.0
        %1490 = vmatprep.subr.mxu0 0.0
        %1491 = vmatpush1.msra.mxu0 0.0
        %1492 = vmatprep.subr.mxu0 0.0
        %1493 = vmatpush1.msra.mxu0 0.0
        %1494 = vmatprep.subr.mxu0 0.0
        %1495 = vmatpush1.msra.mxu0 0.0
        %1496 = vmatprep.subr.mxu0 0.0
        %1497 = vmatpush1.msra.mxu0 0.0
        %1498 = vmatprep.subr.mxu0 0.0
        %1499 = vmatpush1.msra.mxu0 0.0
        %1500 = vmatprep.subr.mxu0 0.0
        %1501 = vmatpush1.msra.mxu0 0.0
        %1502 = vmatprep.subr.mxu0 0.0
        %1503 = vmatpush1.msra.mxu0 0.0
        %1504 = vmatprep.subr.mxu0 0.0
        %1505 = vmatpush1.msra.mxu0 0.0
        %1506 = vmatprep.subr.mxu0 0.0
        %1507 = vmatpush1.msra.mxu0 0.0
        %1508 = vmatprep.subr.mxu0 0.0
        %1509 = vmatpush1.msra.mxu0 0.0
        %1510 = vmatprep.subr.mxu0 0.0
        %1511 = vmatpush1.msra.mxu0 0.0
        %1512 = vmatprep.subr.mxu0 0.0
        %1513 = vmatpush1.msra.mxu0 0.0
        %1514 = vmatprep.subr.mxu0 0.0
        %1515 = vmatpush1.msra.mxu0 0.0
        %1516 = vmatprep.subr.mxu0 0.0
        %1517 = vmatpush1.msra.mxu0 %v468
        %1518 = vmatprep.subr.mxu0 0.0
        %1519 = vmatpush2.msra.mxu0 0.0
        %1520 = vmatprep.subr.mxu0 0.0
        %1521 = vmatpush2.msra.mxu0 0.0
        %1522 = vmatprep.subr.mxu0 0.0
        %1523 = vmatpush2.msra.mxu0 0.0
        %1524 = vmatprep.subr.mxu0 0.0
        %1525 = vmatpush2.msra.mxu0 0.0
        %1526 = vmatprep.subr.mxu0 0.0
        %1527 = vmatpush2.msra.mxu0 0.0
        %1528 = vmatprep.subr.mxu0 0.0
        %1529 = vmatpush2.msra.mxu0 0.0
        %1530 = vmatprep.subr.mxu0 0.0
        %1531 = vmatpush2.msra.mxu0 0.0
        %1532 = vmatprep.subr.mxu0 0.0
        %1533 = vmatpush2.msra.mxu0 0.0
        %1534 = vmatprep.subr.mxu0 0.0
        %1535 = vmatpush2.msra.mxu0 0.0
        %1536 = vmatprep.subr.mxu0 0.0
        %1537 = vmatpush2.msra.mxu0 0.0
        %1538 = vmatprep.subr.mxu0 0.0
        %1539 = vmatpush2.msra.mxu0 0.0
        %1540 = vmatprep.subr.mxu0 0.0
        %1541 = vmatpush2.msra.mxu0 0.0
        %1542 = vmatprep.subr.mxu0 0.0
        %1543 = vmatpush2.msra.mxu0 0.0
        %1544 = vmatprep.subr.mxu0 0.0
        %1545 = vmatpush2.msra.mxu0 0.0
        %1546 = vmatprep.subr.mxu0 0.0
        %1547 = vmatpush2.msra.mxu0 0.0
        %1548 = vmatprep.subr.mxu0 0.0
        %1549 = vmatpush2.msra.mxu0 0.0
        %1550 = vmatprep.mubr.f32.mxu0 0.0
        %1551 = vmatmul.mubr.f32.gmra.mxu0 %v1484
        %v1552 = vpop.f32.mrf.mxu0
        %v1553 = vadd.f32 0.0, %v1552
        %v1554 = vpop.f32.mrf.mxu0
        %1555 = vdwg.mxu0
        %v1557 = vsel %vm832, %v1403, 0
        %1559 = vmatprep.subr.mxu0 0.0
        %1560 = vmatpush1.msra.mxu0 0.0
        %1561 = vmatprep.subr.mxu0 0.0
        %1562 = vmatpush1.msra.mxu0 0.0
        %1563 = vmatprep.subr.mxu0 0.0
        %1564 = vmatpush1.msra.mxu0 0.0
        %1565 = vmatprep.subr.mxu0 0.0
        %1566 = vmatpush1.msra.mxu0 0.0
        %1567 = vmatprep.subr.mxu0 0.0
        %1568 = vmatpush1.msra.mxu0 0.0
        %1569 = vmatprep.subr.mxu0 0.0
        %1570 = vmatpush1.msra.mxu0 0.0
        %1571 = vmatprep.subr.mxu0 0.0
        %1572 = vmatpush1.msra.mxu0 0.0
        %1573 = vmatprep.subr.mxu0 0.0
        %1574 = vmatpush1.msra.mxu0 0.0
        %1575 = vmatprep.subr.mxu0 0.0
        %1576 = vmatpush1.msra.mxu0 0.0
        %1577 = vmatprep.subr.mxu0 0.0
        %1578 = vmatpush1.msra.mxu0 0.0
        %1579 = vmatprep.subr.mxu0 0.0
        %1580 = vmatpush1.msra.mxu0 0.0
        %1581 = vmatprep.subr.mxu0 0.0
        %1582 = vmatpush1.msra.mxu0 0.0
        %1583 = vmatprep.subr.mxu0 0.0
        %1584 = vmatpush1.msra.mxu0 0.0
        %1585 = vmatprep.subr.mxu0 0.0
        %1586 = vmatpush1.msra.mxu0 0.0
        %1587 = vmatprep.subr.mxu0 0.0
        %1588 = vmatpush1.msra.mxu0 0.0
        %1589 = vmatprep.subr.mxu0 0.0
        %1590 = vmatpush1.msra.mxu0 %v469
        %1591 = vmatprep.subr.mxu0 0.0
        %1592 = vmatpush2.msra.mxu0 0.0
        %1593 = vmatprep.subr.mxu0 0.0
        %1594 = vmatpush2.msra.mxu0 0.0
        %1595 = vmatprep.subr.mxu0 0.0
        %1596 = vmatpush2.msra.mxu0 0.0
        %1597 = vmatprep.subr.mxu0 0.0
        %1598 = vmatpush2.msra.mxu0 0.0
        %1599 = vmatprep.subr.mxu0 0.0
        %1600 = vmatpush2.msra.mxu0 0.0
        %1601 = vmatprep.subr.mxu0 0.0
        %1602 = vmatpush2.msra.mxu0 0.0
        %1603 = vmatprep.subr.mxu0 0.0
        %1604 = vmatpush2.msra.mxu0 0.0
        %1605 = vmatprep.subr.mxu0 0.0
        %1606 = vmatpush2.msra.mxu0 0.0
        %1607 = vmatprep.subr.mxu0 0.0
        %1608 = vmatpush2.msra.mxu0 0.0
        %1609 = vmatprep.subr.mxu0 0.0
        %1610 = vmatpush2.msra.mxu0 0.0
        %1611 = vmatprep.subr.mxu0 0.0
        %1612 = vmatpush2.msra.mxu0 0.0
        %1613 = vmatprep.subr.mxu0 0.0
        %1614 = vmatpush2.msra.mxu0 0.0
        %1615 = vmatprep.subr.mxu0 0.0
        %1616 = vmatpush2.msra.mxu0 0.0
        %1617 = vmatprep.subr.mxu0 0.0
        %1618 = vmatpush2.msra.mxu0 0.0
        %1619 = vmatprep.subr.mxu0 0.0
        %1620 = vmatpush2.msra.mxu0 0.0
        %1621 = vmatprep.subr.mxu0 0.0
        %1622 = vmatpush2.msra.mxu0 0.0
        %1623 = vmatprep.mubr.f32.mxu0 0.0
        %1624 = vmatmul.mubr.f32.gmra.mxu0 %v1557
        %v1625 = vpop.f32.mrf.mxu0
        %v1626 = vadd.f32 0.0, %v1625
        %v1627 = vpop.f32.mrf.mxu0
        %1628 = vdwg.mxu0
        %v1630 = vsel %vm832, %v1435, 0
        %1632 = vmatprep.subr.mxu0 0.0
        %1633 = vmatpush1.msra.mxu0 0.0
        %1634 = vmatprep.subr.mxu0 0.0
        %1635 = vmatpush1.msra.mxu0 0.0
        %1636 = vmatprep.subr.mxu0 0.0
        %1637 = vmatpush1.msra.mxu0 0.0
        %1638 = vmatprep.subr.mxu0 0.0
        %1639 = vmatpush1.msra.mxu0 0.0
        %1640 = vmatprep.subr.mxu0 0.0
        %1641 = vmatpush1.msra.mxu0 0.0
        %1642 = vmatprep.subr.mxu0 0.0
        %1643 = vmatpush1.msra.mxu0 0.0
        %1644 = vmatprep.subr.mxu0 0.0
        %1645 = vmatpush1.msra.mxu0 0.0
        %1646 = vmatprep.subr.mxu0 0.0
        %1647 = vmatpush1.msra.mxu0 0.0
        %1648 = vmatprep.subr.mxu0 0.0
        %1649 = vmatpush1.msra.mxu0 0.0
        %1650 = vmatprep.subr.mxu0 0.0
        %1651 = vmatpush1.msra.mxu0 0.0
        %1652 = vmatprep.subr.mxu0 0.0
        %1653 = vmatpush1.msra.mxu0 0.0
        %1654 = vmatprep.subr.mxu0 0.0
        %1655 = vmatpush1.msra.mxu0 0.0
        %1656 = vmatprep.subr.mxu0 0.0
        %1657 = vmatpush1.msra.mxu0 0.0
        %1658 = vmatprep.subr.mxu0 0.0
        %1659 = vmatpush1.msra.mxu0 0.0
        %1660 = vmatprep.subr.mxu0 0.0
        %1661 = vmatpush1.msra.mxu0 0.0
        %1662 = vmatprep.subr.mxu0 0.0
        %1663 = vmatpush1.msra.mxu0 %v470
        %1664 = vmatprep.subr.mxu0 0.0
        %1665 = vmatpush2.msra.mxu0 0.0
        %1666 = vmatprep.subr.mxu0 0.0
        %1667 = vmatpush2.msra.mxu0 0.0
        %1668 = vmatprep.subr.mxu0 0.0
        %1669 = vmatpush2.msra.mxu0 0.0
        %1670 = vmatprep.subr.mxu0 0.0
        %1671 = vmatpush2.msra.mxu0 0.0
        %1672 = vmatprep.subr.mxu0 0.0
        %1673 = vmatpush2.msra.mxu0 0.0
        %1674 = vmatprep.subr.mxu0 0.0
        %1675 = vmatpush2.msra.mxu0 0.0
        %1676 = vmatprep.subr.mxu0 0.0
        %1677 = vmatpush2.msra.mxu0 0.0
        %1678 = vmatprep.subr.mxu0 0.0
        %1679 = vmatpush2.msra.mxu0 0.0
        %1680 = vmatprep.subr.mxu0 0.0
        %1681 = vmatpush2.msra.mxu0 0.0
        %1682 = vmatprep.subr.mxu0 0.0
        %1683 = vmatpush2.msra.mxu0 0.0
        %1684 = vmatprep.subr.mxu0 0.0
        %1685 = vmatpush2.msra.mxu0 0.0
        %1686 = vmatprep.subr.mxu0 0.0
        %1687 = vmatpush2.msra.mxu0 0.0
        %1688 = vmatprep.subr.mxu0 0.0
        %1689 = vmatpush2.msra.mxu0 0.0
        %1690 = vmatprep.subr.mxu0 0.0
        %1691 = vmatpush2.msra.mxu0 0.0
        %1692 = vmatprep.subr.mxu0 0.0
        %1693 = vmatpush2.msra.mxu0 0.0
        %1694 = vmatprep.subr.mxu0 0.0
        %1695 = vmatpush2.msra.mxu0 0.0
        %1696 = vmatprep.mubr.f32.mxu0 0.0
        %1697 = vmatmul.mubr.f32.gmra.mxu0 %v1630
        %v1698 = vpop.f32.mrf.mxu0
        %v1699 = vadd.f32 0.0, %v1698
        %v1700 = vpop.f32.mrf.mxu0
        %1701 = vdwg.mxu0
        %v1703 = vsel %vm832, %v1467, 0
        %1705 = vmatprep.subr.mxu0 0.0
        %1706 = vmatpush1.msra.mxu0 0.0
        %1707 = vmatprep.subr.mxu0 0.0
        %1708 = vmatpush1.msra.mxu0 0.0
        %1709 = vmatprep.subr.mxu0 0.0
        %1710 = vmatpush1.msra.mxu0 0.0
        %1711 = vmatprep.subr.mxu0 0.0
        %1712 = vmatpush1.msra.mxu0 0.0
        %1713 = vmatprep.subr.mxu0 0.0
        %1714 = vmatpush1.msra.mxu0 0.0
        %1715 = vmatprep.subr.mxu0 0.0
        %1716 = vmatpush1.msra.mxu0 0.0
        %1717 = vmatprep.subr.mxu0 0.0
        %1718 = vmatpush1.msra.mxu0 0.0
        %1719 = vmatprep.subr.mxu0 0.0
        %1720 = vmatpush1.msra.mxu0 0.0
        %1721 = vmatprep.subr.mxu0 0.0
        %1722 = vmatpush1.msra.mxu0 0.0
        %1723 = vmatprep.subr.mxu0 0.0
        %1724 = vmatpush1.msra.mxu0 0.0
        %1725 = vmatprep.subr.mxu0 0.0
        %1726 = vmatpush1.msra.mxu0 0.0
        %1727 = vmatprep.subr.mxu0 0.0
        %1728 = vmatpush1.msra.mxu0 0.0
        %1729 = vmatprep.subr.mxu0 0.0
        %1730 = vmatpush1.msra.mxu0 0.0
        %1731 = vmatprep.subr.mxu0 0.0
        %1732 = vmatpush1.msra.mxu0 0.0
        %1733 = vmatprep.subr.mxu0 0.0
        %1734 = vmatpush1.msra.mxu0 0.0
        %1735 = vmatprep.subr.mxu0 0.0
        %1736 = vmatpush1.msra.mxu0 %v471
        %1737 = vmatprep.subr.mxu0 0.0
        %1738 = vmatpush2.msra.mxu0 0.0
        %1739 = vmatprep.subr.mxu0 0.0
        %1740 = vmatpush2.msra.mxu0 0.0
        %1741 = vmatprep.subr.mxu0 0.0
        %1742 = vmatpush2.msra.mxu0 0.0
        %1743 = vmatprep.subr.mxu0 0.0
        %1744 = vmatpush2.msra.mxu0 0.0
        %1745 = vmatprep.subr.mxu0 0.0
        %1746 = vmatpush2.msra.mxu0 0.0
        %1747 = vmatprep.subr.mxu0 0.0
        %1748 = vmatpush2.msra.mxu0 0.0
        %1749 = vmatprep.subr.mxu0 0.0
        %1750 = vmatpush2.msra.mxu0 0.0
        %1751 = vmatprep.subr.mxu0 0.0
        %1752 = vmatpush2.msra.mxu0 0.0
        %1753 = vmatprep.subr.mxu0 0.0
        %1754 = vmatpush2.msra.mxu0 0.0
        %1755 = vmatprep.subr.mxu0 0.0
        %1756 = vmatpush2.msra.mxu0 0.0
        %1757 = vmatprep.subr.mxu0 0.0
        %1758 = vmatpush2.msra.mxu0 0.0
        %1759 = vmatprep.subr.mxu0 0.0
        %1760 = vmatpush2.msra.mxu0 0.0
        %1761 = vmatprep.subr.mxu0 0.0
        %1762 = vmatpush2.msra.mxu0 0.0
        %1763 = vmatprep.subr.mxu0 0.0
        %1764 = vmatpush2.msra.mxu0 0.0
        %1765 = vmatprep.subr.mxu0 0.0
        %1766 = vmatpush2.msra.mxu0 0.0
        %1767 = vmatprep.subr.mxu0 0.0
        %1768 = vmatpush2.msra.mxu0 0.0
        %1769 = vmatprep.mubr.f32.mxu0 0.0
        %1770 = vmatmul.mubr.f32.gmra.mxu0 %v1703
        %v1771 = vpop.f32.mrf.mxu0
        %v1772 = vadd.f32 0.0, %v1771
        %v1773 = vpop.f32.mrf.mxu0
        %1774 = vdwg.mxu0
        %v1775 = vlaneseq
        %v1776 = vshrl.u32 %v1775, 7
        %v1777 = vsub.s32 0, %v1776
        %v1778 = vrot.slane %v903, %v1777
        %v1779 = vlaneseq
        %v1780 = vshrl.u32 %v1779, 7
        %v1781 = vsub.s32 0, %v1780
        %v1782 = vrot.slane %v976, %v1781
        %v1783 = vlaneseq
        %v1784 = vshrl.u32 %v1783, 7
        %v1785 = vsub.s32 0, %v1784
        %v1786 = vrot.slane %v1049, %v1785
        %v1787 = vlaneseq
        %v1788 = vshrl.u32 %v1787, 7
        %v1789 = vsub.s32 0, %v1788
        %v1790 = vrot.slane %v1122, %v1789
        %v1791 = vmul.f32 %v1778, %v1553
        %v1792 = vmul.f32 %v1782, %v1626
        %v1793 = vmul.f32 %v1786, %v1699
        %v1794 = vmul.f32 %v1790, %v1772
        %v1795 = vlaneseq
        %v1796 = vshrl.u32 %v1795, 7
        %v1797 = vsub.s32 1, %v1796
        %v1798 = vrot.slane %v903, %v1797
        %v1799 = vlaneseq
        %v1800 = vshrl.u32 %v1799, 7
        %v1801 = vsub.s32 1, %v1800
        %v1802 = vrot.slane %v976, %v1801
        %v1803 = vlaneseq
        %v1804 = vshrl.u32 %v1803, 7
        %v1805 = vsub.s32 1, %v1804
        %v1806 = vrot.slane %v1049, %v1805
        %v1807 = vlaneseq
        %v1808 = vshrl.u32 %v1807, 7
        %v1809 = vsub.s32 1, %v1808
        %v1810 = vrot.slane %v1122, %v1809
        %v1811 = vmul.f32 %v1798, %v1553
        %v1812 = vmul.f32 %v1802, %v1626
        %v1813 = vmul.f32 %v1806, %v1699
        %v1814 = vmul.f32 %v1810, %v1772
        %v1815 = vlaneseq
        %v1816 = vshrl.u32 %v1815, 7
        %v1817 = vsub.s32 2, %v1816
        %v1818 = vrot.slane %v903, %v1817
        %v1819 = vlaneseq
        %v1820 = vshrl.u32 %v1819, 7
        %v1821 = vsub.s32 2, %v1820
        %v1822 = vrot.slane %v976, %v1821
        %v1823 = vlaneseq
        %v1824 = vshrl.u32 %v1823, 7
        %v1825 = vsub.s32 2, %v1824
        %v1826 = vrot.slane %v1049, %v1825
        %v1827 = vlaneseq
        %v1828 = vshrl.u32 %v1827, 7
        %v1829 = vsub.s32 2, %v1828
        %v1830 = vrot.slane %v1122, %v1829
        %v1831 = vmul.f32 %v1818, %v1553
        %v1832 = vmul.f32 %v1822, %v1626
        %v1833 = vmul.f32 %v1826, %v1699
        %v1834 = vmul.f32 %v1830, %v1772
        %v1835 = vlaneseq
        %v1836 = vshrl.u32 %v1835, 7
        %v1837 = vsub.s32 3, %v1836
        %v1838 = vrot.slane %v903, %v1837
        %v1839 = vlaneseq
        %v1840 = vshrl.u32 %v1839, 7
        %v1841 = vsub.s32 3, %v1840
        %v1842 = vrot.slane %v976, %v1841
        %v1843 = vlaneseq
        %v1844 = vshrl.u32 %v1843, 7
        %v1845 = vsub.s32 3, %v1844
        %v1846 = vrot.slane %v1049, %v1845
        %v1847 = vlaneseq
        %v1848 = vshrl.u32 %v1847, 7
        %v1849 = vsub.s32 3, %v1848
        %v1850 = vrot.slane %v1122, %v1849
        %v1851 = vmul.f32 %v1838, %v1553
        %v1852 = vmul.f32 %v1842, %v1626
        %v1853 = vmul.f32 %v1846, %v1699
        %v1854 = vmul.f32 %v1850, %v1772
        %v1859 = vrot.slane %v1811, 4
        %v1860 = vrot.slane %v1812, 4
        %v1861 = vrot.slane %v1813, 4
        %v1862 = vrot.slane %v1814, 4
        %v1871 = vrot.slane %v1851, 4
        %v1872 = vrot.slane %v1852, 4
        %v1873 = vrot.slane %v1853, 4
        %v1874 = vrot.slane %v1854, 4
        %vm1879 = vcmask 1043456
        %v1880 = vsel %vm1879, %v1791, %v1859
        %v1881 = vsel %vm1879, %v1792, %v1860
        %v1882 = vsel %vm1879, %v1793, %v1861
        %v1883 = vsel %vm1879, %v1794, %v1862
        %v1884 = vsel %vm1879, %v1831, %v1871
        %v1885 = vsel %vm1879, %v1832, %v1872
        %v1886 = vsel %vm1879, %v1833, %v1873
        %v1887 = vsel %vm1879, %v1834, %v1874
        %v1888 = vld [vmem:[%s4 + $0x18] sm:$0xff]
        %v1889 = vld [vmem:[%s4 + $0x38] sm:$0xff]
        %v1890 = vld [vmem:[%s4 + $0x58] sm:$0xff]
        %v1891 = vld [vmem:[%s4 + $0x78] sm:$0xff]
        %v1892 = vld [vmem:[%s5 + $0x3] sm:$0x1]
        %v1894 = vlaneseq
        %v1895 = vshrl.u32 %v1894, 7
        %v1896 = vsub.s32 0, %v1895
        %v1897 = vrot.slane %v1892, %v1896
        %v1900 = vsel %vm505, %v1880, 0
        %v1903 = vsel %vm505, %v1884, 0
        %v1906 = vsel %vm505, %v1881, 0
        %v1909 = vsel %vm505, %v1885, 0
        %v1912 = vsel %vm505, %v1882, 0
        %v1915 = vsel %vm505, %v1886, 0
        %v1918 = vsel %vm505, %v1883, 0
        %v1921 = vsel %vm505, %v1887, 0
        %1923 = vmatprep.subr.mxu0 0.0
        %1924 = vmatpush1.msra.mxu0 0.0
        %1925 = vmatprep.subr.mxu0 0.0
        %1926 = vmatpush1.msra.mxu0 0.0
        %1927 = vmatprep.subr.mxu0 0.0
        %1928 = vmatpush1.msra.mxu0 0.0
        %1929 = vmatprep.subr.mxu0 0.0
        %1930 = vmatpush1.msra.mxu0 0.0
        %1931 = vmatprep.subr.mxu0 0.0
        %1932 = vmatpush1.msra.mxu0 0.0
        %1933 = vmatprep.subr.mxu0 0.0
        %1934 = vmatpush1.msra.mxu0 0.0
        %1935 = vmatprep.subr.mxu0 0.0
        %1936 = vmatpush1.msra.mxu0 0.0
        %1937 = vmatprep.subr.mxu0 0.0
        %1938 = vmatpush1.msra.mxu0 0.0
        %1939 = vmatprep.subr.mxu0 0.0
        %1940 = vmatpush1.msra.mxu0 0.0
        %1941 = vmatprep.subr.mxu0 0.0
        %1942 = vmatpush1.msra.mxu0 0.0
        %1943 = vmatprep.subr.mxu0 0.0
        %1944 = vmatpush1.msra.mxu0 0.0
        %1945 = vmatprep.subr.mxu0 0.0
        %1946 = vmatpush1.msra.mxu0 0.0
        %1947 = vmatprep.subr.mxu0 0.0
        %1948 = vmatpush1.msra.mxu0 %v1891
        %1949 = vmatprep.subr.mxu0 0.0
        %1950 = vmatpush1.msra.mxu0 %v1890
        %1951 = vmatprep.subr.mxu0 0.0
        %1952 = vmatpush1.msra.mxu0 %v1889
        %1953 = vmatprep.subr.mxu0 0.0
        %1954 = vmatpush1.msra.mxu0 %v1888
        %1955 = vmatprep.subr.mxu0 0.0
        %1956 = vmatpush2.msra.mxu0 0.0
        %1957 = vmatprep.subr.mxu0 0.0
        %1958 = vmatpush2.msra.mxu0 0.0
        %1959 = vmatprep.subr.mxu0 0.0
        %1960 = vmatpush2.msra.mxu0 0.0
        %1961 = vmatprep.subr.mxu0 0.0
        %1962 = vmatpush2.msra.mxu0 0.0
        %1963 = vmatprep.subr.mxu0 0.0
        %1964 = vmatpush2.msra.mxu0 0.0
        %1965 = vmatprep.subr.mxu0 0.0
        %1966 = vmatpush2.msra.mxu0 0.0
        %1967 = vmatprep.subr.mxu0 0.0
        %1968 = vmatpush2.msra.mxu0 0.0
        %1969 = vmatprep.subr.mxu0 0.0
        %1970 = vmatpush2.msra.mxu0 0.0
        %1971 = vmatprep.subr.mxu0 0.0
        %1972 = vmatpush2.msra.mxu0 0.0
        %1973 = vmatprep.subr.mxu0 0.0
        %1974 = vmatpush2.msra.mxu0 0.0
        %1975 = vmatprep.subr.mxu0 0.0
        %1976 = vmatpush2.msra.mxu0 0.0
        %1977 = vmatprep.subr.mxu0 0.0
        %1978 = vmatpush2.msra.mxu0 0.0
        %1979 = vmatprep.subr.mxu0 0.0
        %1980 = vmatpush2.msra.mxu0 0.0
        %1981 = vmatprep.subr.mxu0 0.0
        %1982 = vmatpush2.msra.mxu0 0.0
        %1983 = vmatprep.subr.mxu0 0.0
        %1984 = vmatpush2.msra.mxu0 0.0
        %1985 = vmatprep.subr.mxu0 0.0
        %1986 = vmatpush2.msra.mxu0 0.0
        %1987 = vmatprep.mubr.f32.mxu0 0.0
        %1988 = vmatmul.mubr.f32.gmra.mxu0 %v1900
        %v1989 = vpop.f32.mrf.mxu0
        %v1990 = vadd.f32 %v1897, %v1989
        %v1991 = vpop.f32.mrf.mxu0
        %1992 = vmatprep.mubr.f32.mxu0 0.0
        %1993 = vmatmul.mubr.f32.gmra.mxu0 %v1903
        %v1994 = vpop.f32.mrf.mxu0
        %v1995 = vadd.f32 %v1897, %v1994
        %v1996 = vpop.f32.mrf.mxu0
        %1997 = vmatprep.mubr.f32.mxu0 0.0
        %1998 = vmatmul.mubr.f32.gmra.mxu0 %v1906
        %v1999 = vpop.f32.mrf.mxu0
        %v2000 = vadd.f32 %v1897, %v1999
        %v2001 = vpop.f32.mrf.mxu0
        %2002 = vmatprep.mubr.f32.mxu0 0.0
        %2003 = vmatmul.mubr.f32.gmra.mxu0 %v1909
        %v2004 = vpop.f32.mrf.mxu0
        %v2005 = vadd.f32 %v1897, %v2004
        %v2006 = vpop.f32.mrf.mxu0
        %2007 = vmatprep.mubr.f32.mxu0 0.0
        %2008 = vmatmul.mubr.f32.gmra.mxu0 %v1912
        %v2009 = vpop.f32.mrf.mxu0
        %v2010 = vadd.f32 %v1897, %v2009
        %v2011 = vpop.f32.mrf.mxu0
        %2012 = vmatprep.mubr.f32.mxu0 0.0
        %2013 = vmatmul.mubr.f32.gmra.mxu0 %v1915
        %v2014 = vpop.f32.mrf.mxu0
        %v2015 = vadd.f32 %v1897, %v2014
        %v2016 = vpop.f32.mrf.mxu0
        %2017 = vmatprep.mubr.f32.mxu0 0.0
        %2018 = vmatmul.mubr.f32.gmra.mxu0 %v1918
        %v2019 = vpop.f32.mrf.mxu0
        %v2020 = vadd.f32 %v1897, %v2019
        %v2021 = vpop.f32.mrf.mxu0
        %2022 = vmatprep.mubr.f32.mxu0 0.0
        %2023 = vmatmul.mubr.f32.gmra.mxu0 %v1921
        %v2024 = vpop.f32.mrf.mxu0
        %v2025 = vadd.f32 %v1897, %v2024
        %v2026 = vpop.f32.mrf.mxu0
        %2027 = vdwg.mxu0
        %2032 = vrot.lane.b32.xlu0 %v1888, 96
        %v2033 = vpop.permute.xlu0 %2032
        %2034 = vrot.lane.b32.xlu0 %v1889, 96
        %v2035 = vpop.permute.xlu0 %2034
        %2036 = vrot.lane.b32.xlu0 %v1890, 96
        %v2037 = vpop.permute.xlu0 %2036
        %2038 = vrot.lane.b32.xlu0 %v1891, 96
        %v2039 = vpop.permute.xlu0 %2038
        %v2045 = vsel %vm505, %v1990, 0
        %v2048 = vsel %vm505, %v1995, 0
        %v2051 = vsel %vm505, %v2000, 0
        %v2054 = vsel %vm505, %v2005, 0
        %v2057 = vsel %vm505, %v2010, 0
        %v2060 = vsel %vm505, %v2015, 0
        %v2063 = vsel %vm505, %v2020, 0
        %v2066 = vsel %vm505, %v2025, 0
        %2068 = vmatprep.subr.mxu0 0.0
        %2069 = vmatpush1.msra.mxu0 0.0
        %2070 = vmatprep.subr.mxu0 0.0
        %2071 = vmatpush1.msra.mxu0 0.0
        %2072 = vmatprep.subr.mxu0 0.0
        %2073 = vmatpush1.msra.mxu0 0.0
        %2074 = vmatprep.subr.mxu0 0.0
        %2075 = vmatpush1.msra.mxu0 0.0
        %2076 = vmatprep.subr.mxu0 0.0
        %2077 = vmatpush1.msra.mxu0 0.0
        %2078 = vmatprep.subr.mxu0 0.0
        %2079 = vmatpush1.msra.mxu0 0.0
        %2080 = vmatprep.subr.mxu0 0.0
        %2081 = vmatpush1.msra.mxu0 0.0
        %2082 = vmatprep.subr.mxu0 0.0
        %2083 = vmatpush1.msra.mxu0 0.0
        %2084 = vmatprep.subr.mxu0 0.0
        %2085 = vmatpush1.msra.mxu0 0.0
        %2086 = vmatprep.subr.mxu0 0.0
        %2087 = vmatpush1.msra.mxu0 0.0
        %2088 = vmatprep.subr.mxu0 0.0
        %2089 = vmatpush1.msra.mxu0 0.0
        %2090 = vmatprep.subr.mxu0 0.0
        %2091 = vmatpush1.msra.mxu0 0.0
        %2092 = vmatprep.subr.mxu0 0.0
        %2093 = vmatpush1.msra.mxu0 %v2039
        %2094 = vmatprep.subr.mxu0 0.0
        %2095 = vmatpush1.msra.mxu0 %v2037
        %2096 = vmatprep.subr.mxu0 0.0
        %2097 = vmatpush1.msra.mxu0 %v2035
        %2098 = vmatprep.subr.mxu0 0.0
        %2099 = vmatpush1.msra.mxu0 %v2033
        %2100 = vmatprep.subr.mxu0 0.0
        %2101 = vmatpush2.msra.mxu0 0.0
        %2102 = vmatprep.subr.mxu0 0.0
        %2103 = vmatpush2.msra.mxu0 0.0
        %2104 = vmatprep.subr.mxu0 0.0
        %2105 = vmatpush2.msra.mxu0 0.0
        %2106 = vmatprep.subr.mxu0 0.0
        %2107 = vmatpush2.msra.mxu0 0.0
        %2108 = vmatprep.subr.mxu0 0.0
        %2109 = vmatpush2.msra.mxu0 0.0
        %2110 = vmatprep.subr.mxu0 0.0
        %2111 = vmatpush2.msra.mxu0 0.0
        %2112 = vmatprep.subr.mxu0 0.0
        %2113 = vmatpush2.msra.mxu0 0.0
        %2114 = vmatprep.subr.mxu0 0.0
        %2115 = vmatpush2.msra.mxu0 0.0
        %2116 = vmatprep.subr.mxu0 0.0
        %2117 = vmatpush2.msra.mxu0 0.0
        %2118 = vmatprep.subr.mxu0 0.0
        %2119 = vmatpush2.msra.mxu0 0.0
        %2120 = vmatprep.subr.mxu0 0.0
        %2121 = vmatpush2.msra.mxu0 0.0
        %2122 = vmatprep.subr.mxu0 0.0
        %2123 = vmatpush2.msra.mxu0 0.0
        %2124 = vmatprep.subr.mxu0 0.0
        %2125 = vmatpush2.msra.mxu0 0.0
        %2126 = vmatprep.subr.mxu0 0.0
        %2127 = vmatpush2.msra.mxu0 0.0
        %2128 = vmatprep.subr.mxu0 0.0
        %2129 = vmatpush2.msra.mxu0 0.0
        %2130 = vmatprep.subr.mxu0 0.0
        %2131 = vmatpush2.msra.mxu0 0.0
        %2132 = vmatprep.mubr.f32.mxu0 0.0
        %2133 = vmatmul.mubr.f32.gmra.mxu0 %v2045
        %v2134 = vpop.f32.mrf.mxu0
        %v2135 = vadd.f32 0.0, %v2134
        %v2136 = vpop.f32.mrf.mxu0
        %2137 = vmatprep.mubr.f32.mxu0 0.0
        %2138 = vmatmul.mubr.f32.gmra.mxu0 %v2048
        %v2139 = vpop.f32.mrf.mxu0
        %v2140 = vadd.f32 0.0, %v2139
        %v2141 = vpop.f32.mrf.mxu0
        %2142 = vmatprep.mubr.f32.mxu0 0.0
        %2143 = vmatmul.mubr.f32.gmra.mxu0 %v2051
        %v2144 = vpop.f32.mrf.mxu0
        %v2145 = vadd.f32 0.0, %v2144
        %v2146 = vpop.f32.mrf.mxu0
        %2147 = vmatprep.mubr.f32.mxu0 0.0
        %2148 = vmatmul.mubr.f32.gmra.mxu0 %v2054
        %v2149 = vpop.f32.mrf.mxu0
        %v2150 = vadd.f32 0.0, %v2149
        %v2151 = vpop.f32.mrf.mxu0
        %2152 = vmatprep.mubr.f32.mxu0 0.0
        %2153 = vmatmul.mubr.f32.gmra.mxu0 %v2057
        %v2154 = vpop.f32.mrf.mxu0
        %v2155 = vadd.f32 0.0, %v2154
        %v2156 = vpop.f32.mrf.mxu0
        %2157 = vmatprep.mubr.f32.mxu0 0.0
        %2158 = vmatmul.mubr.f32.gmra.mxu0 %v2060
        %v2159 = vpop.f32.mrf.mxu0
        %v2160 = vadd.f32 0.0, %v2159
        %v2161 = vpop.f32.mrf.mxu0
        %2162 = vmatprep.mubr.f32.mxu0 0.0
        %2163 = vmatmul.mubr.f32.gmra.mxu0 %v2063
        %v2164 = vpop.f32.mrf.mxu0
        %v2165 = vadd.f32 0.0, %v2164
        %v2166 = vpop.f32.mrf.mxu0
        %2167 = vmatprep.mubr.f32.mxu0 0.0
        %2168 = vmatmul.mubr.f32.gmra.mxu0 %v2066
        %v2169 = vpop.f32.mrf.mxu0
        %v2170 = vadd.f32 0.0, %v2169
        %v2171 = vpop.f32.mrf.mxu0
        %2172 = vdwg.mxu0
        %v2173 = vld [vmem:[%s6] sm:$0xff]
        %v2174 = vld [vmem:[%s6 + $0x8] sm:$0xff]
        %vm2175 = vcmask 130048
        %v2177 = vsel %vm2175, %v2173, 0
        %v2180 = vsel %vm2175, %v2174, 0
        %2182 = vmatprep.subr.mxu0 0.0
        %2183 = vmatpush1.msra.mxu0 0.0
        %2184 = vmatprep.subr.mxu0 0.0
        %2185 = vmatpush1.msra.mxu0 0.0
        %2186 = vmatprep.subr.mxu0 0.0
        %2187 = vmatpush1.msra.mxu0 0.0
        %2188 = vmatprep.subr.mxu0 0.0
        %2189 = vmatpush1.msra.mxu0 0.0
        %2190 = vmatprep.subr.mxu0 0.0
        %2191 = vmatpush1.msra.mxu0 0.0
        %2192 = vmatprep.subr.mxu0 0.0
        %2193 = vmatpush1.msra.mxu0 0.0
        %2194 = vmatprep.subr.mxu0 0.0
        %2195 = vmatpush1.msra.mxu0 0.0
        %2196 = vmatprep.subr.mxu0 0.0
        %2197 = vmatpush1.msra.mxu0 0.0
        %2198 = vmatprep.subr.mxu0 0.0
        %2199 = vmatpush1.msra.mxu0 0.0
        %2200 = vmatprep.subr.mxu0 0.0
        %2201 = vmatpush1.msra.mxu0 0.0
        %2202 = vmatprep.subr.mxu0 0.0
        %2203 = vmatpush1.msra.mxu0 0.0
        %2204 = vmatprep.subr.mxu0 0.0
        %2205 = vmatpush1.msra.mxu0 0.0
        %2206 = vmatprep.subr.mxu0 0.0
        %2207 = vmatpush1.msra.mxu0 0.0
        %2208 = vmatprep.subr.mxu0 0.0
        %2209 = vmatpush1.msra.mxu0 0.0
        %2210 = vmatprep.subr.mxu0 0.0
        %2211 = vmatpush1.msra.mxu0 %v1995
        %2212 = vmatprep.subr.mxu0 0.0
        %2213 = vmatpush1.msra.mxu0 %v1990
        %2214 = vmatprep.subr.mxu0 0.0
        %2215 = vmatpush2.msra.mxu0 0.0
        %2216 = vmatprep.subr.mxu0 0.0
        %2217 = vmatpush2.msra.mxu0 0.0
        %2218 = vmatprep.subr.mxu0 0.0
        %2219 = vmatpush2.msra.mxu0 0.0
        %2220 = vmatprep.subr.mxu0 0.0
        %2221 = vmatpush2.msra.mxu0 0.0
        %2222 = vmatprep.subr.mxu0 0.0
        %2223 = vmatpush2.msra.mxu0 0.0
        %2224 = vmatprep.subr.mxu0 0.0
        %2225 = vmatpush2.msra.mxu0 0.0
        %2226 = vmatprep.subr.mxu0 0.0
        %2227 = vmatpush2.msra.mxu0 0.0
        %2228 = vmatprep.subr.mxu0 0.0
        %2229 = vmatpush2.msra.mxu0 0.0
        %2230 = vmatprep.subr.mxu0 0.0
        %2231 = vmatpush2.msra.mxu0 0.0
        %2232 = vmatprep.subr.mxu0 0.0
        %2233 = vmatpush2.msra.mxu0 0.0
        %2234 = vmatprep.subr.mxu0 0.0
        %2235 = vmatpush2.msra.mxu0 0.0
        %2236 = vmatprep.subr.mxu0 0.0
        %2237 = vmatpush2.msra.mxu0 0.0
        %2238 = vmatprep.subr.mxu0 0.0
        %2239 = vmatpush2.msra.mxu0 0.0
        %2240 = vmatprep.subr.mxu0 0.0
        %2241 = vmatpush2.msra.mxu0 0.0
        %2242 = vmatprep.subr.mxu0 0.0
        %2243 = vmatpush2.msra.mxu0 0.0
        %2244 = vmatprep.subr.mxu0 0.0
        %2245 = vmatpush2.msra.mxu0 0.0
        %2246 = vmatprep.mubr.f32.mxu0 0.0
        %2247 = vmatmul.mubr.f32.gmra.mxu0 %v2177
        %v2248 = vpop.f32.mrf.mxu0
        %v2249 = vadd.f32 0.0, %v2248
        %v2250 = vpop.f32.mrf.mxu0
        %2251 = vmatprep.mubr.f32.mxu0 0.0
        %2252 = vmatmul.mubr.f32.gmra.mxu0 %v2180
        %v2253 = vpop.f32.mrf.mxu0
        %v2254 = vadd.f32 0.0, %v2253
        %v2255 = vpop.f32.mrf.mxu0
        %2256 = vdwg.mxu0
        %2257 = vmatprep.subr.mxu0 0.0
        %2258 = vmatpush1.msra.mxu0 0.0
        %2259 = vmatprep.subr.mxu0 0.0
        %2260 = vmatpush1.msra.mxu0 0.0
        %2261 = vmatprep.subr.mxu0 0.0
        %2262 = vmatpush1.msra.mxu0 0.0
        %2263 = vmatprep.subr.mxu0 0.0
        %2264 = vmatpush1.msra.mxu0 0.0
        %2265 = vmatprep.subr.mxu0 0.0
        %2266 = vmatpush1.msra.mxu0 0.0
        %2267 = vmatprep.subr.mxu0 0.0
        %2268 = vmatpush1.msra.mxu0 0.0
        %2269 = vmatprep.subr.mxu0 0.0
        %2270 = vmatpush1.msra.mxu0 0.0
        %2271 = vmatprep.subr.mxu0 0.0
        %2272 = vmatpush1.msra.mxu0 0.0
        %2273 = vmatprep.subr.mxu0 0.0
        %2274 = vmatpush1.msra.mxu0 0.0
        %2275 = vmatprep.subr.mxu0 0.0
        %2276 = vmatpush1.msra.mxu0 0.0
        %2277 = vmatprep.subr.mxu0 0.0
        %2278 = vmatpush1.msra.mxu0 0.0
        %2279 = vmatprep.subr.mxu0 0.0
        %2280 = vmatpush1.msra.mxu0 0.0
        %2281 = vmatprep.subr.mxu0 0.0
        %2282 = vmatpush1.msra.mxu0 0.0
        %2283 = vmatprep.subr.mxu0 0.0
        %2284 = vmatpush1.msra.mxu0 0.0
        %2285 = vmatprep.subr.mxu0 0.0
        %2286 = vmatpush1.msra.mxu0 %v2005
        %2287 = vmatprep.subr.mxu0 0.0
        %2288 = vmatpush1.msra.mxu0 %v2000
        %2289 = vmatprep.subr.mxu0 0.0
        %2290 = vmatpush2.msra.mxu0 0.0
        %2291 = vmatprep.subr.mxu0 0.0
        %2292 = vmatpush2.msra.mxu0 0.0
        %2293 = vmatprep.subr.mxu0 0.0
        %2294 = vmatpush2.msra.mxu0 0.0
        %2295 = vmatprep.subr.mxu0 0.0
        %2296 = vmatpush2.msra.mxu0 0.0
        %2297 = vmatprep.subr.mxu0 0.0
        %2298 = vmatpush2.msra.mxu0 0.0
        %2299 = vmatprep.subr.mxu0 0.0
        %2300 = vmatpush2.msra.mxu0 0.0
        %2301 = vmatprep.subr.mxu0 0.0
        %2302 = vmatpush2.msra.mxu0 0.0
        %2303 = vmatprep.subr.mxu0 0.0
        %2304 = vmatpush2.msra.mxu0 0.0
        %2305 = vmatprep.subr.mxu0 0.0
        %2306 = vmatpush2.msra.mxu0 0.0
        %2307 = vmatprep.subr.mxu0 0.0
        %2308 = vmatpush2.msra.mxu0 0.0
        %2309 = vmatprep.subr.mxu0 0.0
        %2310 = vmatpush2.msra.mxu0 0.0
        %2311 = vmatprep.subr.mxu0 0.0
        %2312 = vmatpush2.msra.mxu0 0.0
        %2313 = vmatprep.subr.mxu0 0.0
        %2314 = vmatpush2.msra.mxu0 0.0
        %2315 = vmatprep.subr.mxu0 0.0
        %2316 = vmatpush2.msra.mxu0 0.0
        %2317 = vmatprep.subr.mxu0 0.0
        %2318 = vmatpush2.msra.mxu0 0.0
        %2319 = vmatprep.subr.mxu0 0.0
        %2320 = vmatpush2.msra.mxu0 0.0
        %2321 = vmatprep.mubr.f32.mxu0 0.0
        %2322 = vmatmul.mubr.f32.gmra.mxu0 %v2177
        %v2323 = vpop.f32.mrf.mxu0
        %v2324 = vadd.f32 0.0, %v2323
        %v2325 = vpop.f32.mrf.mxu0
        %2326 = vmatprep.mubr.f32.mxu0 0.0
        %2327 = vmatmul.mubr.f32.gmra.mxu0 %v2180
        %v2328 = vpop.f32.mrf.mxu0
        %v2329 = vadd.f32 0.0, %v2328
        %v2330 = vpop.f32.mrf.mxu0
        %2331 = vdwg.mxu0
        %2332 = vmatprep.subr.mxu0 0.0
        %2333 = vmatpush1.msra.mxu0 0.0
        %2334 = vmatprep.subr.mxu0 0.0
        %2335 = vmatpush1.msra.mxu0 0.0
        %2336 = vmatprep.subr.mxu0 0.0
        %2337 = vmatpush1.msra.mxu0 0.0
        %2338 = vmatprep.subr.mxu0 0.0
        %2339 = vmatpush1.msra.mxu0 0.0
        %2340 = vmatprep.subr.mxu0 0.0
        %2341 = vmatpush1.msra.mxu0 0.0
        %2342 = vmatprep.subr.mxu0 0.0
        %2343 = vmatpush1.msra.mxu0 0.0
        %2344 = vmatprep.subr.mxu0 0.0
        %2345 = vmatpush1.msra.mxu0 0.0
        %2346 = vmatprep.subr.mxu0 0.0
        %2347 = vmatpush1.msra.mxu0 0.0
        %2348 = vmatprep.subr.mxu0 0.0
        %2349 = vmatpush1.msra.mxu0 0.0
        %2350 = vmatprep.subr.mxu0 0.0
        %2351 = vmatpush1.msra.mxu0 0.0
        %2352 = vmatprep.subr.mxu0 0.0
        %2353 = vmatpush1.msra.mxu0 0.0
        %2354 = vmatprep.subr.mxu0 0.0
        %2355 = vmatpush1.msra.mxu0 0.0
        %2356 = vmatprep.subr.mxu0 0.0
        %2357 = vmatpush1.msra.mxu0 0.0
        %2358 = vmatprep.subr.mxu0 0.0
        %2359 = vmatpush1.msra.mxu0 0.0
        %2360 = vmatprep.subr.mxu0 0.0
        %2361 = vmatpush1.msra.mxu0 %v2015
        %2362 = vmatprep.subr.mxu0 0.0
        %2363 = vmatpush1.msra.mxu0 %v2010
        %2364 = vmatprep.subr.mxu0 0.0
        %2365 = vmatpush2.msra.mxu0 0.0
        %2366 = vmatprep.subr.mxu0 0.0
        %2367 = vmatpush2.msra.mxu0 0.0
        %2368 = vmatprep.subr.mxu0 0.0
        %2369 = vmatpush2.msra.mxu0 0.0
        %2370 = vmatprep.subr.mxu0 0.0
        %2371 = vmatpush2.msra.mxu0 0.0
        %2372 = vmatprep.subr.mxu0 0.0
        %2373 = vmatpush2.msra.mxu0 0.0
        %2374 = vmatprep.subr.mxu0 0.0
        %2375 = vmatpush2.msra.mxu0 0.0
        %2376 = vmatprep.subr.mxu0 0.0
        %2377 = vmatpush2.msra.mxu0 0.0
        %2378 = vmatprep.subr.mxu0 0.0
        %2379 = vmatpush2.msra.mxu0 0.0
        %2380 = vmatprep.subr.mxu0 0.0
        %2381 = vmatpush2.msra.mxu0 0.0
        %2382 = vmatprep.subr.mxu0 0.0
        %2383 = vmatpush2.msra.mxu0 0.0
        %2384 = vmatprep.subr.mxu0 0.0
        %2385 = vmatpush2.msra.mxu0 0.0
        %2386 = vmatprep.subr.mxu0 0.0
        %2387 = vmatpush2.msra.mxu0 0.0
        %2388 = vmatprep.subr.mxu0 0.0
        %2389 = vmatpush2.msra.mxu0 0.0
        %2390 = vmatprep.subr.mxu0 0.0
        %2391 = vmatpush2.msra.mxu0 0.0
        %2392 = vmatprep.subr.mxu0 0.0
        %2393 = vmatpush2.msra.mxu0 0.0
        %2394 = vmatprep.subr.mxu0 0.0
        %2395 = vmatpush2.msra.mxu0 0.0
        %2396 = vmatprep.mubr.f32.mxu0 0.0
        %2397 = vmatmul.mubr.f32.gmra.mxu0 %v2177
        %v2398 = vpop.f32.mrf.mxu0
        %v2399 = vadd.f32 0.0, %v2398
        %v2400 = vpop.f32.mrf.mxu0
        %2401 = vmatprep.mubr.f32.mxu0 0.0
        %2402 = vmatmul.mubr.f32.gmra.mxu0 %v2180
        %v2403 = vpop.f32.mrf.mxu0
        %v2404 = vadd.f32 0.0, %v2403
        %v2405 = vpop.f32.mrf.mxu0
        %2406 = vdwg.mxu0
        %2407 = vmatprep.subr.mxu0 0.0
        %2408 = vmatpush1.msra.mxu0 0.0
        %2409 = vmatprep.subr.mxu0 0.0
        %2410 = vmatpush1.msra.mxu0 0.0
        %2411 = vmatprep.subr.mxu0 0.0
        %2412 = vmatpush1.msra.mxu0 0.0
        %2413 = vmatprep.subr.mxu0 0.0
        %2414 = vmatpush1.msra.mxu0 0.0
        %2415 = vmatprep.subr.mxu0 0.0
        %2416 = vmatpush1.msra.mxu0 0.0
        %2417 = vmatprep.subr.mxu0 0.0
        %2418 = vmatpush1.msra.mxu0 0.0
        %2419 = vmatprep.subr.mxu0 0.0
        %2420 = vmatpush1.msra.mxu0 0.0
        %2421 = vmatprep.subr.mxu0 0.0
        %2422 = vmatpush1.msra.mxu0 0.0
        %2423 = vmatprep.subr.mxu0 0.0
        %2424 = vmatpush1.msra.mxu0 0.0
        %2425 = vmatprep.subr.mxu0 0.0
        %2426 = vmatpush1.msra.mxu0 0.0
        %2427 = vmatprep.subr.mxu0 0.0
        %2428 = vmatpush1.msra.mxu0 0.0
        %2429 = vmatprep.subr.mxu0 0.0
        %2430 = vmatpush1.msra.mxu0 0.0
        %2431 = vmatprep.subr.mxu0 0.0
        %2432 = vmatpush1.msra.mxu0 0.0
        %2433 = vmatprep.subr.mxu0 0.0
        %2434 = vmatpush1.msra.mxu0 0.0
        %2435 = vmatprep.subr.mxu0 0.0
        %2436 = vmatpush1.msra.mxu0 %v2025
        %2437 = vmatprep.subr.mxu0 0.0
        %2438 = vmatpush1.msra.mxu0 %v2020
        %2439 = vmatprep.subr.mxu0 0.0
        %2440 = vmatpush2.msra.mxu0 0.0
        %2441 = vmatprep.subr.mxu0 0.0
        %2442 = vmatpush2.msra.mxu0 0.0
        %2443 = vmatprep.subr.mxu0 0.0
        %2444 = vmatpush2.msra.mxu0 0.0
        %2445 = vmatprep.subr.mxu0 0.0
        %2446 = vmatpush2.msra.mxu0 0.0
        %2447 = vmatprep.subr.mxu0 0.0
        %2448 = vmatpush2.msra.mxu0 0.0
        %2449 = vmatprep.subr.mxu0 0.0
        %2450 = vmatpush2.msra.mxu0 0.0
        %2451 = vmatprep.subr.mxu0 0.0
        %2452 = vmatpush2.msra.mxu0 0.0
        %2453 = vmatprep.subr.mxu0 0.0
        %2454 = vmatpush2.msra.mxu0 0.0
        %2455 = vmatprep.subr.mxu0 0.0
        %2456 = vmatpush2.msra.mxu0 0.0
        %2457 = vmatprep.subr.mxu0 0.0
        %2458 = vmatpush2.msra.mxu0 0.0
        %2459 = vmatprep.subr.mxu0 0.0
        %2460 = vmatpush2.msra.mxu0 0.0
        %2461 = vmatprep.subr.mxu0 0.0
        %2462 = vmatpush2.msra.mxu0 0.0
        %2463 = vmatprep.subr.mxu0 0.0
        %2464 = vmatpush2.msra.mxu0 0.0
        %2465 = vmatprep.subr.mxu0 0.0
        %2466 = vmatpush2.msra.mxu0 0.0
        %2467 = vmatprep.subr.mxu0 0.0
        %2468 = vmatpush2.msra.mxu0 0.0
        %2469 = vmatprep.subr.mxu0 0.0
        %2470 = vmatpush2.msra.mxu0 0.0
        %2471 = vmatprep.mubr.f32.mxu0 0.0
        %2472 = vmatmul.mubr.f32.gmra.mxu0 %v2177
        %v2473 = vpop.f32.mrf.mxu0
        %v2474 = vadd.f32 0.0, %v2473
        %v2475 = vpop.f32.mrf.mxu0
        %2476 = vmatprep.mubr.f32.mxu0 0.0
        %2477 = vmatmul.mubr.f32.gmra.mxu0 %v2180
        %v2478 = vpop.f32.mrf.mxu0
        %v2479 = vadd.f32 0.0, %v2478
        %v2480 = vpop.f32.mrf.mxu0
        %2481 = vdwg.mxu0
        %v2482 = vadd.f32 %v2135, %v2249
        %v2483 = vadd.f32 %v2140, %v2254
        %v2484 = vadd.f32 %v2145, %v2324
        %v2485 = vadd.f32 %v2150, %v2329
        %v2486 = vadd.f32 %v2155, %v2399
        %v2487 = vadd.f32 %v2160, %v2404
        %v2488 = vadd.f32 %v2165, %v2474
        %v2489 = vadd.f32 %v2170, %v2479
        %v2490 = vld [vmem:[#allocation7] sm:$0xff]
        %v2491 = vld [vmem:[#allocation7 + $0x8] sm:$0xff]
        %v2492 = vadd.f32 %v2482, %v2490
        %v2493 = vadd.f32 %v2483, %v2491
        %v2494 = vadd.f32 %v2484, %v2490
        %v2495 = vadd.f32 %v2485, %v2491
        %v2496 = vadd.f32 %v2486, %v2490
        %v2497 = vadd.f32 %v2487, %v2491
        %v2498 = vadd.f32 %v2488, %v2490
        %v2499 = vadd.f32 %v2489, %v2491
        %v2500 = vld [vmem:[%s4 + $0x10] sm:$0xff]
        %v2501 = vld [vmem:[%s4 + $0x30] sm:$0xff]
        %v2502 = vld [vmem:[%s4 + $0x50] sm:$0xff]
        %v2503 = vld [vmem:[%s4 + $0x70] sm:$0xff]
        %v2504 = vld [vmem:[%s5 + $0x2] sm:$0x1]
        %v2506 = vlaneseq
        %v2507 = vshrl.u32 %v2506, 7
        %v2508 = vsub.s32 0, %v2507
        %v2509 = vrot.slane %v2504, %v2508
        %v2512 = vsel %vm505, %v2492, 0
        %v2515 = vsel %vm505, %v2493, 0
        %v2518 = vsel %vm505, %v2494, 0
        %v2521 = vsel %vm505, %v2495, 0
        %v2524 = vsel %vm505, %v2496, 0
        %v2527 = vsel %vm505, %v2497, 0
        %v2530 = vsel %vm505, %v2498, 0
        %v2533 = vsel %vm505, %v2499, 0
        %2535 = vmatprep.subr.mxu0 0.0
        %2536 = vmatpush1.msra.mxu0 0.0
        %2537 = vmatprep.subr.mxu0 0.0
        %2538 = vmatpush1.msra.mxu0 0.0
        %2539 = vmatprep.subr.mxu0 0.0
        %2540 = vmatpush1.msra.mxu0 0.0
        %2541 = vmatprep.subr.mxu0 0.0
        %2542 = vmatpush1.msra.mxu0 0.0
        %2543 = vmatprep.subr.mxu0 0.0
        %2544 = vmatpush1.msra.mxu0 0.0
        %2545 = vmatprep.subr.mxu0 0.0
        %2546 = vmatpush1.msra.mxu0 0.0
        %2547 = vmatprep.subr.mxu0 0.0
        %2548 = vmatpush1.msra.mxu0 0.0
        %2549 = vmatprep.subr.mxu0 0.0
        %2550 = vmatpush1.msra.mxu0 0.0
        %2551 = vmatprep.subr.mxu0 0.0
        %2552 = vmatpush1.msra.mxu0 0.0
        %2553 = vmatprep.subr.mxu0 0.0
        %2554 = vmatpush1.msra.mxu0 0.0
        %2555 = vmatprep.subr.mxu0 0.0
        %2556 = vmatpush1.msra.mxu0 0.0
        %2557 = vmatprep.subr.mxu0 0.0
        %2558 = vmatpush1.msra.mxu0 0.0
        %2559 = vmatprep.subr.mxu0 0.0
        %2560 = vmatpush1.msra.mxu0 %v2503
        %2561 = vmatprep.subr.mxu0 0.0
        %2562 = vmatpush1.msra.mxu0 %v2502
        %2563 = vmatprep.subr.mxu0 0.0
        %2564 = vmatpush1.msra.mxu0 %v2501
        %2565 = vmatprep.subr.mxu0 0.0
        %2566 = vmatpush1.msra.mxu0 %v2500
        %2567 = vmatprep.subr.mxu0 0.0
        %2568 = vmatpush2.msra.mxu0 0.0
        %2569 = vmatprep.subr.mxu0 0.0
        %2570 = vmatpush2.msra.mxu0 0.0
        %2571 = vmatprep.subr.mxu0 0.0
        %2572 = vmatpush2.msra.mxu0 0.0
        %2573 = vmatprep.subr.mxu0 0.0
        %2574 = vmatpush2.msra.mxu0 0.0
        %2575 = vmatprep.subr.mxu0 0.0
        %2576 = vmatpush2.msra.mxu0 0.0
        %2577 = vmatprep.subr.mxu0 0.0
        %2578 = vmatpush2.msra.mxu0 0.0
        %2579 = vmatprep.subr.mxu0 0.0
        %2580 = vmatpush2.msra.mxu0 0.0
        %2581 = vmatprep.subr.mxu0 0.0
        %2582 = vmatpush2.msra.mxu0 0.0
        %2583 = vmatprep.subr.mxu0 0.0
        %2584 = vmatpush2.msra.mxu0 0.0
        %2585 = vmatprep.subr.mxu0 0.0
        %2586 = vmatpush2.msra.mxu0 0.0
        %2587 = vmatprep.subr.mxu0 0.0
        %2588 = vmatpush2.msra.mxu0 0.0
        %2589 = vmatprep.subr.mxu0 0.0
        %2590 = vmatpush2.msra.mxu0 0.0
        %2591 = vmatprep.subr.mxu0 0.0
        %2592 = vmatpush2.msra.mxu0 0.0
        %2593 = vmatprep.subr.mxu0 0.0
        %2594 = vmatpush2.msra.mxu0 0.0
        %2595 = vmatprep.subr.mxu0 0.0
        %2596 = vmatpush2.msra.mxu0 0.0
        %2597 = vmatprep.subr.mxu0 0.0
        %2598 = vmatpush2.msra.mxu0 0.0
        %2599 = vmatprep.mubr.f32.mxu0 0.0
        %2600 = vmatmul.mubr.f32.gmra.mxu0 %v2512
        %v2601 = vpop.f32.mrf.mxu0
        %v2602 = vadd.f32 %v2509, %v2601
        %v2603 = vpop.f32.mrf.mxu0
        %2604 = vmatprep.mubr.f32.mxu0 0.0
        %2605 = vmatmul.mubr.f32.gmra.mxu0 %v2515
        %v2606 = vpop.f32.mrf.mxu0
        %v2607 = vadd.f32 %v2509, %v2606
        %v2608 = vpop.f32.mrf.mxu0
        %2609 = vmatprep.mubr.f32.mxu0 0.0
        %2610 = vmatmul.mubr.f32.gmra.mxu0 %v2518
        %v2611 = vpop.f32.mrf.mxu0
        %v2612 = vadd.f32 %v2509, %v2611
        %v2613 = vpop.f32.mrf.mxu0
        %2614 = vmatprep.mubr.f32.mxu0 0.0
        %2615 = vmatmul.mubr.f32.gmra.mxu0 %v2521
        %v2616 = vpop.f32.mrf.mxu0
        %v2617 = vadd.f32 %v2509, %v2616
        %v2618 = vpop.f32.mrf.mxu0
        %2619 = vmatprep.mubr.f32.mxu0 0.0
        %2620 = vmatmul.mubr.f32.gmra.mxu0 %v2524
        %v2621 = vpop.f32.mrf.mxu0
        %v2622 = vadd.f32 %v2509, %v2621
        %v2623 = vpop.f32.mrf.mxu0
        %2624 = vmatprep.mubr.f32.mxu0 0.0
        %2625 = vmatmul.mubr.f32.gmra.mxu0 %v2527
        %v2626 = vpop.f32.mrf.mxu0
        %v2627 = vadd.f32 %v2509, %v2626
        %v2628 = vpop.f32.mrf.mxu0
        %2629 = vmatprep.mubr.f32.mxu0 0.0
        %2630 = vmatmul.mubr.f32.gmra.mxu0 %v2530
        %v2631 = vpop.f32.mrf.mxu0
        %v2632 = vadd.f32 %v2509, %v2631
        %v2633 = vpop.f32.mrf.mxu0
        %2634 = vmatprep.mubr.f32.mxu0 0.0
        %2635 = vmatmul.mubr.f32.gmra.mxu0 %v2533
        %v2636 = vpop.f32.mrf.mxu0
        %v2637 = vadd.f32 %v2509, %v2636
        %v2638 = vpop.f32.mrf.mxu0
        %2639 = vdwg.mxu0
        %v2640 = vld [vmem:[%s4] sm:$0xff]
        %v2641 = vld [vmem:[%s4 + $0x20] sm:$0xff]
        %v2642 = vld [vmem:[%s4 + $0x40] sm:$0xff]
        %v2643 = vld [vmem:[%s4 + $0x60] sm:$0xff]
        %v2644 = vld [vmem:[%s5] sm:$0x1]
        %v2646 = vlaneseq
        %v2647 = vshrl.u32 %v2646, 7
        %v2648 = vsub.s32 0, %v2647
        %v2649 = vrot.slane %v2644, %v2648
        %2651 = vmatprep.subr.mxu0 0.0
        %2652 = vmatpush1.msra.mxu0 0.0
        %2653 = vmatprep.subr.mxu0 0.0
        %2654 = vmatpush1.msra.mxu0 0.0
        %2655 = vmatprep.subr.mxu0 0.0
        %2656 = vmatpush1.msra.mxu0 0.0
        %2657 = vmatprep.subr.mxu0 0.0
        %2658 = vmatpush1.msra.mxu0 0.0
        %2659 = vmatprep.subr.mxu0 0.0
        %2660 = vmatpush1.msra.mxu0 0.0
        %2661 = vmatprep.subr.mxu0 0.0
        %2662 = vmatpush1.msra.mxu0 0.0
        %2663 = vmatprep.subr.mxu0 0.0
        %2664 = vmatpush1.msra.mxu0 0.0
        %2665 = vmatprep.subr.mxu0 0.0
        %2666 = vmatpush1.msra.mxu0 0.0
        %2667 = vmatprep.subr.mxu0 0.0
        %2668 = vmatpush1.msra.mxu0 0.0
        %2669 = vmatprep.subr.mxu0 0.0
        %2670 = vmatpush1.msra.mxu0 0.0
        %2671 = vmatprep.subr.mxu0 0.0
        %2672 = vmatpush1.msra.mxu0 0.0
        %2673 = vmatprep.subr.mxu0 0.0
        %2674 = vmatpush1.msra.mxu0 0.0
        %2675 = vmatprep.subr.mxu0 0.0
        %2676 = vmatpush1.msra.mxu0 %v2643
        %2677 = vmatprep.subr.mxu0 0.0
        %2678 = vmatpush1.msra.mxu0 %v2642
        %2679 = vmatprep.subr.mxu0 0.0
        %2680 = vmatpush1.msra.mxu0 %v2641
        %2681 = vmatprep.subr.mxu0 0.0
        %2682 = vmatpush1.msra.mxu0 %v2640
        %2683 = vmatprep.subr.mxu0 0.0
        %2684 = vmatpush2.msra.mxu0 0.0
        %2685 = vmatprep.subr.mxu0 0.0
        %2686 = vmatpush2.msra.mxu0 0.0
        %2687 = vmatprep.subr.mxu0 0.0
        %2688 = vmatpush2.msra.mxu0 0.0
        %2689 = vmatprep.subr.mxu0 0.0
        %2690 = vmatpush2.msra.mxu0 0.0
        %2691 = vmatprep.subr.mxu0 0.0
        %2692 = vmatpush2.msra.mxu0 0.0
        %2693 = vmatprep.subr.mxu0 0.0
        %2694 = vmatpush2.msra.mxu0 0.0
        %2695 = vmatprep.subr.mxu0 0.0
        %2696 = vmatpush2.msra.mxu0 0.0
        %2697 = vmatprep.subr.mxu0 0.0
        %2698 = vmatpush2.msra.mxu0 0.0
        %2699 = vmatprep.subr.mxu0 0.0
        %2700 = vmatpush2.msra.mxu0 0.0
        %2701 = vmatprep.subr.mxu0 0.0
        %2702 = vmatpush2.msra.mxu0 0.0
        %2703 = vmatprep.subr.mxu0 0.0
        %2704 = vmatpush2.msra.mxu0 0.0
        %2705 = vmatprep.subr.mxu0 0.0
        %2706 = vmatpush2.msra.mxu0 0.0
        %2707 = vmatprep.subr.mxu0 0.0
        %2708 = vmatpush2.msra.mxu0 0.0
        %2709 = vmatprep.subr.mxu0 0.0
        %2710 = vmatpush2.msra.mxu0 0.0
        %2711 = vmatprep.subr.mxu0 0.0
        %2712 = vmatpush2.msra.mxu0 0.0
        %2713 = vmatprep.subr.mxu0 0.0
        %2714 = vmatpush2.msra.mxu0 0.0
        %2715 = vmatprep.mubr.f32.mxu0 0.0
        %2716 = vmatmul.mubr.f32.gmra.mxu0 %v507
        %v2717 = vpop.f32.mrf.mxu0
        %v2718 = vadd.f32 %v2649, %v2717
        %v2719 = vpop.f32.mrf.mxu0
        %2720 = vmatprep.mubr.f32.mxu0 0.0
        %2721 = vmatmul.mubr.f32.gmra.mxu0 %v510
        %v2722 = vpop.f32.mrf.mxu0
        %v2723 = vadd.f32 %v2649, %v2722
        %v2724 = vpop.f32.mrf.mxu0
        %2725 = vmatprep.mubr.f32.mxu0 0.0
        %2726 = vmatmul.mubr.f32.gmra.mxu0 %v513
        %v2727 = vpop.f32.mrf.mxu0
        %v2728 = vadd.f32 %v2649, %v2727
        %v2729 = vpop.f32.mrf.mxu0
        %2730 = vmatprep.mubr.f32.mxu0 0.0
        %2731 = vmatmul.mubr.f32.gmra.mxu0 %v516
        %v2732 = vpop.f32.mrf.mxu0
        %v2733 = vadd.f32 %v2649, %v2732
        %v2734 = vpop.f32.mrf.mxu0
        %2735 = vdwg.mxu0
        %2736 = vmatprep.subr.mxu0 0.0
        %2737 = vmatpush1.xpose.msra.mxu0 0.0
        %2738 = vmatprep.subr.mxu0 0.0
        %2739 = vmatpush1.xpose.msra.mxu0 0.0
        %2740 = vmatprep.subr.mxu0 0.0
        %2741 = vmatpush1.xpose.msra.mxu0 0.0
        %2742 = vmatprep.subr.mxu0 0.0
        %2743 = vmatpush1.xpose.msra.mxu0 0.0
        %2744 = vmatprep.subr.mxu0 0.0
        %2745 = vmatpush1.xpose.msra.mxu0 0.0
        %2746 = vmatprep.subr.mxu0 0.0
        %2747 = vmatpush1.xpose.msra.mxu0 0.0
        %2748 = vmatprep.subr.mxu0 0.0
        %2749 = vmatpush1.xpose.msra.mxu0 0.0
        %2750 = vmatprep.subr.mxu0 0.0
        %2751 = vmatpush1.xpose.msra.mxu0 0.0
        %2752 = vmatprep.subr.mxu0 0.0
        %2753 = vmatpush1.xpose.msra.mxu0 0.0
        %2754 = vmatprep.subr.mxu0 0.0
        %2755 = vmatpush1.xpose.msra.mxu0 0.0
        %2756 = vmatprep.subr.mxu0 0.0
        %2757 = vmatpush1.xpose.msra.mxu0 0.0
        %2758 = vmatprep.subr.mxu0 0.0
        %2759 = vmatpush1.xpose.msra.mxu0 0.0
        %2760 = vmatprep.subr.mxu0 0.0
        %2761 = vmatpush1.xpose.msra.mxu0 0.0
        %2762 = vmatprep.subr.mxu0 0.0
        %2763 = vmatpush1.xpose.msra.mxu0 0.0
        %2764 = vmatprep.subr.mxu0 0.0
        %2765 = vmatpush1.xpose.msra.mxu0 %v2607
        %2766 = vmatprep.subr.mxu0 0.0
        %2767 = vmatpush1.xpose.msra.mxu0 %v2602
        %2768 = vmatprep.subr.mxu0 0.0
        %2769 = vmatpush2.xpose.msra.mxu0 0.0
        %2770 = vmatprep.subr.mxu0 0.0
        %2771 = vmatpush2.xpose.msra.mxu0 0.0
        %2772 = vmatprep.subr.mxu0 0.0
        %2773 = vmatpush2.xpose.msra.mxu0 0.0
        %2774 = vmatprep.subr.mxu0 0.0
        %2775 = vmatpush2.xpose.msra.mxu0 0.0
        %2776 = vmatprep.subr.mxu0 0.0
        %2777 = vmatpush2.xpose.msra.mxu0 0.0
        %2778 = vmatprep.subr.mxu0 0.0
        %2779 = vmatpush2.xpose.msra.mxu0 0.0
        %2780 = vmatprep.subr.mxu0 0.0
        %2781 = vmatpush2.xpose.msra.mxu0 0.0
        %2782 = vmatprep.subr.mxu0 0.0
        %2783 = vmatpush2.xpose.msra.mxu0 0.0
        %2784 = vmatprep.subr.mxu0 0.0
        %2785 = vmatpush2.xpose.msra.mxu0 0.0
        %2786 = vmatprep.subr.mxu0 0.0
        %2787 = vmatpush2.xpose.msra.mxu0 0.0
        %2788 = vmatprep.subr.mxu0 0.0
        %2789 = vmatpush2.xpose.msra.mxu0 0.0
        %2790 = vmatprep.subr.mxu0 0.0
        %2791 = vmatpush2.xpose.msra.mxu0 0.0
        %2792 = vmatprep.subr.mxu0 0.0
        %2793 = vmatpush2.xpose.msra.mxu0 0.0
        %2794 = vmatprep.subr.mxu0 0.0
        %2795 = vmatpush2.xpose.msra.mxu0 0.0
        %2796 = vmatprep.subr.mxu0 0.0
        %2797 = vmatpush2.xpose.msra.mxu0 0.0
        %2798 = vmatprep.subr.mxu0 0.0
        %2799 = vmatpush2.xpose.msra.mxu0 0.0
        %2800 = vmatprep.mubr.f32.mxu0 0.0
        %2801 = vmatmul.mubr.f32.gmra.mxu0 %v2718
        %v2802 = vpop.f32.mrf.mxu0
        %v2803 = vadd.f32 0.0, %v2802
        %v2804 = vpop.f32.mrf.mxu0
        %2805 = vdwg.mxu0
        %2806 = vmatprep.subr.mxu0 0.0
        %2807 = vmatpush1.xpose.msra.mxu0 0.0
        %2808 = vmatprep.subr.mxu0 0.0
        %2809 = vmatpush1.xpose.msra.mxu0 0.0
        %2810 = vmatprep.subr.mxu0 0.0
        %2811 = vmatpush1.xpose.msra.mxu0 0.0
        %2812 = vmatprep.subr.mxu0 0.0
        %2813 = vmatpush1.xpose.msra.mxu0 0.0
        %2814 = vmatprep.subr.mxu0 0.0
        %2815 = vmatpush1.xpose.msra.mxu0 0.0
        %2816 = vmatprep.subr.mxu0 0.0
        %2817 = vmatpush1.xpose.msra.mxu0 0.0
        %2818 = vmatprep.subr.mxu0 0.0
        %2819 = vmatpush1.xpose.msra.mxu0 0.0
        %2820 = vmatprep.subr.mxu0 0.0
        %2821 = vmatpush1.xpose.msra.mxu0 0.0
        %2822 = vmatprep.subr.mxu0 0.0
        %2823 = vmatpush1.xpose.msra.mxu0 0.0
        %2824 = vmatprep.subr.mxu0 0.0
        %2825 = vmatpush1.xpose.msra.mxu0 0.0
        %2826 = vmatprep.subr.mxu0 0.0
        %2827 = vmatpush1.xpose.msra.mxu0 0.0
        %2828 = vmatprep.subr.mxu0 0.0
        %2829 = vmatpush1.xpose.msra.mxu0 0.0
        %2830 = vmatprep.subr.mxu0 0.0
        %2831 = vmatpush1.xpose.msra.mxu0 0.0
        %2832 = vmatprep.subr.mxu0 0.0
        %2833 = vmatpush1.xpose.msra.mxu0 0.0
        %2834 = vmatprep.subr.mxu0 0.0
        %2835 = vmatpush1.xpose.msra.mxu0 %v2617
        %2836 = vmatprep.subr.mxu0 0.0
        %2837 = vmatpush1.xpose.msra.mxu0 %v2612
        %2838 = vmatprep.subr.mxu0 0.0
        %2839 = vmatpush2.xpose.msra.mxu0 0.0
        %2840 = vmatprep.subr.mxu0 0.0
        %2841 = vmatpush2.xpose.msra.mxu0 0.0
        %2842 = vmatprep.subr.mxu0 0.0
        %2843 = vmatpush2.xpose.msra.mxu0 0.0
        %2844 = vmatprep.subr.mxu0 0.0
        %2845 = vmatpush2.xpose.msra.mxu0 0.0
        %2846 = vmatprep.subr.mxu0 0.0
        %2847 = vmatpush2.xpose.msra.mxu0 0.0
        %2848 = vmatprep.subr.mxu0 0.0
        %2849 = vmatpush2.xpose.msra.mxu0 0.0
        %2850 = vmatprep.subr.mxu0 0.0
        %2851 = vmatpush2.xpose.msra.mxu0 0.0
        %2852 = vmatprep.subr.mxu0 0.0
        %2853 = vmatpush2.xpose.msra.mxu0 0.0
        %2854 = vmatprep.subr.mxu0 0.0
        %2855 = vmatpush2.xpose.msra.mxu0 0.0
        %2856 = vmatprep.subr.mxu0 0.0
        %2857 = vmatpush2.xpose.msra.mxu0 0.0
        %2858 = vmatprep.subr.mxu0 0.0
        %2859 = vmatpush2.xpose.msra.mxu0 0.0
        %2860 = vmatprep.subr.mxu0 0.0
        %2861 = vmatpush2.xpose.msra.mxu0 0.0
        %2862 = vmatprep.subr.mxu0 0.0
        %2863 = vmatpush2.xpose.msra.mxu0 0.0
        %2864 = vmatprep.subr.mxu0 0.0
        %2865 = vmatpush2.xpose.msra.mxu0 0.0
        %2866 = vmatprep.subr.mxu0 0.0
        %2867 = vmatpush2.xpose.msra.mxu0 0.0
        %2868 = vmatprep.subr.mxu0 0.0
        %2869 = vmatpush2.xpose.msra.mxu0 0.0
        %2870 = vmatprep.mubr.f32.mxu0 0.0
        %2871 = vmatmul.mubr.f32.gmra.mxu0 %v2723
        %v2872 = vpop.f32.mrf.mxu0
        %v2873 = vadd.f32 0.0, %v2872
        %v2874 = vpop.f32.mrf.mxu0
        %2875 = vdwg.mxu0
        %2876 = vmatprep.subr.mxu0 0.0
        %2877 = vmatpush1.xpose.msra.mxu0 0.0
        %2878 = vmatprep.subr.mxu0 0.0
        %2879 = vmatpush1.xpose.msra.mxu0 0.0
        %2880 = vmatprep.subr.mxu0 0.0
        %2881 = vmatpush1.xpose.msra.mxu0 0.0
        %2882 = vmatprep.subr.mxu0 0.0
        %2883 = vmatpush1.xpose.msra.mxu0 0.0
        %2884 = vmatprep.subr.mxu0 0.0
        %2885 = vmatpush1.xpose.msra.mxu0 0.0
        %2886 = vmatprep.subr.mxu0 0.0
        %2887 = vmatpush1.xpose.msra.mxu0 0.0
        %2888 = vmatprep.subr.mxu0 0.0
        %2889 = vmatpush1.xpose.msra.mxu0 0.0
        %2890 = vmatprep.subr.mxu0 0.0
        %2891 = vmatpush1.xpose.msra.mxu0 0.0
        %2892 = vmatprep.subr.mxu0 0.0
        %2893 = vmatpush1.xpose.msra.mxu0 0.0
        %2894 = vmatprep.subr.mxu0 0.0
        %2895 = vmatpush1.xpose.msra.mxu0 0.0
        %2896 = vmatprep.subr.mxu0 0.0
        %2897 = vmatpush1.xpose.msra.mxu0 0.0
        %2898 = vmatprep.subr.mxu0 0.0
        %2899 = vmatpush1.xpose.msra.mxu0 0.0
        %2900 = vmatprep.subr.mxu0 0.0
        %2901 = vmatpush1.xpose.msra.mxu0 0.0
        %2902 = vmatprep.subr.mxu0 0.0
        %2903 = vmatpush1.xpose.msra.mxu0 0.0
        %2904 = vmatprep.subr.mxu0 0.0
        %2905 = vmatpush1.xpose.msra.mxu0 %v2627
        %2906 = vmatprep.subr.mxu0 0.0
        %2907 = vmatpush1.xpose.msra.mxu0 %v2622
        %2908 = vmatprep.subr.mxu0 0.0
        %2909 = vmatpush2.xpose.msra.mxu0 0.0
        %2910 = vmatprep.subr.mxu0 0.0
        %2911 = vmatpush2.xpose.msra.mxu0 0.0
        %2912 = vmatprep.subr.mxu0 0.0
        %2913 = vmatpush2.xpose.msra.mxu0 0.0
        %2914 = vmatprep.subr.mxu0 0.0
        %2915 = vmatpush2.xpose.msra.mxu0 0.0
        %2916 = vmatprep.subr.mxu0 0.0
        %2917 = vmatpush2.xpose.msra.mxu0 0.0
        %2918 = vmatprep.subr.mxu0 0.0
        %2919 = vmatpush2.xpose.msra.mxu0 0.0
        %2920 = vmatprep.subr.mxu0 0.0
        %2921 = vmatpush2.xpose.msra.mxu0 0.0
        %2922 = vmatprep.subr.mxu0 0.0
        %2923 = vmatpush2.xpose.msra.mxu0 0.0
        %2924 = vmatprep.subr.mxu0 0.0
        %2925 = vmatpush2.xpose.msra.mxu0 0.0
        %2926 = vmatprep.subr.mxu0 0.0
        %2927 = vmatpush2.xpose.msra.mxu0 0.0
        %2928 = vmatprep.subr.mxu0 0.0
        %2929 = vmatpush2.xpose.msra.mxu0 0.0
        %2930 = vmatprep.subr.mxu0 0.0
        %2931 = vmatpush2.xpose.msra.mxu0 0.0
        %2932 = vmatprep.subr.mxu0 0.0
        %2933 = vmatpush2.xpose.msra.mxu0 0.0
        %2934 = vmatprep.subr.mxu0 0.0
        %2935 = vmatpush2.xpose.msra.mxu0 0.0
        %2936 = vmatprep.subr.mxu0 0.0
        %2937 = vmatpush2.xpose.msra.mxu0 0.0
        %2938 = vmatprep.subr.mxu0 0.0
        %2939 = vmatpush2.xpose.msra.mxu0 0.0
        %2940 = vmatprep.mubr.f32.mxu0 0.0
        %2941 = vmatmul.mubr.f32.gmra.mxu0 %v2728
        %v2942 = vpop.f32.mrf.mxu0
        %v2943 = vadd.f32 0.0, %v2942
        %v2944 = vpop.f32.mrf.mxu0
        %2945 = vdwg.mxu0
        %2946 = vmatprep.subr.mxu0 0.0
        %2947 = vmatpush1.xpose.msra.mxu0 0.0
        %2948 = vmatprep.subr.mxu0 0.0
        %2949 = vmatpush1.xpose.msra.mxu0 0.0
        %2950 = vmatprep.subr.mxu0 0.0
        %2951 = vmatpush1.xpose.msra.mxu0 0.0
        %2952 = vmatprep.subr.mxu0 0.0
        %2953 = vmatpush1.xpose.msra.mxu0 0.0
        %2954 = vmatprep.subr.mxu0 0.0
        %2955 = vmatpush1.xpose.msra.mxu0 0.0
        %2956 = vmatprep.subr.mxu0 0.0
        %2957 = vmatpush1.xpose.msra.mxu0 0.0
        %2958 = vmatprep.subr.mxu0 0.0
        %2959 = vmatpush1.xpose.msra.mxu0 0.0
        %2960 = vmatprep.subr.mxu0 0.0
        %2961 = vmatpush1.xpose.msra.mxu0 0.0
        %2962 = vmatprep.subr.mxu0 0.0
        %2963 = vmatpush1.xpose.msra.mxu0 0.0
        %2964 = vmatprep.subr.mxu0 0.0
        %2965 = vmatpush1.xpose.msra.mxu0 0.0
        %2966 = vmatprep.subr.mxu0 0.0
        %2967 = vmatpush1.xpose.msra.mxu0 0.0
        %2968 = vmatprep.subr.mxu0 0.0
        %2969 = vmatpush1.xpose.msra.mxu0 0.0
        %2970 = vmatprep.subr.mxu0 0.0
        %2971 = vmatpush1.xpose.msra.mxu0 0.0
        %2972 = vmatprep.subr.mxu0 0.0
        %2973 = vmatpush1.xpose.msra.mxu0 0.0
        %2974 = vmatprep.subr.mxu0 0.0
        %2975 = vmatpush1.xpose.msra.mxu0 %v2637
        %2976 = vmatprep.subr.mxu0 0.0
        %2977 = vmatpush1.xpose.msra.mxu0 %v2632
        %2978 = vmatprep.subr.mxu0 0.0
        %2979 = vmatpush2.xpose.msra.mxu0 0.0
        %2980 = vmatprep.subr.mxu0 0.0
        %2981 = vmatpush2.xpose.msra.mxu0 0.0
        %2982 = vmatprep.subr.mxu0 0.0
        %2983 = vmatpush2.xpose.msra.mxu0 0.0
        %2984 = vmatprep.subr.mxu0 0.0
        %2985 = vmatpush2.xpose.msra.mxu0 0.0
        %2986 = vmatprep.subr.mxu0 0.0
        %2987 = vmatpush2.xpose.msra.mxu0 0.0
        %2988 = vmatprep.subr.mxu0 0.0
        %2989 = vmatpush2.xpose.msra.mxu0 0.0
        %2990 = vmatprep.subr.mxu0 0.0
        %2991 = vmatpush2.xpose.msra.mxu0 0.0
        %2992 = vmatprep.subr.mxu0 0.0
        %2993 = vmatpush2.xpose.msra.mxu0 0.0
        %2994 = vmatprep.subr.mxu0 0.0
        %2995 = vmatpush2.xpose.msra.mxu0 0.0
        %2996 = vmatprep.subr.mxu0 0.0
        %2997 = vmatpush2.xpose.msra.mxu0 0.0
        %2998 = vmatprep.subr.mxu0 0.0
        %2999 = vmatpush2.xpose.msra.mxu0 0.0
        %3000 = vmatprep.subr.mxu0 0.0
        %3001 = vmatpush2.xpose.msra.mxu0 0.0
        %3002 = vmatprep.subr.mxu0 0.0
        %3003 = vmatpush2.xpose.msra.mxu0 0.0
        %3004 = vmatprep.subr.mxu0 0.0
        %3005 = vmatpush2.xpose.msra.mxu0 0.0
        %3006 = vmatprep.subr.mxu0 0.0
        %3007 = vmatpush2.xpose.msra.mxu0 0.0
        %3008 = vmatprep.subr.mxu0 0.0
        %3009 = vmatpush2.xpose.msra.mxu0 0.0
        %3010 = vmatprep.mubr.f32.mxu0 0.0
        %3011 = vmatmul.mubr.f32.gmra.mxu0 %v2733
        %v3012 = vpop.f32.mrf.mxu0
        %v3013 = vadd.f32 0.0, %v3012
        %v3014 = vpop.f32.mrf.mxu0
        %3015 = vdwg.mxu0
        %v3016 = vsel %vm2175, %v2803, -inf
        %3017 = vmax.xlane.f32.xlu0 %v3016
        %v3018 = vpop.xlane.xlu0 %3017
        %v3019 = vsel %vm2175, %v2873, -inf
        %3020 = vmax.xlane.f32.xlu0 %v3019
        %v3021 = vpop.xlane.xlu0 %3020
        %v3022 = vsel %vm2175, %v2943, -inf
        %3023 = vmax.xlane.f32.xlu0 %v3022
        %v3024 = vpop.xlane.xlu0 %3023
        %v3025 = vsel %vm2175, %v3013, -inf
        %3026 = vmax.xlane.f32.xlu0 %v3025
        %v3027 = vpop.xlane.xlu0 %3026
        %v3028 = vsub.f32 %v2803, %v3018
        %v3029 = vsub.f32 %v2873, %v3021
        %v3030 = vsub.f32 %v2943, %v3024
        %v3031 = vsub.f32 %v3013, %v3027
        %v3032 = vmul.f32 %v3028, 1.442695
        %v3033 = vpow.pop %v3032
        %v3034 = vmul.f32 %v3029, 1.442695
        %v3035 = vpow.pop %v3034
        %v3036 = vmul.f32 %v3030, 1.442695
        %v3037 = vpow.pop %v3036
        %v3038 = vmul.f32 %v3031, 1.442695
        %v3039 = vpow.pop %v3038
        %v3040 = vsel %vm2175, %v3033, 0.0
        %3041 = vadd.xlane.f32.xlu0 %v3040
        %v3042 = vpop.xlane.xlu0 %3041
        %v3043 = vsel %vm2175, %v3035, 0.0
        %3044 = vadd.xlane.f32.xlu0 %v3043
        %v3045 = vpop.xlane.xlu0 %3044
        %v3046 = vsel %vm2175, %v3037, 0.0
        %3047 = vadd.xlane.f32.xlu0 %v3046
        %v3048 = vpop.xlane.xlu0 %3047
        %v3049 = vsel %vm2175, %v3039, 0.0
        %3050 = vadd.xlane.f32.xlu0 %v3049
        %v3051 = vpop.xlane.xlu0 %3050
        %v3052 = vrcp.pop %v3042
        %v3053 = vmul.f32 %v3033, %v3052
        %v3054 = vrcp.pop %v3045
        %v3055 = vmul.f32 %v3035, %v3054
        %v3056 = vrcp.pop %v3048
        %v3057 = vmul.f32 %v3037, %v3056
        %v3058 = vrcp.pop %v3051
        %v3059 = vmul.f32 %v3039, %v3058
        %v3061 = vsel %vm2175, %v3053, 0
        %3063 = vmatprep.subr.mxu0 0.0
        %3064 = vmatpush1.msra.mxu0 0.0
        %3065 = vmatprep.subr.mxu0 0.0
        %3066 = vmatpush1.msra.mxu0 0.0
        %3067 = vmatprep.subr.mxu0 0.0
        %3068 = vmatpush1.msra.mxu0 0.0
        %3069 = vmatprep.subr.mxu0 0.0
        %3070 = vmatpush1.msra.mxu0 0.0
        %3071 = vmatprep.subr.mxu0 0.0
        %3072 = vmatpush1.msra.mxu0 0.0
        %3073 = vmatprep.subr.mxu0 0.0
        %3074 = vmatpush1.msra.mxu0 0.0
        %3075 = vmatprep.subr.mxu0 0.0
        %3076 = vmatpush1.msra.mxu0 0.0
        %3077 = vmatprep.subr.mxu0 0.0
        %3078 = vmatpush1.msra.mxu0 0.0
        %3079 = vmatprep.subr.mxu0 0.0
        %3080 = vmatpush1.msra.mxu0 0.0
        %3081 = vmatprep.subr.mxu0 0.0
        %3082 = vmatpush1.msra.mxu0 0.0
        %3083 = vmatprep.subr.mxu0 0.0
        %3084 = vmatpush1.msra.mxu0 0.0
        %3085 = vmatprep.subr.mxu0 0.0
        %3086 = vmatpush1.msra.mxu0 0.0
        %3087 = vmatprep.subr.mxu0 0.0
        %3088 = vmatpush1.msra.mxu0 0.0
        %3089 = vmatprep.subr.mxu0 0.0
        %3090 = vmatpush1.msra.mxu0 0.0
        %3091 = vmatprep.subr.mxu0 0.0
        %3092 = vmatpush1.msra.mxu0 %v2493
        %3093 = vmatprep.subr.mxu0 0.0
        %3094 = vmatpush1.msra.mxu0 %v2492
        %3095 = vmatprep.subr.mxu0 0.0
        %3096 = vmatpush2.msra.mxu0 0.0
        %3097 = vmatprep.subr.mxu0 0.0
        %3098 = vmatpush2.msra.mxu0 0.0
        %3099 = vmatprep.subr.mxu0 0.0
        %3100 = vmatpush2.msra.mxu0 0.0
        %3101 = vmatprep.subr.mxu0 0.0
        %3102 = vmatpush2.msra.mxu0 0.0
        %3103 = vmatprep.subr.mxu0 0.0
        %3104 = vmatpush2.msra.mxu0 0.0
        %3105 = vmatprep.subr.mxu0 0.0
        %3106 = vmatpush2.msra.mxu0 0.0
        %3107 = vmatprep.subr.mxu0 0.0
        %3108 = vmatpush2.msra.mxu0 0.0
        %3109 = vmatprep.subr.mxu0 0.0
        %3110 = vmatpush2.msra.mxu0 0.0
        %3111 = vmatprep.subr.mxu0 0.0
        %3112 = vmatpush2.msra.mxu0 0.0
        %3113 = vmatprep.subr.mxu0 0.0
        %3114 = vmatpush2.msra.mxu0 0.0
        %3115 = vmatprep.subr.mxu0 0.0
        %3116 = vmatpush2.msra.mxu0 0.0
        %3117 = vmatprep.subr.mxu0 0.0
        %3118 = vmatpush2.msra.mxu0 0.0
        %3119 = vmatprep.subr.mxu0 0.0
        %3120 = vmatpush2.msra.mxu0 0.0
        %3121 = vmatprep.subr.mxu0 0.0
        %3122 = vmatpush2.msra.mxu0 0.0
        %3123 = vmatprep.subr.mxu0 0.0
        %3124 = vmatpush2.msra.mxu0 0.0
        %3125 = vmatprep.subr.mxu0 0.0
        %3126 = vmatpush2.msra.mxu0 0.0
        %3127 = vmatprep.mubr.f32.mxu0 0.0
        %3128 = vmatmul.mubr.f32.gmra.mxu0 %v3061
        %v3129 = vpop.f32.mrf.mxu0
        %v3130 = vadd.f32 0.0, %v3129
        %v3131 = vpop.f32.mrf.mxu0
        %3132 = vdwg.mxu0
        %v3134 = vsel %vm2175, %v3055, 0
        %3136 = vmatprep.subr.mxu0 0.0
        %3137 = vmatpush1.msra.mxu0 0.0
        %3138 = vmatprep.subr.mxu0 0.0
        %3139 = vmatpush1.msra.mxu0 0.0
        %3140 = vmatprep.subr.mxu0 0.0
        %3141 = vmatpush1.msra.mxu0 0.0
        %3142 = vmatprep.subr.mxu0 0.0
        %3143 = vmatpush1.msra.mxu0 0.0
        %3144 = vmatprep.subr.mxu0 0.0
        %3145 = vmatpush1.msra.mxu0 0.0
        %3146 = vmatprep.subr.mxu0 0.0
        %3147 = vmatpush1.msra.mxu0 0.0
        %3148 = vmatprep.subr.mxu0 0.0
        %3149 = vmatpush1.msra.mxu0 0.0
        %3150 = vmatprep.subr.mxu0 0.0
        %3151 = vmatpush1.msra.mxu0 0.0
        %3152 = vmatprep.subr.mxu0 0.0
        %3153 = vmatpush1.msra.mxu0 0.0
        %3154 = vmatprep.subr.mxu0 0.0
        %3155 = vmatpush1.msra.mxu0 0.0
        %3156 = vmatprep.subr.mxu0 0.0
        %3157 = vmatpush1.msra.mxu0 0.0
        %3158 = vmatprep.subr.mxu0 0.0
        %3159 = vmatpush1.msra.mxu0 0.0
        %3160 = vmatprep.subr.mxu0 0.0
        %3161 = vmatpush1.msra.mxu0 0.0
        %3162 = vmatprep.subr.mxu0 0.0
        %3163 = vmatpush1.msra.mxu0 0.0
        %3164 = vmatprep.subr.mxu0 0.0
        %3165 = vmatpush1.msra.mxu0 %v2495
        %3166 = vmatprep.subr.mxu0 0.0
        %3167 = vmatpush1.msra.mxu0 %v2494
        %3168 = vmatprep.subr.mxu0 0.0
        %3169 = vmatpush2.msra.mxu0 0.0
        %3170 = vmatprep.subr.mxu0 0.0
        %3171 = vmatpush2.msra.mxu0 0.0
        %3172 = vmatprep.subr.mxu0 0.0
        %3173 = vmatpush2.msra.mxu0 0.0
        %3174 = vmatprep.subr.mxu0 0.0
        %3175 = vmatpush2.msra.mxu0 0.0
        %3176 = vmatprep.subr.mxu0 0.0
        %3177 = vmatpush2.msra.mxu0 0.0
        %3178 = vmatprep.subr.mxu0 0.0
        %3179 = vmatpush2.msra.mxu0 0.0
        %3180 = vmatprep.subr.mxu0 0.0
        %3181 = vmatpush2.msra.mxu0 0.0
        %3182 = vmatprep.subr.mxu0 0.0
        %3183 = vmatpush2.msra.mxu0 0.0
        %3184 = vmatprep.subr.mxu0 0.0
        %3185 = vmatpush2.msra.mxu0 0.0
        %3186 = vmatprep.subr.mxu0 0.0
        %3187 = vmatpush2.msra.mxu0 0.0
        %3188 = vmatprep.subr.mxu0 0.0
        %3189 = vmatpush2.msra.mxu0 0.0
        %3190 = vmatprep.subr.mxu0 0.0
        %3191 = vmatpush2.msra.mxu0 0.0
        %3192 = vmatprep.subr.mxu0 0.0
        %3193 = vmatpush2.msra.mxu0 0.0
        %3194 = vmatprep.subr.mxu0 0.0
        %3195 = vmatpush2.msra.mxu0 0.0
        %3196 = vmatprep.subr.mxu0 0.0
        %3197 = vmatpush2.msra.mxu0 0.0
        %3198 = vmatprep.subr.mxu0 0.0
        %3199 = vmatpush2.msra.mxu0 0.0
        %3200 = vmatprep.mubr.f32.mxu0 0.0
        %3201 = vmatmul.mubr.f32.gmra.mxu0 %v3134
        %v3202 = vpop.f32.mrf.mxu0
        %v3203 = vadd.f32 0.0, %v3202
        %v3204 = vpop.f32.mrf.mxu0
        %3205 = vdwg.mxu0
        %v3207 = vsel %vm2175, %v3057, 0
        %3209 = vmatprep.subr.mxu0 0.0
        %3210 = vmatpush1.msra.mxu0 0.0
        %3211 = vmatprep.subr.mxu0 0.0
        %3212 = vmatpush1.msra.mxu0 0.0
        %3213 = vmatprep.subr.mxu0 0.0
        %3214 = vmatpush1.msra.mxu0 0.0
        %3215 = vmatprep.subr.mxu0 0.0
        %3216 = vmatpush1.msra.mxu0 0.0
        %3217 = vmatprep.subr.mxu0 0.0
        %3218 = vmatpush1.msra.mxu0 0.0
        %3219 = vmatprep.subr.mxu0 0.0
        %3220 = vmatpush1.msra.mxu0 0.0
        %3221 = vmatprep.subr.mxu0 0.0
        %3222 = vmatpush1.msra.mxu0 0.0
        %3223 = vmatprep.subr.mxu0 0.0
        %3224 = vmatpush1.msra.mxu0 0.0
        %3225 = vmatprep.subr.mxu0 0.0
        %3226 = vmatpush1.msra.mxu0 0.0
        %3227 = vmatprep.subr.mxu0 0.0
        %3228 = vmatpush1.msra.mxu0 0.0
        %3229 = vmatprep.subr.mxu0 0.0
        %3230 = vmatpush1.msra.mxu0 0.0
        %3231 = vmatprep.subr.mxu0 0.0
        %3232 = vmatpush1.msra.mxu0 0.0
        %3233 = vmatprep.subr.mxu0 0.0
        %3234 = vmatpush1.msra.mxu0 0.0
        %3235 = vmatprep.subr.mxu0 0.0
        %3236 = vmatpush1.msra.mxu0 0.0
        %3237 = vmatprep.subr.mxu0 0.0
        %3238 = vmatpush1.msra.mxu0 %v2497
        %3239 = vmatprep.subr.mxu0 0.0
        %3240 = vmatpush1.msra.mxu0 %v2496
        %3241 = vmatprep.subr.mxu0 0.0
        %3242 = vmatpush2.msra.mxu0 0.0
        %3243 = vmatprep.subr.mxu0 0.0
        %3244 = vmatpush2.msra.mxu0 0.0
        %3245 = vmatprep.subr.mxu0 0.0
        %3246 = vmatpush2.msra.mxu0 0.0
        %3247 = vmatprep.subr.mxu0 0.0
        %3248 = vmatpush2.msra.mxu0 0.0
        %3249 = vmatprep.subr.mxu0 0.0
        %3250 = vmatpush2.msra.mxu0 0.0
        %3251 = vmatprep.subr.mxu0 0.0
        %3252 = vmatpush2.msra.mxu0 0.0
        %3253 = vmatprep.subr.mxu0 0.0
        %3254 = vmatpush2.msra.mxu0 0.0
        %3255 = vmatprep.subr.mxu0 0.0
        %3256 = vmatpush2.msra.mxu0 0.0
        %3257 = vmatprep.subr.mxu0 0.0
        %3258 = vmatpush2.msra.mxu0 0.0
        %3259 = vmatprep.subr.mxu0 0.0
        %3260 = vmatpush2.msra.mxu0 0.0
        %3261 = vmatprep.subr.mxu0 0.0
        %3262 = vmatpush2.msra.mxu0 0.0
        %3263 = vmatprep.subr.mxu0 0.0
        %3264 = vmatpush2.msra.mxu0 0.0
        %3265 = vmatprep.subr.mxu0 0.0
        %3266 = vmatpush2.msra.mxu0 0.0
        %3267 = vmatprep.subr.mxu0 0.0
        %3268 = vmatpush2.msra.mxu0 0.0
        %3269 = vmatprep.subr.mxu0 0.0
        %3270 = vmatpush2.msra.mxu0 0.0
        %3271 = vmatprep.subr.mxu0 0.0
        %3272 = vmatpush2.msra.mxu0 0.0
        %3273 = vmatprep.mubr.f32.mxu0 0.0
        %3274 = vmatmul.mubr.f32.gmra.mxu0 %v3207
        %v3275 = vpop.f32.mrf.mxu0
        %v3276 = vadd.f32 0.0, %v3275
        %v3277 = vpop.f32.mrf.mxu0
        %3278 = vdwg.mxu0
        %v3280 = vsel %vm2175, %v3059, 0
        %3282 = vmatprep.subr.mxu0 0.0
        %3283 = vmatpush1.msra.mxu0 0.0
        %3284 = vmatprep.subr.mxu0 0.0
        %3285 = vmatpush1.msra.mxu0 0.0
        %3286 = vmatprep.subr.mxu0 0.0
        %3287 = vmatpush1.msra.mxu0 0.0
        %3288 = vmatprep.subr.mxu0 0.0
        %3289 = vmatpush1.msra.mxu0 0.0
        %3290 = vmatprep.subr.mxu0 0.0
        %3291 = vmatpush1.msra.mxu0 0.0
        %3292 = vmatprep.subr.mxu0 0.0
        %3293 = vmatpush1.msra.mxu0 0.0
        %3294 = vmatprep.subr.mxu0 0.0
        %3295 = vmatpush1.msra.mxu0 0.0
        %3296 = vmatprep.subr.mxu0 0.0
        %3297 = vmatpush1.msra.mxu0 0.0
        %3298 = vmatprep.subr.mxu0 0.0
        %3299 = vmatpush1.msra.mxu0 0.0
        %3300 = vmatprep.subr.mxu0 0.0
        %3301 = vmatpush1.msra.mxu0 0.0
        %3302 = vmatprep.subr.mxu0 0.0
        %3303 = vmatpush1.msra.mxu0 0.0
        %3304 = vmatprep.subr.mxu0 0.0
        %3305 = vmatpush1.msra.mxu0 0.0
        %3306 = vmatprep.subr.mxu0 0.0
        %3307 = vmatpush1.msra.mxu0 0.0
        %3308 = vmatprep.subr.mxu0 0.0
        %3309 = vmatpush1.msra.mxu0 0.0
        %3310 = vmatprep.subr.mxu0 0.0
        %3311 = vmatpush1.msra.mxu0 %v2499
        %3312 = vmatprep.subr.mxu0 0.0
        %3313 = vmatpush1.msra.mxu0 %v2498
        %3314 = vmatprep.subr.mxu0 0.0
        %3315 = vmatpush2.msra.mxu0 0.0
        %3316 = vmatprep.subr.mxu0 0.0
        %3317 = vmatpush2.msra.mxu0 0.0
        %3318 = vmatprep.subr.mxu0 0.0
        %3319 = vmatpush2.msra.mxu0 0.0
        %3320 = vmatprep.subr.mxu0 0.0
        %3321 = vmatpush2.msra.mxu0 0.0
        %3322 = vmatprep.subr.mxu0 0.0
        %3323 = vmatpush2.msra.mxu0 0.0
        %3324 = vmatprep.subr.mxu0 0.0
        %3325 = vmatpush2.msra.mxu0 0.0
        %3326 = vmatprep.subr.mxu0 0.0
        %3327 = vmatpush2.msra.mxu0 0.0
        %3328 = vmatprep.subr.mxu0 0.0
        %3329 = vmatpush2.msra.mxu0 0.0
        %3330 = vmatprep.subr.mxu0 0.0
        %3331 = vmatpush2.msra.mxu0 0.0
        %3332 = vmatprep.subr.mxu0 0.0
        %3333 = vmatpush2.msra.mxu0 0.0
        %3334 = vmatprep.subr.mxu0 0.0
        %3335 = vmatpush2.msra.mxu0 0.0
        %3336 = vmatprep.subr.mxu0 0.0
        %3337 = vmatpush2.msra.mxu0 0.0
        %3338 = vmatprep.subr.mxu0 0.0
        %3339 = vmatpush2.msra.mxu0 0.0
        %3340 = vmatprep.subr.mxu0 0.0
        %3341 = vmatpush2.msra.mxu0 0.0
        %3342 = vmatprep.subr.mxu0 0.0
        %3343 = vmatpush2.msra.mxu0 0.0
        %3344 = vmatprep.subr.mxu0 0.0
        %3345 = vmatpush2.msra.mxu0 0.0
        %3346 = vmatprep.mubr.f32.mxu0 0.0
        %3347 = vmatmul.mubr.f32.gmra.mxu0 %v3280
        %v3348 = vpop.f32.mrf.mxu0
        %v3349 = vadd.f32 0.0, %v3348
        %v3350 = vpop.f32.mrf.mxu0
        %3351 = vdwg.mxu0
        %v3352 = vadd.f32 %v464, %v3130
        %v3353 = vadd.f32 %v465, %v3203
        %v3354 = vadd.f32 %v466, %v3276
        %v3355 = vadd.f32 %v467, %v3349
        %3356 = vst.msk [vmem:[%s440] sm:$0xff] %vm505, %v3352
        %3357 = vst.msk [vmem:[%s440 + $0x8] sm:$0xff] %vm505, %v3353
        %3358 = vst.msk [vmem:[%s440 + $0x10] sm:$0xff] %vm505, %v3354
        %3359 = vst.msk [vmem:[%s440 + $0x18] sm:$0xff] %vm505, %v3355
        %v3360 = vld [vmem:[%s4 + $0x8] sm:$0xff]
        %v3361 = vld [vmem:[%s4 + $0x28] sm:$0xff]
        %v3362 = vld [vmem:[%s4 + $0x48] sm:$0xff]
        %v3363 = vld [vmem:[%s4 + $0x68] sm:$0xff]
        %v3364 = vld [vmem:[%s5 + $0x1] sm:$0x1]
        %v3366 = vlaneseq
        %v3367 = vshrl.u32 %v3366, 7
        %v3368 = vsub.s32 0, %v3367
        %v3369 = vrot.slane %v3364, %v3368
        %3371 = vmatprep.subr.mxu0 0.0
        %3372 = vmatpush1.msra.mxu0 0.0
        %3373 = vmatprep.subr.mxu0 0.0
        %3374 = vmatpush1.msra.mxu0 0.0
        %3375 = vmatprep.subr.mxu0 0.0
        %3376 = vmatpush1.msra.mxu0 0.0
        %3377 = vmatprep.subr.mxu0 0.0
        %3378 = vmatpush1.msra.mxu0 0.0
        %3379 = vmatprep.subr.mxu0 0.0
        %3380 = vmatpush1.msra.mxu0 0.0
        %3381 = vmatprep.subr.mxu0 0.0
        %3382 = vmatpush1.msra.mxu0 0.0
        %3383 = vmatprep.subr.mxu0 0.0
        %3384 = vmatpush1.msra.mxu0 0.0
        %3385 = vmatprep.subr.mxu0 0.0
        %3386 = vmatpush1.msra.mxu0 0.0
        %3387 = vmatprep.subr.mxu0 0.0
        %3388 = vmatpush1.msra.mxu0 0.0
        %3389 = vmatprep.subr.mxu0 0.0
        %3390 = vmatpush1.msra.mxu0 0.0
        %3391 = vmatprep.subr.mxu0 0.0
        %3392 = vmatpush1.msra.mxu0 0.0
        %3393 = vmatprep.subr.mxu0 0.0
        %3394 = vmatpush1.msra.mxu0 0.0
        %3395 = vmatprep.subr.mxu0 0.0
        %3396 = vmatpush1.msra.mxu0 %v3363
        %3397 = vmatprep.subr.mxu0 0.0
        %3398 = vmatpush1.msra.mxu0 %v3362
        %3399 = vmatprep.subr.mxu0 0.0
        %3400 = vmatpush1.msra.mxu0 %v3361
        %3401 = vmatprep.subr.mxu0 0.0
        %3402 = vmatpush1.msra.mxu0 %v3360
        %3403 = vmatprep.subr.mxu0 0.0
        %3404 = vmatpush2.msra.mxu0 0.0
        %3405 = vmatprep.subr.mxu0 0.0
        %3406 = vmatpush2.msra.mxu0 0.0
        %3407 = vmatprep.subr.mxu0 0.0
        %3408 = vmatpush2.msra.mxu0 0.0
        %3409 = vmatprep.subr.mxu0 0.0
        %3410 = vmatpush2.msra.mxu0 0.0
        %3411 = vmatprep.subr.mxu0 0.0
        %3412 = vmatpush2.msra.mxu0 0.0
        %3413 = vmatprep.subr.mxu0 0.0
        %3414 = vmatpush2.msra.mxu0 0.0
        %3415 = vmatprep.subr.mxu0 0.0
        %3416 = vmatpush2.msra.mxu0 0.0
        %3417 = vmatprep.subr.mxu0 0.0
        %3418 = vmatpush2.msra.mxu0 0.0
        %3419 = vmatprep.subr.mxu0 0.0
        %3420 = vmatpush2.msra.mxu0 0.0
        %3421 = vmatprep.subr.mxu0 0.0
        %3422 = vmatpush2.msra.mxu0 0.0
        %3423 = vmatprep.subr.mxu0 0.0
        %3424 = vmatpush2.msra.mxu0 0.0
        %3425 = vmatprep.subr.mxu0 0.0
        %3426 = vmatpush2.msra.mxu0 0.0
        %3427 = vmatprep.subr.mxu0 0.0
        %3428 = vmatpush2.msra.mxu0 0.0
        %3429 = vmatprep.subr.mxu0 0.0
        %3430 = vmatpush2.msra.mxu0 0.0
        %3431 = vmatprep.subr.mxu0 0.0
        %3432 = vmatpush2.msra.mxu0 0.0
        %3433 = vmatprep.subr.mxu0 0.0
        %3434 = vmatpush2.msra.mxu0 0.0
        %3435 = vmatprep.mubr.f32.mxu0 0.0
        %3436 = vmatmul.mubr.f32.gmra.mxu0 %v1159
        %v3437 = vpop.f32.mrf.mxu0
        %v3438 = vadd.f32 %v3369, %v3437
        %v3439 = vpop.f32.mrf.mxu0
        %3440 = vmatprep.mubr.f32.mxu0 0.0
        %3441 = vmatmul.mubr.f32.gmra.mxu0 %v1162
        %v3442 = vpop.f32.mrf.mxu0
        %v3443 = vadd.f32 %v3369, %v3442
        %v3444 = vpop.f32.mrf.mxu0
        %3445 = vmatprep.mubr.f32.mxu0 0.0
        %3446 = vmatmul.mubr.f32.gmra.mxu0 %v1165
        %v3447 = vpop.f32.mrf.mxu0
        %v3448 = vadd.f32 %v3369, %v3447
        %v3449 = vpop.f32.mrf.mxu0
        %3450 = vmatprep.mubr.f32.mxu0 0.0
        %3451 = vmatmul.mubr.f32.gmra.mxu0 %v1168
        %v3452 = vpop.f32.mrf.mxu0
        %v3453 = vadd.f32 %v3369, %v3452
        %v3454 = vpop.f32.mrf.mxu0
        %3455 = vdwg.mxu0
        %3456 = vmatprep.subr.mxu0 0.0
        %3457 = vmatpush1.xpose.msra.mxu0 0.0
        %3458 = vmatprep.subr.mxu0 0.0
        %3459 = vmatpush1.xpose.msra.mxu0 0.0
        %3460 = vmatprep.subr.mxu0 0.0
        %3461 = vmatpush1.xpose.msra.mxu0 0.0
        %3462 = vmatprep.subr.mxu0 0.0
        %3463 = vmatpush1.xpose.msra.mxu0 0.0
        %3464 = vmatprep.subr.mxu0 0.0
        %3465 = vmatpush1.xpose.msra.mxu0 0.0
        %3466 = vmatprep.subr.mxu0 0.0
        %3467 = vmatpush1.xpose.msra.mxu0 0.0
        %3468 = vmatprep.subr.mxu0 0.0
        %3469 = vmatpush1.xpose.msra.mxu0 0.0
        %3470 = vmatprep.subr.mxu0 0.0
        %3471 = vmatpush1.xpose.msra.mxu0 0.0
        %3472 = vmatprep.subr.mxu0 0.0
        %3473 = vmatpush1.xpose.msra.mxu0 0.0
        %3474 = vmatprep.subr.mxu0 0.0
        %3475 = vmatpush1.xpose.msra.mxu0 0.0
        %3476 = vmatprep.subr.mxu0 0.0
        %3477 = vmatpush1.xpose.msra.mxu0 0.0
        %3478 = vmatprep.subr.mxu0 0.0
        %3479 = vmatpush1.xpose.msra.mxu0 0.0
        %3480 = vmatprep.subr.mxu0 0.0
        %3481 = vmatpush1.xpose.msra.mxu0 0.0
        %3482 = vmatprep.subr.mxu0 0.0
        %3483 = vmatpush1.xpose.msra.mxu0 0.0
        %3484 = vmatprep.subr.mxu0 0.0
        %3485 = vmatpush1.xpose.msra.mxu0 %v2607
        %3486 = vmatprep.subr.mxu0 0.0
        %3487 = vmatpush1.xpose.msra.mxu0 %v2602
        %3488 = vmatprep.subr.mxu0 0.0
        %3489 = vmatpush2.xpose.msra.mxu0 0.0
        %3490 = vmatprep.subr.mxu0 0.0
        %3491 = vmatpush2.xpose.msra.mxu0 0.0
        %3492 = vmatprep.subr.mxu0 0.0
        %3493 = vmatpush2.xpose.msra.mxu0 0.0
        %3494 = vmatprep.subr.mxu0 0.0
        %3495 = vmatpush2.xpose.msra.mxu0 0.0
        %3496 = vmatprep.subr.mxu0 0.0
        %3497 = vmatpush2.xpose.msra.mxu0 0.0
        %3498 = vmatprep.subr.mxu0 0.0
        %3499 = vmatpush2.xpose.msra.mxu0 0.0
        %3500 = vmatprep.subr.mxu0 0.0
        %3501 = vmatpush2.xpose.msra.mxu0 0.0
        %3502 = vmatprep.subr.mxu0 0.0
        %3503 = vmatpush2.xpose.msra.mxu0 0.0
        %3504 = vmatprep.subr.mxu0 0.0
        %3505 = vmatpush2.xpose.msra.mxu0 0.0
        %3506 = vmatprep.subr.mxu0 0.0
        %3507 = vmatpush2.xpose.msra.mxu0 0.0
        %3508 = vmatprep.subr.mxu0 0.0
        %3509 = vmatpush2.xpose.msra.mxu0 0.0
        %3510 = vmatprep.subr.mxu0 0.0
        %3511 = vmatpush2.xpose.msra.mxu0 0.0
        %3512 = vmatprep.subr.mxu0 0.0
        %3513 = vmatpush2.xpose.msra.mxu0 0.0
        %3514 = vmatprep.subr.mxu0 0.0
        %3515 = vmatpush2.xpose.msra.mxu0 0.0
        %3516 = vmatprep.subr.mxu0 0.0
        %3517 = vmatpush2.xpose.msra.mxu0 0.0
        %3518 = vmatprep.subr.mxu0 0.0
        %3519 = vmatpush2.xpose.msra.mxu0 0.0
        %3520 = vmatprep.mubr.f32.mxu0 0.0
        %3521 = vmatmul.mubr.f32.gmra.mxu0 %v3438
        %v3522 = vpop.f32.mrf.mxu0
        %v3523 = vadd.f32 0.0, %v3522
        %v3524 = vpop.f32.mrf.mxu0
        %3525 = vdwg.mxu0
        %3526 = vmatprep.subr.mxu0 0.0
        %3527 = vmatpush1.xpose.msra.mxu0 0.0
        %3528 = vmatprep.subr.mxu0 0.0
        %3529 = vmatpush1.xpose.msra.mxu0 0.0
        %3530 = vmatprep.subr.mxu0 0.0
        %3531 = vmatpush1.xpose.msra.mxu0 0.0
        %3532 = vmatprep.subr.mxu0 0.0
        %3533 = vmatpush1.xpose.msra.mxu0 0.0
        %3534 = vmatprep.subr.mxu0 0.0
        %3535 = vmatpush1.xpose.msra.mxu0 0.0
        %3536 = vmatprep.subr.mxu0 0.0
        %3537 = vmatpush1.xpose.msra.mxu0 0.0
        %3538 = vmatprep.subr.mxu0 0.0
        %3539 = vmatpush1.xpose.msra.mxu0 0.0
        %3540 = vmatprep.subr.mxu0 0.0
        %3541 = vmatpush1.xpose.msra.mxu0 0.0
        %3542 = vmatprep.subr.mxu0 0.0
        %3543 = vmatpush1.xpose.msra.mxu0 0.0
        %3544 = vmatprep.subr.mxu0 0.0
        %3545 = vmatpush1.xpose.msra.mxu0 0.0
        %3546 = vmatprep.subr.mxu0 0.0
        %3547 = vmatpush1.xpose.msra.mxu0 0.0
        %3548 = vmatprep.subr.mxu0 0.0
        %3549 = vmatpush1.xpose.msra.mxu0 0.0
        %3550 = vmatprep.subr.mxu0 0.0
        %3551 = vmatpush1.xpose.msra.mxu0 0.0
        %3552 = vmatprep.subr.mxu0 0.0
        %3553 = vmatpush1.xpose.msra.mxu0 0.0
        %3554 = vmatprep.subr.mxu0 0.0
        %3555 = vmatpush1.xpose.msra.mxu0 %v2617
        %3556 = vmatprep.subr.mxu0 0.0
        %3557 = vmatpush1.xpose.msra.mxu0 %v2612
        %3558 = vmatprep.subr.mxu0 0.0
        %3559 = vmatpush2.xpose.msra.mxu0 0.0
        %3560 = vmatprep.subr.mxu0 0.0
        %3561 = vmatpush2.xpose.msra.mxu0 0.0
        %3562 = vmatprep.subr.mxu0 0.0
        %3563 = vmatpush2.xpose.msra.mxu0 0.0
        %3564 = vmatprep.subr.mxu0 0.0
        %3565 = vmatpush2.xpose.msra.mxu0 0.0
        %3566 = vmatprep.subr.mxu0 0.0
        %3567 = vmatpush2.xpose.msra.mxu0 0.0
        %3568 = vmatprep.subr.mxu0 0.0
        %3569 = vmatpush2.xpose.msra.mxu0 0.0
        %3570 = vmatprep.subr.mxu0 0.0
        %3571 = vmatpush2.xpose.msra.mxu0 0.0
        %3572 = vmatprep.subr.mxu0 0.0
        %3573 = vmatpush2.xpose.msra.mxu0 0.0
        %3574 = vmatprep.subr.mxu0 0.0
        %3575 = vmatpush2.xpose.msra.mxu0 0.0
        %3576 = vmatprep.subr.mxu0 0.0
        %3577 = vmatpush2.xpose.msra.mxu0 0.0
        %3578 = vmatprep.subr.mxu0 0.0
        %3579 = vmatpush2.xpose.msra.mxu0 0.0
        %3580 = vmatprep.subr.mxu0 0.0
        %3581 = vmatpush2.xpose.msra.mxu0 0.0
        %3582 = vmatprep.subr.mxu0 0.0
        %3583 = vmatpush2.xpose.msra.mxu0 0.0
        %3584 = vmatprep.subr.mxu0 0.0
        %3585 = vmatpush2.xpose.msra.mxu0 0.0
        %3586 = vmatprep.subr.mxu0 0.0
        %3587 = vmatpush2.xpose.msra.mxu0 0.0
        %3588 = vmatprep.subr.mxu0 0.0
        %3589 = vmatpush2.xpose.msra.mxu0 0.0
        %3590 = vmatprep.mubr.f32.mxu0 0.0
        %3591 = vmatmul.mubr.f32.gmra.mxu0 %v3443
        %v3592 = vpop.f32.mrf.mxu0
        %v3593 = vadd.f32 0.0, %v3592
        %v3594 = vpop.f32.mrf.mxu0
        %3595 = vdwg.mxu0
        %3596 = vmatprep.subr.mxu0 0.0
        %3597 = vmatpush1.xpose.msra.mxu0 0.0
        %3598 = vmatprep.subr.mxu0 0.0
        %3599 = vmatpush1.xpose.msra.mxu0 0.0
        %3600 = vmatprep.subr.mxu0 0.0
        %3601 = vmatpush1.xpose.msra.mxu0 0.0
        %3602 = vmatprep.subr.mxu0 0.0
        %3603 = vmatpush1.xpose.msra.mxu0 0.0
        %3604 = vmatprep.subr.mxu0 0.0
        %3605 = vmatpush1.xpose.msra.mxu0 0.0
        %3606 = vmatprep.subr.mxu0 0.0
        %3607 = vmatpush1.xpose.msra.mxu0 0.0
        %3608 = vmatprep.subr.mxu0 0.0
        %3609 = vmatpush1.xpose.msra.mxu0 0.0
        %3610 = vmatprep.subr.mxu0 0.0
        %3611 = vmatpush1.xpose.msra.mxu0 0.0
        %3612 = vmatprep.subr.mxu0 0.0
        %3613 = vmatpush1.xpose.msra.mxu0 0.0
        %3614 = vmatprep.subr.mxu0 0.0
        %3615 = vmatpush1.xpose.msra.mxu0 0.0
        %3616 = vmatprep.subr.mxu0 0.0
        %3617 = vmatpush1.xpose.msra.mxu0 0.0
        %3618 = vmatprep.subr.mxu0 0.0
        %3619 = vmatpush1.xpose.msra.mxu0 0.0
        %3620 = vmatprep.subr.mxu0 0.0
        %3621 = vmatpush1.xpose.msra.mxu0 0.0
        %3622 = vmatprep.subr.mxu0 0.0
        %3623 = vmatpush1.xpose.msra.mxu0 0.0
        %3624 = vmatprep.subr.mxu0 0.0
        %3625 = vmatpush1.xpose.msra.mxu0 %v2627
        %3626 = vmatprep.subr.mxu0 0.0
        %3627 = vmatpush1.xpose.msra.mxu0 %v2622
        %3628 = vmatprep.subr.mxu0 0.0
        %3629 = vmatpush2.xpose.msra.mxu0 0.0
        %3630 = vmatprep.subr.mxu0 0.0
        %3631 = vmatpush2.xpose.msra.mxu0 0.0
        %3632 = vmatprep.subr.mxu0 0.0
        %3633 = vmatpush2.xpose.msra.mxu0 0.0
        %3634 = vmatprep.subr.mxu0 0.0
        %3635 = vmatpush2.xpose.msra.mxu0 0.0
        %3636 = vmatprep.subr.mxu0 0.0
        %3637 = vmatpush2.xpose.msra.mxu0 0.0
        %3638 = vmatprep.subr.mxu0 0.0
        %3639 = vmatpush2.xpose.msra.mxu0 0.0
        %3640 = vmatprep.subr.mxu0 0.0
        %3641 = vmatpush2.xpose.msra.mxu0 0.0
        %3642 = vmatprep.subr.mxu0 0.0
        %3643 = vmatpush2.xpose.msra.mxu0 0.0
        %3644 = vmatprep.subr.mxu0 0.0
        %3645 = vmatpush2.xpose.msra.mxu0 0.0
        %3646 = vmatprep.subr.mxu0 0.0
        %3647 = vmatpush2.xpose.msra.mxu0 0.0
        %3648 = vmatprep.subr.mxu0 0.0
        %3649 = vmatpush2.xpose.msra.mxu0 0.0
        %3650 = vmatprep.subr.mxu0 0.0
        %3651 = vmatpush2.xpose.msra.mxu0 0.0
        %3652 = vmatprep.subr.mxu0 0.0
        %3653 = vmatpush2.xpose.msra.mxu0 0.0
        %3654 = vmatprep.subr.mxu0 0.0
        %3655 = vmatpush2.xpose.msra.mxu0 0.0
        %3656 = vmatprep.subr.mxu0 0.0
        %3657 = vmatpush2.xpose.msra.mxu0 0.0
        %3658 = vmatprep.subr.mxu0 0.0
        %3659 = vmatpush2.xpose.msra.mxu0 0.0
        %3660 = vmatprep.mubr.f32.mxu0 0.0
        %3661 = vmatmul.mubr.f32.gmra.mxu0 %v3448
        %v3662 = vpop.f32.mrf.mxu0
        %v3663 = vadd.f32 0.0, %v3662
        %v3664 = vpop.f32.mrf.mxu0
        %3665 = vdwg.mxu0
        %3666 = vmatprep.subr.mxu0 0.0
        %3667 = vmatpush1.xpose.msra.mxu0 0.0
        %3668 = vmatprep.subr.mxu0 0.0
        %3669 = vmatpush1.xpose.msra.mxu0 0.0
        %3670 = vmatprep.subr.mxu0 0.0
        %3671 = vmatpush1.xpose.msra.mxu0 0.0
        %3672 = vmatprep.subr.mxu0 0.0
        %3673 = vmatpush1.xpose.msra.mxu0 0.0
        %3674 = vmatprep.subr.mxu0 0.0
        %3675 = vmatpush1.xpose.msra.mxu0 0.0
        %3676 = vmatprep.subr.mxu0 0.0
        %3677 = vmatpush1.xpose.msra.mxu0 0.0
        %3678 = vmatprep.subr.mxu0 0.0
        %3679 = vmatpush1.xpose.msra.mxu0 0.0
        %3680 = vmatprep.subr.mxu0 0.0
        %3681 = vmatpush1.xpose.msra.mxu0 0.0
        %3682 = vmatprep.subr.mxu0 0.0
        %3683 = vmatpush1.xpose.msra.mxu0 0.0
        %3684 = vmatprep.subr.mxu0 0.0
        %3685 = vmatpush1.xpose.msra.mxu0 0.0
        %3686 = vmatprep.subr.mxu0 0.0
        %3687 = vmatpush1.xpose.msra.mxu0 0.0
        %3688 = vmatprep.subr.mxu0 0.0
        %3689 = vmatpush1.xpose.msra.mxu0 0.0
        %3690 = vmatprep.subr.mxu0 0.0
        %3691 = vmatpush1.xpose.msra.mxu0 0.0
        %3692 = vmatprep.subr.mxu0 0.0
        %3693 = vmatpush1.xpose.msra.mxu0 0.0
        %3694 = vmatprep.subr.mxu0 0.0
        %3695 = vmatpush1.xpose.msra.mxu0 %v2637
        %3696 = vmatprep.subr.mxu0 0.0
        %3697 = vmatpush1.xpose.msra.mxu0 %v2632
        %3698 = vmatprep.subr.mxu0 0.0
        %3699 = vmatpush2.xpose.msra.mxu0 0.0
        %3700 = vmatprep.subr.mxu0 0.0
        %3701 = vmatpush2.xpose.msra.mxu0 0.0
        %3702 = vmatprep.subr.mxu0 0.0
        %3703 = vmatpush2.xpose.msra.mxu0 0.0
        %3704 = vmatprep.subr.mxu0 0.0
        %3705 = vmatpush2.xpose.msra.mxu0 0.0
        %3706 = vmatprep.subr.mxu0 0.0
        %3707 = vmatpush2.xpose.msra.mxu0 0.0
        %3708 = vmatprep.subr.mxu0 0.0
        %3709 = vmatpush2.xpose.msra.mxu0 0.0
        %3710 = vmatprep.subr.mxu0 0.0
        %3711 = vmatpush2.xpose.msra.mxu0 0.0
        %3712 = vmatprep.subr.mxu0 0.0
        %3713 = vmatpush2.xpose.msra.mxu0 0.0
        %3714 = vmatprep.subr.mxu0 0.0
        %3715 = vmatpush2.xpose.msra.mxu0 0.0
        %3716 = vmatprep.subr.mxu0 0.0
        %3717 = vmatpush2.xpose.msra.mxu0 0.0
        %3718 = vmatprep.subr.mxu0 0.0
        %3719 = vmatpush2.xpose.msra.mxu0 0.0
        %3720 = vmatprep.subr.mxu0 0.0
        %3721 = vmatpush2.xpose.msra.mxu0 0.0
        %3722 = vmatprep.subr.mxu0 0.0
        %3723 = vmatpush2.xpose.msra.mxu0 0.0
        %3724 = vmatprep.subr.mxu0 0.0
        %3725 = vmatpush2.xpose.msra.mxu0 0.0
        %3726 = vmatprep.subr.mxu0 0.0
        %3727 = vmatpush2.xpose.msra.mxu0 0.0
        %3728 = vmatprep.subr.mxu0 0.0
        %3729 = vmatpush2.xpose.msra.mxu0 0.0
        %3730 = vmatprep.mubr.f32.mxu0 0.0
        %3731 = vmatmul.mubr.f32.gmra.mxu0 %v3453
        %v3732 = vpop.f32.mrf.mxu0
        %v3733 = vadd.f32 0.0, %v3732
        %v3734 = vpop.f32.mrf.mxu0
        %3735 = vdwg.mxu0
        %v3736 = vsel %vm2175, %v3523, -inf
        %3737 = vmax.xlane.f32.xlu0 %v3736
        %v3738 = vpop.xlane.xlu0 %3737
        %v3739 = vsel %vm2175, %v3593, -inf
        %3740 = vmax.xlane.f32.xlu0 %v3739
        %v3741 = vpop.xlane.xlu0 %3740
        %v3742 = vsel %vm2175, %v3663, -inf
        %3743 = vmax.xlane.f32.xlu0 %v3742
        %v3744 = vpop.xlane.xlu0 %3743
        %v3745 = vsel %vm2175, %v3733, -inf
        %3746 = vmax.xlane.f32.xlu0 %v3745
        %v3747 = vpop.xlane.xlu0 %3746
        %v3748 = vsub.f32 %v3523, %v3738
        %v3749 = vsub.f32 %v3593, %v3741
        %v3750 = vsub.f32 %v3663, %v3744
        %v3751 = vsub.f32 %v3733, %v3747
        %v3752 = vmul.f32 %v3748, 1.442695
        %v3753 = vpow.pop %v3752
        %v3754 = vmul.f32 %v3749, 1.442695
        %v3755 = vpow.pop %v3754
        %v3756 = vmul.f32 %v3750, 1.442695
        %v3757 = vpow.pop %v3756
        %v3758 = vmul.f32 %v3751, 1.442695
        %v3759 = vpow.pop %v3758
        %v3760 = vsel %vm2175, %v3753, 0.0
        %3761 = vadd.xlane.f32.xlu0 %v3760
        %v3762 = vpop.xlane.xlu0 %3761
        %v3763 = vsel %vm2175, %v3755, 0.0
        %3764 = vadd.xlane.f32.xlu0 %v3763
        %v3765 = vpop.xlane.xlu0 %3764
        %v3766 = vsel %vm2175, %v3757, 0.0
        %3767 = vadd.xlane.f32.xlu0 %v3766
        %v3768 = vpop.xlane.xlu0 %3767
        %v3769 = vsel %vm2175, %v3759, 0.0
        %3770 = vadd.xlane.f32.xlu0 %v3769
        %v3771 = vpop.xlane.xlu0 %3770
        %v3772 = vrcp.pop %v3762
        %v3773 = vmul.f32 %v3753, %v3772
        %v3774 = vrcp.pop %v3765
        %v3775 = vmul.f32 %v3755, %v3774
        %v3776 = vrcp.pop %v3768
        %v3777 = vmul.f32 %v3757, %v3776
        %v3778 = vrcp.pop %v3771
        %v3779 = vmul.f32 %v3759, %v3778
        %v3781 = vsel %vm2175, %v3773, 0
        %3783 = vmatprep.subr.mxu0 0.0
        %3784 = vmatpush1.msra.mxu0 0.0
        %3785 = vmatprep.subr.mxu0 0.0
        %3786 = vmatpush1.msra.mxu0 0.0
        %3787 = vmatprep.subr.mxu0 0.0
        %3788 = vmatpush1.msra.mxu0 0.0
        %3789 = vmatprep.subr.mxu0 0.0
        %3790 = vmatpush1.msra.mxu0 0.0
        %3791 = vmatprep.subr.mxu0 0.0
        %3792 = vmatpush1.msra.mxu0 0.0
        %3793 = vmatprep.subr.mxu0 0.0
        %3794 = vmatpush1.msra.mxu0 0.0
        %3795 = vmatprep.subr.mxu0 0.0
        %3796 = vmatpush1.msra.mxu0 0.0
        %3797 = vmatprep.subr.mxu0 0.0
        %3798 = vmatpush1.msra.mxu0 0.0
        %3799 = vmatprep.subr.mxu0 0.0
        %3800 = vmatpush1.msra.mxu0 0.0
        %3801 = vmatprep.subr.mxu0 0.0
        %3802 = vmatpush1.msra.mxu0 0.0
        %3803 = vmatprep.subr.mxu0 0.0
        %3804 = vmatpush1.msra.mxu0 0.0
        %3805 = vmatprep.subr.mxu0 0.0
        %3806 = vmatpush1.msra.mxu0 0.0
        %3807 = vmatprep.subr.mxu0 0.0
        %3808 = vmatpush1.msra.mxu0 0.0
        %3809 = vmatprep.subr.mxu0 0.0
        %3810 = vmatpush1.msra.mxu0 0.0
        %3811 = vmatprep.subr.mxu0 0.0
        %3812 = vmatpush1.msra.mxu0 %v2493
        %3813 = vmatprep.subr.mxu0 0.0
        %3814 = vmatpush1.msra.mxu0 %v2492
        %3815 = vmatprep.subr.mxu0 0.0
        %3816 = vmatpush2.msra.mxu0 0.0
        %3817 = vmatprep.subr.mxu0 0.0
        %3818 = vmatpush2.msra.mxu0 0.0
        %3819 = vmatprep.subr.mxu0 0.0
        %3820 = vmatpush2.msra.mxu0 0.0
        %3821 = vmatprep.subr.mxu0 0.0
        %3822 = vmatpush2.msra.mxu0 0.0
        %3823 = vmatprep.subr.mxu0 0.0
        %3824 = vmatpush2.msra.mxu0 0.0
        %3825 = vmatprep.subr.mxu0 0.0
        %3826 = vmatpush2.msra.mxu0 0.0
        %3827 = vmatprep.subr.mxu0 0.0
        %3828 = vmatpush2.msra.mxu0 0.0
        %3829 = vmatprep.subr.mxu0 0.0
        %3830 = vmatpush2.msra.mxu0 0.0
        %3831 = vmatprep.subr.mxu0 0.0
        %3832 = vmatpush2.msra.mxu0 0.0
        %3833 = vmatprep.subr.mxu0 0.0
        %3834 = vmatpush2.msra.mxu0 0.0
        %3835 = vmatprep.subr.mxu0 0.0
        %3836 = vmatpush2.msra.mxu0 0.0
        %3837 = vmatprep.subr.mxu0 0.0
        %3838 = vmatpush2.msra.mxu0 0.0
        %3839 = vmatprep.subr.mxu0 0.0
        %3840 = vmatpush2.msra.mxu0 0.0
        %3841 = vmatprep.subr.mxu0 0.0
        %3842 = vmatpush2.msra.mxu0 0.0
        %3843 = vmatprep.subr.mxu0 0.0
        %3844 = vmatpush2.msra.mxu0 0.0
        %3845 = vmatprep.subr.mxu0 0.0
        %3846 = vmatpush2.msra.mxu0 0.0
        %3847 = vmatprep.mubr.f32.mxu0 0.0
        %3848 = vmatmul.mubr.f32.gmra.mxu0 %v3781
        %v3849 = vpop.f32.mrf.mxu0
        %v3850 = vadd.f32 0.0, %v3849
        %v3851 = vpop.f32.mrf.mxu0
        %3852 = vdwg.mxu0
        %v3854 = vsel %vm2175, %v3775, 0
        %3856 = vmatprep.subr.mxu0 0.0
        %3857 = vmatpush1.msra.mxu0 0.0
        %3858 = vmatprep.subr.mxu0 0.0
        %3859 = vmatpush1.msra.mxu0 0.0
        %3860 = vmatprep.subr.mxu0 0.0
        %3861 = vmatpush1.msra.mxu0 0.0
        %3862 = vmatprep.subr.mxu0 0.0
        %3863 = vmatpush1.msra.mxu0 0.0
        %3864 = vmatprep.subr.mxu0 0.0
        %3865 = vmatpush1.msra.mxu0 0.0
        %3866 = vmatprep.subr.mxu0 0.0
        %3867 = vmatpush1.msra.mxu0 0.0
        %3868 = vmatprep.subr.mxu0 0.0
        %3869 = vmatpush1.msra.mxu0 0.0
        %3870 = vmatprep.subr.mxu0 0.0
        %3871 = vmatpush1.msra.mxu0 0.0
        %3872 = vmatprep.subr.mxu0 0.0
        %3873 = vmatpush1.msra.mxu0 0.0
        %3874 = vmatprep.subr.mxu0 0.0
        %3875 = vmatpush1.msra.mxu0 0.0
        %3876 = vmatprep.subr.mxu0 0.0
        %3877 = vmatpush1.msra.mxu0 0.0
        %3878 = vmatprep.subr.mxu0 0.0
        %3879 = vmatpush1.msra.mxu0 0.0
        %3880 = vmatprep.subr.mxu0 0.0
        %3881 = vmatpush1.msra.mxu0 0.0
        %3882 = vmatprep.subr.mxu0 0.0
        %3883 = vmatpush1.msra.mxu0 0.0
        %3884 = vmatprep.subr.mxu0 0.0
        %3885 = vmatpush1.msra.mxu0 %v2495
        %3886 = vmatprep.subr.mxu0 0.0
        %3887 = vmatpush1.msra.mxu0 %v2494
        %3888 = vmatprep.subr.mxu0 0.0
        %3889 = vmatpush2.msra.mxu0 0.0
        %3890 = vmatprep.subr.mxu0 0.0
        %3891 = vmatpush2.msra.mxu0 0.0
        %3892 = vmatprep.subr.mxu0 0.0
        %3893 = vmatpush2.msra.mxu0 0.0
        %3894 = vmatprep.subr.mxu0 0.0
        %3895 = vmatpush2.msra.mxu0 0.0
        %3896 = vmatprep.subr.mxu0 0.0
        %3897 = vmatpush2.msra.mxu0 0.0
        %3898 = vmatprep.subr.mxu0 0.0
        %3899 = vmatpush2.msra.mxu0 0.0
        %3900 = vmatprep.subr.mxu0 0.0
        %3901 = vmatpush2.msra.mxu0 0.0
        %3902 = vmatprep.subr.mxu0 0.0
        %3903 = vmatpush2.msra.mxu0 0.0
        %3904 = vmatprep.subr.mxu0 0.0
        %3905 = vmatpush2.msra.mxu0 0.0
        %3906 = vmatprep.subr.mxu0 0.0
        %3907 = vmatpush2.msra.mxu0 0.0
        %3908 = vmatprep.subr.mxu0 0.0
        %3909 = vmatpush2.msra.mxu0 0.0
        %3910 = vmatprep.subr.mxu0 0.0
        %3911 = vmatpush2.msra.mxu0 0.0
        %3912 = vmatprep.subr.mxu0 0.0
        %3913 = vmatpush2.msra.mxu0 0.0
        %3914 = vmatprep.subr.mxu0 0.0
        %3915 = vmatpush2.msra.mxu0 0.0
        %3916 = vmatprep.subr.mxu0 0.0
        %3917 = vmatpush2.msra.mxu0 0.0
        %3918 = vmatprep.subr.mxu0 0.0
        %3919 = vmatpush2.msra.mxu0 0.0
        %3920 = vmatprep.mubr.f32.mxu0 0.0
        %3921 = vmatmul.mubr.f32.gmra.mxu0 %v3854
        %v3922 = vpop.f32.mrf.mxu0
        %v3923 = vadd.f32 0.0, %v3922
        %v3924 = vpop.f32.mrf.mxu0
        %3925 = vdwg.mxu0
        %v3927 = vsel %vm2175, %v3777, 0
        %3929 = vmatprep.subr.mxu0 0.0
        %3930 = vmatpush1.msra.mxu0 0.0
        %3931 = vmatprep.subr.mxu0 0.0
        %3932 = vmatpush1.msra.mxu0 0.0
        %3933 = vmatprep.subr.mxu0 0.0
        %3934 = vmatpush1.msra.mxu0 0.0
        %3935 = vmatprep.subr.mxu0 0.0
        %3936 = vmatpush1.msra.mxu0 0.0
        %3937 = vmatprep.subr.mxu0 0.0
        %3938 = vmatpush1.msra.mxu0 0.0
        %3939 = vmatprep.subr.mxu0 0.0
        %3940 = vmatpush1.msra.mxu0 0.0
        %3941 = vmatprep.subr.mxu0 0.0
        %3942 = vmatpush1.msra.mxu0 0.0
        %3943 = vmatprep.subr.mxu0 0.0
        %3944 = vmatpush1.msra.mxu0 0.0
        %3945 = vmatprep.subr.mxu0 0.0
        %3946 = vmatpush1.msra.mxu0 0.0
        %3947 = vmatprep.subr.mxu0 0.0
        %3948 = vmatpush1.msra.mxu0 0.0
        %3949 = vmatprep.subr.mxu0 0.0
        %3950 = vmatpush1.msra.mxu0 0.0
        %3951 = vmatprep.subr.mxu0 0.0
        %3952 = vmatpush1.msra.mxu0 0.0
        %3953 = vmatprep.subr.mxu0 0.0
        %3954 = vmatpush1.msra.mxu0 0.0
        %3955 = vmatprep.subr.mxu0 0.0
        %3956 = vmatpush1.msra.mxu0 0.0
        %3957 = vmatprep.subr.mxu0 0.0
        %3958 = vmatpush1.msra.mxu0 %v2497
        %3959 = vmatprep.subr.mxu0 0.0
        %3960 = vmatpush1.msra.mxu0 %v2496
        %3961 = vmatprep.subr.mxu0 0.0
        %3962 = vmatpush2.msra.mxu0 0.0
        %3963 = vmatprep.subr.mxu0 0.0
        %3964 = vmatpush2.msra.mxu0 0.0
        %3965 = vmatprep.subr.mxu0 0.0
        %3966 = vmatpush2.msra.mxu0 0.0
        %3967 = vmatprep.subr.mxu0 0.0
        %3968 = vmatpush2.msra.mxu0 0.0
        %3969 = vmatprep.subr.mxu0 0.0
        %3970 = vmatpush2.msra.mxu0 0.0
        %3971 = vmatprep.subr.mxu0 0.0
        %3972 = vmatpush2.msra.mxu0 0.0
        %3973 = vmatprep.subr.mxu0 0.0
        %3974 = vmatpush2.msra.mxu0 0.0
        %3975 = vmatprep.subr.mxu0 0.0
        %3976 = vmatpush2.msra.mxu0 0.0
        %3977 = vmatprep.subr.mxu0 0.0
        %3978 = vmatpush2.msra.mxu0 0.0
        %3979 = vmatprep.subr.mxu0 0.0
        %3980 = vmatpush2.msra.mxu0 0.0
        %3981 = vmatprep.subr.mxu0 0.0
        %3982 = vmatpush2.msra.mxu0 0.0
        %3983 = vmatprep.subr.mxu0 0.0
        %3984 = vmatpush2.msra.mxu0 0.0
        %3985 = vmatprep.subr.mxu0 0.0
        %3986 = vmatpush2.msra.mxu0 0.0
        %3987 = vmatprep.subr.mxu0 0.0
        %3988 = vmatpush2.msra.mxu0 0.0
        %3989 = vmatprep.subr.mxu0 0.0
        %3990 = vmatpush2.msra.mxu0 0.0
        %3991 = vmatprep.subr.mxu0 0.0
        %3992 = vmatpush2.msra.mxu0 0.0
        %3993 = vmatprep.mubr.f32.mxu0 0.0
        %3994 = vmatmul.mubr.f32.gmra.mxu0 %v3927
        %v3995 = vpop.f32.mrf.mxu0
        %v3996 = vadd.f32 0.0, %v3995
        %v3997 = vpop.f32.mrf.mxu0
        %3998 = vdwg.mxu0
        %v4000 = vsel %vm2175, %v3779, 0
        %4002 = vmatprep.subr.mxu0 0.0
        %4003 = vmatpush1.msra.mxu0 0.0
        %4004 = vmatprep.subr.mxu0 0.0
        %4005 = vmatpush1.msra.mxu0 0.0
        %4006 = vmatprep.subr.mxu0 0.0
        %4007 = vmatpush1.msra.mxu0 0.0
        %4008 = vmatprep.subr.mxu0 0.0
        %4009 = vmatpush1.msra.mxu0 0.0
        %4010 = vmatprep.subr.mxu0 0.0
        %4011 = vmatpush1.msra.mxu0 0.0
        %4012 = vmatprep.subr.mxu0 0.0
        %4013 = vmatpush1.msra.mxu0 0.0
        %4014 = vmatprep.subr.mxu0 0.0
        %4015 = vmatpush1.msra.mxu0 0.0
        %4016 = vmatprep.subr.mxu0 0.0
        %4017 = vmatpush1.msra.mxu0 0.0
        %4018 = vmatprep.subr.mxu0 0.0
        %4019 = vmatpush1.msra.mxu0 0.0
        %4020 = vmatprep.subr.mxu0 0.0
        %4021 = vmatpush1.msra.mxu0 0.0
        %4022 = vmatprep.subr.mxu0 0.0
        %4023 = vmatpush1.msra.mxu0 0.0
        %4024 = vmatprep.subr.mxu0 0.0
        %4025 = vmatpush1.msra.mxu0 0.0
        %4026 = vmatprep.subr.mxu0 0.0
        %4027 = vmatpush1.msra.mxu0 0.0
        %4028 = vmatprep.subr.mxu0 0.0
        %4029 = vmatpush1.msra.mxu0 0.0
        %4030 = vmatprep.subr.mxu0 0.0
        %4031 = vmatpush1.msra.mxu0 %v2499
        %4032 = vmatprep.subr.mxu0 0.0
        %4033 = vmatpush1.msra.mxu0 %v2498
        %4034 = vmatprep.subr.mxu0 0.0
        %4035 = vmatpush2.msra.mxu0 0.0
        %4036 = vmatprep.subr.mxu0 0.0
        %4037 = vmatpush2.msra.mxu0 0.0
        %4038 = vmatprep.subr.mxu0 0.0
        %4039 = vmatpush2.msra.mxu0 0.0
        %4040 = vmatprep.subr.mxu0 0.0
        %4041 = vmatpush2.msra.mxu0 0.0
        %4042 = vmatprep.subr.mxu0 0.0
        %4043 = vmatpush2.msra.mxu0 0.0
        %4044 = vmatprep.subr.mxu0 0.0
        %4045 = vmatpush2.msra.mxu0 0.0
        %4046 = vmatprep.subr.mxu0 0.0
        %4047 = vmatpush2.msra.mxu0 0.0
        %4048 = vmatprep.subr.mxu0 0.0
        %4049 = vmatpush2.msra.mxu0 0.0
        %4050 = vmatprep.subr.mxu0 0.0
        %4051 = vmatpush2.msra.mxu0 0.0
        %4052 = vmatprep.subr.mxu0 0.0
        %4053 = vmatpush2.msra.mxu0 0.0
        %4054 = vmatprep.subr.mxu0 0.0
        %4055 = vmatpush2.msra.mxu0 0.0
        %4056 = vmatprep.subr.mxu0 0.0
        %4057 = vmatpush2.msra.mxu0 0.0
        %4058 = vmatprep.subr.mxu0 0.0
        %4059 = vmatpush2.msra.mxu0 0.0
        %4060 = vmatprep.subr.mxu0 0.0
        %4061 = vmatpush2.msra.mxu0 0.0
        %4062 = vmatprep.subr.mxu0 0.0
        %4063 = vmatpush2.msra.mxu0 0.0
        %4064 = vmatprep.subr.mxu0 0.0
        %4065 = vmatpush2.msra.mxu0 0.0
        %4066 = vmatprep.mubr.f32.mxu0 0.0
        %4067 = vmatmul.mubr.f32.gmra.mxu0 %v4000
        %v4068 = vpop.f32.mrf.mxu0
        %v4069 = vadd.f32 0.0, %v4068
        %v4070 = vpop.f32.mrf.mxu0
        %4071 = vdwg.mxu0
        %v4072 = vadd.f32 %v468, %v3850
        %v4073 = vadd.f32 %v469, %v3923
        %v4074 = vadd.f32 %v470, %v3996
        %v4075 = vadd.f32 %v471, %v4069
        %4076 = vst.msk [vmem:[%s447] sm:$0xff] %vm505, %v4072
        %4077 = vst.msk [vmem:[%s447 + $0x8] sm:$0xff] %vm505, %v4073
        %4078 = vst.msk [vmem:[%s447 + $0x10] sm:$0xff] %vm505, %v4074
        %4079 = vst.msk [vmem:[%s447 + $0x18] sm:$0xff] %vm505, %v4075
        %s4080 = sand.u32 %s229, 1
        %s4081 = scalar_lea.sflag [#allocation4], %s4080
        %s4082 = sand.u32 %s229, 1
        %s4083 = smul.addr %s4082, 32
        %s4084 = scalar_lea.vmem [#allocation8], %s4083
        %s4085 = sand.u32 %s255, 1
        %s4086 = scalar_lea.sflag [#allocation10], %s4085
        %s4087 = sand.u32 %s255, 1
        %s4088 = smul.addr %s4087, 32
        %s4089 = scalar_lea.vmem [#allocation9], %s4088
        // Predicated region
        $region65: #{tpu_custom_call.1} parent=51 // pred_check
          %p4090 = pneg %p239
        $region66: #{tpu_custom_call.1} parent=51 // pred_check_branch
          %4092 = sbr.rel (%p4090) target = $region68
        $region67: #{tpu_custom_call.1} parent=51 // pred_region
          %s4093 = smul.u32 4, %s33
          %s4095 = ssub.s32 512, 512
          %4096 = vsyncadd %s4081, %s4095
          %s4097 = smul.addr %s4093, 128
          %s4098 = scalar_lea.hbm %s8, %s4097
          %s4099 = sshll.u32 %s4084, 4
          %s4100 = int_to_ptr.vmem [resolvable:$true] %s4099
          %4105 = dma.vmem_to_hbm [thread:$0]  %s4100, 512, %s4098, %s4081, 128, 128, 8
        $region68: #{tpu_custom_call.1} parent=51 // pred_fallthru
          _
        // Predicated region
        $region69: #{tpu_custom_call.1} parent=51 // pred_check
          %p4106 = pneg %p265
        $region70: #{tpu_custom_call.1} parent=51 // pred_check_branch
          %4108 = sbr.rel (%p4106) target = $region72
        $region71: #{tpu_custom_call.1} parent=51 // pred_region
          %s4109 = smul.u32 4, %s33
          %s4111 = ssub.s32 512, 512
          %4112 = vsyncadd %s4086, %s4111
          %s4113 = smul.addr %s4109, 128
          %s4114 = scalar_lea.hbm %s9, %s4113
          %s4115 = sshll.u32 %s4089, 4
          %s4116 = int_to_ptr.vmem [resolvable:$true] %s4115
          %4121 = dma.vmem_to_hbm [thread:$0]  %s4116, 512, %s4114, %s4086, 128, 128, 8
        $region72: #{tpu_custom_call.1} parent=51 // pred_fallthru
          _
      $region52: #{tpu_custom_call.1} parent=5 // pred_fallthru
        _
      %p4122 = scmp.le.s32.totalorder 2, %s28
      // Predicated region
      $region73: #{tpu_custom_call.1} parent=5 // pred_check
        %p4123 = pneg %p4122
      $region74: #{tpu_custom_call.1} parent=5 // pred_check_branch
        %4125 = sbr.rel (%p4123) target = $region76
      $region75: #{tpu_custom_call.1} parent=5 // pred_region
        %s4126 = ssub.s32 %s28, 2
        // Predicated region
        $region77: #{tpu_custom_call.1} parent=75 // pred_check
          %p4127 = pneg %p245
        $region78: #{tpu_custom_call.1} parent=75 // pred_check_branch
          %4129 = sbr.rel (%p4127) target = $region80
        $region79: #{tpu_custom_call.1} parent=75 // pred_region
          %s4130 = sand.u32 %s230, 1
          %s4131 = scalar_lea.sflag [#allocation4], %s4130
          %s4132 = sand.u32 %s230, 1
          %s4133 = smul.addr %s4132, 32
          %s4134 = scalar_lea.vmem [#allocation8], %s4133
          %4135 = dma.done %s4131, 512
        $region80: #{tpu_custom_call.1} parent=75 // pred_fallthru
          _
        // Predicated region
        $region81: #{tpu_custom_call.1} parent=75 // pred_check
          %p4136 = pneg %p271
        $region82: #{tpu_custom_call.1} parent=75 // pred_check_branch
          %4138 = sbr.rel (%p4136) target = $region84
        $region83: #{tpu_custom_call.1} parent=75 // pred_region
          %s4139 = sand.u32 %s256, 1
          %s4140 = scalar_lea.sflag [#allocation10], %s4139
          %s4141 = sand.u32 %s256, 1
          %s4142 = smul.addr %s4141, 32
          %s4143 = scalar_lea.vmem [#allocation9], %s4142
          %4144 = dma.done %s4140, 512
        $region84: #{tpu_custom_call.1} parent=75 // pred_fallthru
          _
      $region76: #{tpu_custom_call.1} parent=5 // pred_fallthru
        _
    $region6: #{tpu_custom_call.1} parent=1 // loop_footer
      %s32 = sadd.s32 1, %s28
    $region7: #{tpu_custom_call.1} parent=1 // loop_footer_branch
      %27 = sbr.rel target = $region3
    $region8: #{tpu_custom_call.1} parent=1 // loop_exit
      _
    %4145 = vsyncpa [#allocation3], 1
    %s4146 = scalar_lea.sflag [#allocation3], 1
    %4147 = vsyncpa %s4146, 1
    %4148 = vsyncpa [#allocation6], 1
    %s4149 = scalar_lea.sflag [#allocation6], 1
    %4150 = vsyncpa %s4149, 1
    %4151 = vsyncpa [#allocation4], 1
    %s4152 = scalar_lea.sflag [#allocation4], 1
    %4153 = vsyncpa %s4152, 1
    %4154 = vsyncpa [#allocation10], 1
    %s4155 = scalar_lea.sflag [#allocation10], 1
    %4156 = vsyncpa %s4155, 1

</llo_original>
